<compile_context>
chip_gen: v7x
topology: tpu7x:2x2x1
jax: 0.10.0
libtpu: 0.0.40
codegen_flags: <defaults>
</compile_context>

<pallas_src>
import functools

import numpy as np
import jax
import jax.numpy as jnp
from jax import lax
from jax.experimental import pallas as pl
from jax.experimental.pallas import tpu as pltpu


def _dot(a, b):
    # Single-pass MXU matmul (bf16 operand feed, f32 accumulate).  The kernel
    # is latency-bound on a serial chain of tiny dots, so pass count per dot
    # multiplies the critical path (DEFAULT: 1 pass vs HIGHEST: 6 passes).
    return jnp.dot(a, b, precision=lax.Precision.DEFAULT,
                   preferred_element_type=jnp.float32)


def rvae_kernel(x_ref, eps_ref,
                wih_gx_ref, whh_gx_ref, b_gx_ref,
                w_gz_x_ref, b_gz_mlp_ref,
                w_gz_rnn_ref, b_gz_ref, w_gz_z_ref,
                w_head_ref, b_head_ref,
                w_h_rnn_ref, b_h_ref,
                w_out_ref, b_out_ref,
                y_ref,
                gxpart_s, hh_s,
                *, S, B):
    Hgx = whh_gx_ref.shape[0]
    Hgz = w_gz_rnn_ref.shape[1] // 4
    Hh = w_h_rnn_ref.shape[1] // 4
    Zd = eps_ref.shape[1]
    Dgz = w_gz_x_ref.shape[1]

    def gates_to_hc(gates, c, H):
        # Gate columns are (i, f, o, g); the i/f/o pre-activations were
        # pre-scaled by 0.5 host-side, so a single full-vreg tanh yields all
        # four gates:  sigmoid(x) == 0.5 * tanh(0.5 * x) + 0.5.
        t_all = jnp.tanh(gates)           # one EUP op over the whole (B,4H) vreg
        sig = 0.5 * t_all + 0.5
        i = sig[:, 0:H]
        f = sig[:, H:2 * H]
        o = sig[:, 2 * H:3 * H]
        g = t_all[:, 3 * H:4 * H]
        c_new = f * c + i * g
        h_new = o * jnp.tanh(c_new)
        return h_new, c_new

    # ---------------- Phase A: backward recurrence over x (rnn_g_x) --------
    # A0: time-parallel input projection (one batched matmul, bias folded in).
    wih_gx = wih_gx_ref[...]
    whh_gx = whh_gx_ref[...]
    w_gz_x = w_gz_x_ref[...]
    b_gz_mlp_b = jnp.broadcast_to(b_gz_mlp_ref[...], (B, Dgz))
    xproj = _dot(x_ref[...], wih_gx) + b_gx_ref[...]        # (S*B, 4*Hgx)

    # A1: backward-in-time recurrence; only h @ W_hh sits on the serial
    # chain.  The g_x half of mlp_g_z is off that chain and is computed in
    # the same step's MXU slack (g_x never round-trips through scratch).
    h = jnp.zeros((B, Hgx), jnp.float32)
    c = jnp.zeros((B, Hgx), jnp.float32)
    for t in range(S - 1, -1, -1):                 # static, fully unrolled
        gates = xproj[t * B:(t + 1) * B, :] + _dot(h, whh_gx)
        h, c = gates_to_hc(gates, c, Hgx)
        gxpart_s[pl.ds(t * B, B), :] = _dot(h, w_gz_x) + b_gz_mlp_b

    # ---------------- Phase B: inference fused with generation LSTM --------
    w_gz_rnn = w_gz_rnn_ref[...]
    w_gz_z = w_gz_z_ref[...]
    w_head = w_head_ref[...]
    w_h_rnn = w_h_rnn_ref[...]
    b_gz_b = jnp.broadcast_to(b_gz_ref[...], (B, 4 * Hgz))
    b_h_b = jnp.broadcast_to(b_h_ref[...], (B, 4 * Hh))
    b_head_b = jnp.broadcast_to(b_head_ref[...], (B, 2 * Zd))

    z_t = jnp.zeros((B, Zd), jnp.float32)
    h_gz = jnp.zeros((B, Hgz), jnp.float32)
    c_gz = jnp.zeros((B, Hgz), jnp.float32)
    h_h = jnp.zeros((B, Hh), jnp.float32)
    c_h = jnp.zeros((B, Hh), jnp.float32)
    for t in range(S):                             # static, fully unrolled
        # rnn_g_z step (mlp_z_gz = Identity): fused [W_ih; W_hh] single dot.
        gates_gz = _dot(jnp.concatenate([z_t, h_gz], axis=1), w_gz_rnn) + b_gz_b
        h_gz, c_gz = gates_to_hc(gates_gz, c_gz, Hgz)
        # mlp_g_z: tanh(gx_part[t] + h_gz @ W_gz_z)   (dropout p=0)
        g_z = jnp.tanh(gxpart_s[pl.ds(t * B, B), :] + _dot(h_gz, w_gz_z))
        # fused inf_mean / (0.5 * inf_logvar) head.
        head = _dot(g_z, w_head) + b_head_b
        # reparameterization: mean + eps * exp(0.5 * logvar)
        z_t = head[:, :Zd] + eps_ref[pl.ds(t * B, B), :] * jnp.exp(head[:, Zd:])
        # generation rnn_h step (mlp_z_h = Identity): fused single dot.
        # (Interleaving is exact: rnn_h is a forward unidirectional LSTM.)
        gates_h = _dot(jnp.concatenate([z_t, h_h], axis=1), w_h_rnn) + b_h_b
        h_h, c_h = gates_to_hc(gates_h, c_h, Hh)
        hh_s[pl.ds(t * B, B), :] = h_h

    # ---------------- Phase C: deferred gen_out (one batched matmul) -------
    y_ref[...] = _dot(hh_s[...], w_out_ref[...]) + b_out_ref[...]


def _prep_lstm(w, H):
    """Host-side: reorder gate columns PyTorch (i,f,g,o) -> (i,f,o,g) and
    pre-scale the i/f/o columns by 0.5 so the kernel computes sigmoid via a
    single full-vreg tanh (sigmoid(x) = 0.5*tanh(0.5*x) + 0.5)."""
    i = w[..., 0:H]
    f = w[..., H:2 * H]
    g = w[..., 2 * H:3 * H]
    o = w[..., 3 * H:4 * H]
    return jnp.concatenate([0.5 * i, 0.5 * f, 0.5 * o, g], axis=-1)


def rvae_forward(x, eps, params):
    S, B, x_dim = x.shape
    z_dim = eps.shape[2]
    Hgx = params["whh_gx"].shape[0]
    Hgz = params["whh_gz"].shape[0]
    Hh = params["whh_h"].shape[0]
    Dgz = params["w_gz"].shape[1]

    # ---- host-side weight preprocessing (one-time) ----
    wih_gx = _prep_lstm(params["wih_gx"], Hgx)
    whh_gx = _prep_lstm(params["whh_gx"], Hgx)
    b_gx = _prep_lstm(params["b_gx"], Hgx)
    # Fuse input & recurrent weights of the per-step LSTMs into one matmul.
    w_gz_rnn = _prep_lstm(
        jnp.concatenate([params["wih_gz"], params["whh_gz"]], axis=0), Hgz)
    b_gz = _prep_lstm(params["b_gz"], Hgz)
    w_h_rnn = _prep_lstm(
        jnp.concatenate([params["wih_h"], params["whh_h"]], axis=0), Hh)
    b_h = _prep_lstm(params["b_h"], Hh)
    # Split mlp_g_z weight into g_x / g_z halves (g_x half applied time-
    # parallel in Phase A; no per-step concat of g_x with h_gz).
    w_gz_x = params["w_gz"][:Hgx]
    w_gz_z = params["w_gz"][Hgx:]
    # Fuse inf_mean / inf_logvar; fold the 0.5 reparam factor into logvar.
    w_head = jnp.concatenate([params["w_mean"], 0.5 * params["w_lv"]], axis=1)
    b_head = jnp.concatenate([params["b_mean"], 0.5 * params["b_lv"]], axis=1)

    # Flat (S*B, F) layouts: no in-kernel reshapes; sublane-aligned per-step
    # slices (B == 8 rows == one f32 sublane tile).
    x_flat = x.reshape(S * B, x_dim)
    eps_flat = eps.reshape(S * B, z_dim)

    args = (x_flat, eps_flat,
            wih_gx, whh_gx, b_gx,
            w_gz_x, params["b_gz_mlp"],
            w_gz_rnn, b_gz, w_gz_z,
            w_head, b_head,
            w_h_rnn, b_h,
            params["w_out"], params["b_out"])

    vmem = pl.BlockSpec(memory_space=pltpu.MemorySpace.VMEM)
    y_flat = pl.pallas_call(
        functools.partial(rvae_kernel, S=S, B=B),
        out_shape=jax.ShapeDtypeStruct((S * B, x_dim), jnp.float32),
        in_specs=[vmem] * len(args),
        out_specs=vmem,
        scratch_shapes=[
            pltpu.VMEM((S * B, Dgz), jnp.float32),   # g_x half of mlp_g_z
            pltpu.VMEM((S * B, Hh), jnp.float32),    # h_t of the generation LSTM
        ],
        # Working set ~150 KiB: fits the default scoped-VMEM budget on
        # v5e / v6e / v7x, so no vmem_limit_bytes override is needed here.
    )(*args)
    return y_flat.reshape(S, B, x_dim)


# ---------------- pure-JAX reference (full-f32 ground truth) ----------------
def _dot_hi(a, b):
    return jnp.dot(a, b, precision=lax.Precision.HIGHEST)


def _lstm_step_ref(x_t, h, c, w_ih, w_hh, b, H):
    gates = _dot_hi(x_t, w_ih) + _dot_hi(h, w_hh) + b
    i = jax.nn.sigmoid(gates[:, 0:H])
    f = jax.nn.sigmoid(gates[:, H:2 * H])
    g = jnp.tanh(gates[:, 2 * H:3 * H])
    o = jax.nn.sigmoid(gates[:, 3 * H:4 * H])
    c_new = f * c + i * g
    return o * jnp.tanh(c_new), c_new


def rvae_reference(x, eps, params):
    S, B, x_dim = x.shape
    Hgx = params["whh_gx"].shape[0]
    Hgz = params["whh_gz"].shape[0]
    Hh = params["whh_h"].shape[0]
    Zd = params["w_mean"].shape[1]
    # backward LSTM over x (g_x = flip(rnn(flip(x))))
    h = jnp.zeros((B, Hgx)); c = jnp.zeros((B, Hgx))
    g_x = [None] * S
    for t in range(S - 1, -1, -1):
        h, c = _lstm_step_ref(x[t], h, c, params["wih_gx"], params["whh_gx"],
                              params["b_gx"], Hgx)
        g_x[t] = h
    # inference + generation
    z_t = jnp.zeros((B, Zd))
    h_gz = jnp.zeros((B, Hgz)); c_gz = jnp.zeros((B, Hgz))
    h_h = jnp.zeros((B, Hh)); c_h = jnp.zeros((B, Hh))
    ys = []
    for t in range(S):
        h_gz, c_gz = _lstm_step_ref(z_t, h_gz, c_gz, params["wih_gz"],
                                    params["whh_gz"], params["b_gz"], Hgz)
        concat = jnp.concatenate([g_x[t], h_gz], axis=-1)
        g_z = jnp.tanh(_dot_hi(concat, params["w_gz"]) + params["b_gz_mlp"])
        mean = _dot_hi(g_z, params["w_mean"]) + params["b_mean"]
        logvar = _dot_hi(g_z, params["w_lv"]) + params["b_lv"]
        z_t = mean + eps[t] * jnp.exp(0.5 * logvar)
        h_h, c_h = _lstm_step_ref(z_t, h_h, c_h, params["wih_h"],
                                  params["whh_h"], params["b_h"], Hh)
        ys.append(_dot_hi(h_h, params["w_out"]) + params["b_out"])
    return jnp.stack(ys, axis=0)


def init_params(key, x_dim, z_dim, Hgx, Hgz, Dgz, Hh):
    ks = jax.random.split(key, 17)
    w = lambda k, shape, s=0.1: jax.random.normal(k, shape, jnp.float32) * s
    return dict(
        # rnn_g_x (LSTM x_dim -> Hgx), PyTorch gate order (i, f, g, o)
        wih_gx=w(ks[0], (x_dim, 4 * Hgx)),
        whh_gx=w(ks[1], (Hgx, 4 * Hgx)),
        b_gx=w(ks[2], (1, 4 * Hgx)),
        # rnn_g_z (LSTM z_dim -> Hgz)
        wih_gz=w(ks[3], (z_dim, 4 * Hgz)),
        whh_gz=w(ks[4], (Hgz, 4 * Hgz)),
        b_gz=w(ks[5], (1, 4 * Hgz)),
        # mlp_g_z: Linear(Hgx + Hgz -> Dgz) + tanh
        w_gz=w(ks[6], (Hgx + Hgz, Dgz)),
        b_gz_mlp=w(ks[7], (1, Dgz)),
        # inf_mean / inf_logvar
        w_mean=w(ks[8], (Dgz, z_dim)),
        b_mean=w(ks[9], (1, z_dim)),
        w_lv=w(ks[10], (Dgz, z_dim)),
        b_lv=w(ks[11], (1, z_dim)),
        # rnn_h (LSTM z_dim -> Hh)
        wih_h=w(ks[12], (z_dim, 4 * Hh)),
        whh_h=w(ks[13], (Hh, 4 * Hh)),
        b_h=w(ks[14], (1, 4 * Hh)),
        # gen_out
        w_out=w(ks[15], (Hh, x_dim)),
        b_out=w(ks[16], (1, x_dim)),
    )


if __name__ == "__main__":
    # Small shapes: seq=8, batch=8 (one f32 sublane tile), dims 16 / 32
    # (4H = 128 -> gate blocks are exactly one vreg wide).
    S, B, x_dim, z_dim = 8, 8, 16, 16
    Hgx, Hgz, Dgz, Hh = 32, 32, 32, 32

    key = jax.random.PRNGKey(0)
    kx, keps, kp = jax.random.split(key, 3)
    x = jax.random.normal(kx, (S, B, x_dim), jnp.float32)
    # TODO(synk): torch.randn_like inside reparameterization -> noise is
    # precomputed here and passed into the kernel (matches PyTorch only
    # distributionally, not bit-for-bit).
    eps = jax.random.normal(keps, (S, B, z_dim), jnp.float32)
    params = init_params(kp, x_dim, z_dim, Hgx, Hgz, Dgz, Hh)

    y = rvae_forward(x, eps, params)
    jax.block_until_ready(y)

    y_ref = rvae_reference(x, eps, params)
    assert y.shape == (S, B, x_dim)
    # Kernel dots run at DEFAULT precision (single bf16 MXU pass, f32 acc)
    # while the reference runs at HIGHEST (full f32); tolerance covers bf16
    # input rounding propagated through the 8-step recurrences.
    assert np.allclose(np.asarray(y), np.asarray(y_ref), atol=5e-2, rtol=5e-2)
    print("KERNEL_OK")
</pallas_src>

<mosaic_0001>
module attributes {stable_mosaic.version = 11 : i64} {
  func.func @rvae_kernel(%arg0: memref<64x16xf32, #tpu.memory_space<vmem>>, %arg1: memref<64x16xf32, #tpu.memory_space<vmem>>, %arg2: memref<16x128xf32, #tpu.memory_space<vmem>>, %arg3: memref<32x128xf32, #tpu.memory_space<vmem>>, %arg4: memref<1x128xf32, #tpu.memory_space<vmem>>, %arg5: memref<32x32xf32, #tpu.memory_space<vmem>>, %arg6: memref<1x32xf32, #tpu.memory_space<vmem>>, %arg7: memref<48x128xf32, #tpu.memory_space<vmem>>, %arg8: memref<1x128xf32, #tpu.memory_space<vmem>>, %arg9: memref<32x32xf32, #tpu.memory_space<vmem>>, %arg10: memref<32x32xf32, #tpu.memory_space<vmem>>, %arg11: memref<1x32xf32, #tpu.memory_space<vmem>>, %arg12: memref<48x128xf32, #tpu.memory_space<vmem>>, %arg13: memref<1x128xf32, #tpu.memory_space<vmem>>, %arg14: memref<32x16xf32, #tpu.memory_space<vmem>>, %arg15: memref<1x16xf32, #tpu.memory_space<vmem>>, %arg16: memref<64x16xf32, #tpu.memory_space<vmem>>, %arg17: memref<64x32xf32, #tpu.memory_space<vmem>>, %arg18: memref<64x32xf32, #tpu.memory_space<vmem>>) attributes {dimension_semantics = [], scalar_prefetch = 0 : i64, scratch_operands = 2 : i64, tpu.core_type = #tpu.core_type<tc>} {
    %c0 = arith.constant 0 : index
    %c0_0 = arith.constant 0 : index
    %0 = vector.load %arg2[%c0, %c0_0] : memref<16x128xf32, #tpu.memory_space<vmem>>, vector<16x128xf32>
    %c0_1 = arith.constant 0 : index
    %c0_2 = arith.constant 0 : index
    %1 = vector.load %arg3[%c0_1, %c0_2] : memref<32x128xf32, #tpu.memory_space<vmem>>, vector<32x128xf32>
    %c0_3 = arith.constant 0 : index
    %c0_4 = arith.constant 0 : index
    %2 = vector.load %arg5[%c0_3, %c0_4] : memref<32x32xf32, #tpu.memory_space<vmem>>, vector<32x32xf32>
    %c0_5 = arith.constant 0 : index
    %c0_6 = arith.constant 0 : index
    %3 = vector.load %arg6[%c0_5, %c0_6] : memref<1x32xf32, #tpu.memory_space<vmem>>, vector<1x32xf32>
    %4 = vector.shape_cast %3 : vector<1x32xf32> to vector<1x32xf32>
    %5 = vector.broadcast %4 : vector<1x32xf32> to vector<8x32xf32>
    %c0_7 = arith.constant 0 : index
    %c0_8 = arith.constant 0 : index
    %6 = vector.load %arg0[%c0_7, %c0_8] : memref<64x16xf32, #tpu.memory_space<vmem>>, vector<64x16xf32>
    %cst = arith.constant dense<0.000000e+00> : vector<64x128xf32>
    %7 = tpu.matmul %6, %0, %cst {dimension_numbers = #tpu.dot_dimension_numbers<[1], [0], [0], [1], [0, 0, 1, 1], [], []>} : vector<64x16xf32>, vector<16x128xf32>, vector<64x128xf32> -> vector<64x128xf32>
    %c0_9 = arith.constant 0 : index
    %c0_10 = arith.constant 0 : index
    %8 = vector.load %arg4[%c0_9, %c0_10] : memref<1x128xf32, #tpu.memory_space<vmem>>, vector<1x128xf32>
    %9 = vector.broadcast %8 : vector<1x128xf32> to vector<64x128xf32>
    %10 = arith.addf %7, %9 : vector<64x128xf32>
    %cst_11 = arith.constant 0.000000e+00 : f32
    %11 = vector.broadcast %cst_11 : f32 to vector<8x32xf32>
    %cst_12 = arith.constant 0.000000e+00 : f32
    %12 = vector.broadcast %cst_12 : f32 to vector<8x32xf32>
    %13 = vector.extract_strided_slice %10 {offsets = [56, 0], sizes = [8, 128], strides = [1, 1]} : vector<64x128xf32> to vector<8x128xf32>
    %cst_13 = arith.constant dense<0.000000e+00> : vector<8x128xf32>
    %14 = tpu.matmul %11, %1, %cst_13 {dimension_numbers = #tpu.dot_dimension_numbers<[1], [0], [0], [1], [0, 0, 1, 1], [], []>} : vector<8x32xf32>, vector<32x128xf32>, vector<8x128xf32> -> vector<8x128xf32>
    %15 = arith.addf %13, %14 : vector<8x128xf32>
    %16 = math.tanh %15 : vector<8x128xf32>
    %cst_14 = arith.constant 5.000000e-01 : f32
    %17 = vector.broadcast %cst_14 : f32 to vector<8x128xf32>
    %18 = arith.mulf %17, %16 : vector<8x128xf32>
    %cst_15 = arith.constant 5.000000e-01 : f32
    %19 = vector.broadcast %cst_15 : f32 to vector<8x128xf32>
    %20 = arith.addf %18, %19 : vector<8x128xf32>
    %21 = vector.extract_strided_slice %20 {offsets = [0, 0], sizes = [8, 32], strides = [1, 1]} : vector<8x128xf32> to vector<8x32xf32>
    %22 = vector.extract_strided_slice %20 {offsets = [0, 32], sizes = [8, 32], strides = [1, 1]} : vector<8x128xf32> to vector<8x32xf32>
    %23 = vector.extract_strided_slice %20 {offsets = [0, 64], sizes = [8, 32], strides = [1, 1]} : vector<8x128xf32> to vector<8x32xf32>
    %24 = vector.extract_strided_slice %16 {offsets = [0, 96], sizes = [8, 32], strides = [1, 1]} : vector<8x128xf32> to vector<8x32xf32>
    %25 = arith.mulf %22, %12 : vector<8x32xf32>
    %26 = arith.mulf %21, %24 : vector<8x32xf32>
    %27 = arith.addf %25, %26 : vector<8x32xf32>
    %28 = math.tanh %27 : vector<8x32xf32>
    %29 = arith.mulf %23, %28 : vector<8x32xf32>
    %cst_16 = arith.constant dense<0.000000e+00> : vector<8x32xf32>
    %30 = tpu.matmul %29, %2, %cst_16 {dimension_numbers = #tpu.dot_dimension_numbers<[1], [0], [0], [1], [0, 0, 1, 1], [], []>} : vector<8x32xf32>, vector<32x32xf32>, vector<8x32xf32> -> vector<8x32xf32>
    %31 = arith.addf %30, %5 : vector<8x32xf32>
    %c56 = arith.constant 56 : index
    %c0_17 = arith.constant 0 : index
    %32 = vector.load %arg17[%c56, %c0_17] : memref<64x32xf32, #tpu.memory_space<vmem>>, vector<8x32xf32>
    tpu.vector_store %arg17[%c56, %c0_17], %31 {strides = array<i32>} : memref<64x32xf32, #tpu.memory_space<vmem>>, vector<8x32xf32>,
    %33 = vector.extract_strided_slice %10 {offsets = [48, 0], sizes = [8, 128], strides = [1, 1]} : vector<64x128xf32> to vector<8x128xf32>
    %cst_18 = arith.constant dense<0.000000e+00> : vector<8x128xf32>
    %34 = tpu.matmul %29, %1, %cst_18 {dimension_numbers = #tpu.dot_dimension_numbers<[1], [0], [0], [1], [0, 0, 1, 1], [], []>} : vector<8x32xf32>, vector<32x128xf32>, vector<8x128xf32> -> vector<8x128xf32>
    %35 = arith.addf %33, %34 : vector<8x128xf32>
    %36 = math.tanh %35 : vector<8x128xf32>
    %cst_19 = arith.constant 5.000000e-01 : f32
    %37 = vector.broadcast %cst_19 : f32 to vector<8x128xf32>
    %38 = arith.mulf %37, %36 : vector<8x128xf32>
    %cst_20 = arith.constant 5.000000e-01 : f32
    %39 = vector.broadcast %cst_20 : f32 to vector<8x128xf32>
    %40 = arith.addf %38, %39 : vector<8x128xf32>
    %41 = vector.extract_strided_slice %40 {offsets = [0, 0], sizes = [8, 32], strides = [1, 1]} : vector<8x128xf32> to vector<8x32xf32>
    %42 = vector.extract_strided_slice %40 {offsets = [0, 32], sizes = [8, 32], strides = [1, 1]} : vector<8x128xf32> to vector<8x32xf32>
    %43 = vector.extract_strided_slice %40 {offsets = [0, 64], sizes = [8, 32], strides = [1, 1]} : vector<8x128xf32> to vector<8x32xf32>
    %44 = vector.extract_strided_slice %36 {offsets = [0, 96], sizes = [8, 32], strides = [1, 1]} : vector<8x128xf32> to vector<8x32xf32>
    %45 = arith.mulf %42, %27 : vector<8x32xf32>
    %46 = arith.mulf %41, %44 : vector<8x32xf32>
    %47 = arith.addf %45, %46 : vector<8x32xf32>
    %48 = math.tanh %47 : vector<8x32xf32>
    %49 = arith.mulf %43, %48 : vector<8x32xf32>
    %cst_21 = arith.constant dense<0.000000e+00> : vector<8x32xf32>
    %50 = tpu.matmul %49, %2, %cst_21 {dimension_numbers = #tpu.dot_dimension_numbers<[1], [0], [0], [1], [0, 0, 1, 1], [], []>} : vector<8x32xf32>, vector<32x32xf32>, vector<8x32xf32> -> vector<8x32xf32>
    %51 = arith.addf %50, %5 : vector<8x32xf32>
    %c48 = arith.constant 48 : index
    %c0_22 = arith.constant 0 : index
    %52 = vector.load %arg17[%c48, %c0_22] : memref<64x32xf32, #tpu.memory_space<vmem>>, vector<8x32xf32>
    tpu.vector_store %arg17[%c48, %c0_22], %51 {strides = array<i32>} : memref<64x32xf32, #tpu.memory_space<vmem>>, vector<8x32xf32>,
    %53 = vector.extract_strided_slice %10 {offsets = [40, 0], sizes = [8, 128], strides = [1, 1]} : vector<64x128xf32> to vector<8x128xf32>
    %cst_23 = arith.constant dense<0.000000e+00> : vector<8x128xf32>
    %54 = tpu.matmul %49, %1, %cst_23 {dimension_numbers = #tpu.dot_dimension_numbers<[1], [0], [0], [1], [0, 0, 1, 1], [], []>} : vector<8x32xf32>, vector<32x128xf32>, vector<8x128xf32> -> vector<8x128xf32>
    %55 = arith.addf %53, %54 : vector<8x128xf32>
    %56 = math.tanh %55 : vector<8x128xf32>
    %cst_24 = arith.constant 5.000000e-01 : f32
    %57 = vector.broadcast %cst_24 : f32 to vector<8x128xf32>
    %58 = arith.mulf %57, %56 : vector<8x128xf32>
    %cst_25 = arith.constant 5.000000e-01 : f32
    %59 = vector.broadcast %cst_25 : f32 to vector<8x128xf32>
    %60 = arith.addf %58, %59 : vector<8x128xf32>
    %61 = vector.extract_strided_slice %60 {offsets = [0, 0], sizes = [8, 32], strides = [1, 1]} : vector<8x128xf32> to vector<8x32xf32>
    %62 = vector.extract_strided_slice %60 {offsets = [0, 32], sizes = [8, 32], strides = [1, 1]} : vector<8x128xf32> to vector<8x32xf32>
    %63 = vector.extract_strided_slice %60 {offsets = [0, 64], sizes = [8, 32], strides = [1, 1]} : vector<8x128xf32> to vector<8x32xf32>
    %64 = vector.extract_strided_slice %56 {offsets = [0, 96], sizes = [8, 32], strides = [1, 1]} : vector<8x128xf32> to vector<8x32xf32>
    %65 = arith.mulf %62, %47 : vector<8x32xf32>
    %66 = arith.mulf %61, %64 : vector<8x32xf32>
    %67 = arith.addf %65, %66 : vector<8x32xf32>
    %68 = math.tanh %67 : vector<8x32xf32>
    %69 = arith.mulf %63, %68 : vector<8x32xf32>
    %cst_26 = arith.constant dense<0.000000e+00> : vector<8x32xf32>
    %70 = tpu.matmul %69, %2, %cst_26 {dimension_numbers = #tpu.dot_dimension_numbers<[1], [0], [0], [1], [0, 0, 1, 1], [], []>} : vector<8x32xf32>, vector<32x32xf32>, vector<8x32xf32> -> vector<8x32xf32>
    %71 = arith.addf %70, %5 : vector<8x32xf32>
    %c40 = arith.constant 40 : index
    %c0_27 = arith.constant 0 : index
    %72 = vector.load %arg17[%c40, %c0_27] : memref<64x32xf32, #tpu.memory_space<vmem>>, vector<8x32xf32>
    tpu.vector_store %arg17[%c40, %c0_27], %71 {strides = array<i32>} : memref<64x32xf32, #tpu.memory_space<vmem>>, vector<8x32xf32>,
    %73 = vector.extract_strided_slice %10 {offsets = [32, 0], sizes = [8, 128], strides = [1, 1]} : vector<64x128xf32> to vector<8x128xf32>
    %cst_28 = arith.constant dense<0.000000e+00> : vector<8x128xf32>
    %74 = tpu.matmul %69, %1, %cst_28 {dimension_numbers = #tpu.dot_dimension_numbers<[1], [0], [0], [1], [0, 0, 1, 1], [], []>} : vector<8x32xf32>, vector<32x128xf32>, vector<8x128xf32> -> vector<8x128xf32>
    %75 = arith.addf %73, %74 : vector<8x128xf32>
    %76 = math.tanh %75 : vector<8x128xf32>
    %cst_29 = arith.constant 5.000000e-01 : f32
    %77 = vector.broadcast %cst_29 : f32 to vector<8x128xf32>
    %78 = arith.mulf %77, %76 : vector<8x128xf32>
    %cst_30 = arith.constant 5.000000e-01 : f32
    %79 = vector.broadcast %cst_30 : f32 to vector<8x128xf32>
    %80 = arith.addf %78, %79 : vector<8x128xf32>
    %81 = vector.extract_strided_slice %80 {offsets = [0, 0], sizes = [8, 32], strides = [1, 1]} : vector<8x128xf32> to vector<8x32xf32>
    %82 = vector.extract_strided_slice %80 {offsets = [0, 32], sizes = [8, 32], strides = [1, 1]} : vector<8x128xf32> to vector<8x32xf32>
    %83 = vector.extract_strided_slice %80 {offsets = [0, 64], sizes = [8, 32], strides = [1, 1]} : vector<8x128xf32> to vector<8x32xf32>
    %84 = vector.extract_strided_slice %76 {offsets = [0, 96], sizes = [8, 32], strides = [1, 1]} : vector<8x128xf32> to vector<8x32xf32>
    %85 = arith.mulf %82, %67 : vector<8x32xf32>
    %86 = arith.mulf %81, %84 : vector<8x32xf32>
    %87 = arith.addf %85, %86 : vector<8x32xf32>
    %88 = math.tanh %87 : vector<8x32xf32>
    %89 = arith.mulf %83, %88 : vector<8x32xf32>
    %cst_31 = arith.constant dense<0.000000e+00> : vector<8x32xf32>
    %90 = tpu.matmul %89, %2, %cst_31 {dimension_numbers = #tpu.dot_dimension_numbers<[1], [0], [0], [1], [0, 0, 1, 1], [], []>} : vector<8x32xf32>, vector<32x32xf32>, vector<8x32xf32> -> vector<8x32xf32>
    %91 = arith.addf %90, %5 : vector<8x32xf32>
    %c32 = arith.constant 32 : index
    %c0_32 = arith.constant 0 : index
    %92 = vector.load %arg17[%c32, %c0_32] : memref<64x32xf32, #tpu.memory_space<vmem>>, vector<8x32xf32>
    tpu.vector_store %arg17[%c32, %c0_32], %91 {strides = array<i32>} : memref<64x32xf32, #tpu.memory_space<vmem>>, vector<8x32xf32>,
    %93 = vector.extract_strided_slice %10 {offsets = [24, 0], sizes = [8, 128], strides = [1, 1]} : vector<64x128xf32> to vector<8x128xf32>
    %cst_33 = arith.constant dense<0.000000e+00> : vector<8x128xf32>
    %94 = tpu.matmul %89, %1, %cst_33 {dimension_numbers = #tpu.dot_dimension_numbers<[1], [0], [0], [1], [0, 0, 1, 1], [], []>} : vector<8x32xf32>, vector<32x128xf32>, vector<8x128xf32> -> vector<8x128xf32>
    %95 = arith.addf %93, %94 : vector<8x128xf32>
    %96 = math.tanh %95 : vector<8x128xf32>
    %cst_34 = arith.constant 5.000000e-01 : f32
    %97 = vector.broadcast %cst_34 : f32 to vector<8x128xf32>
    %98 = arith.mulf %97, %96 : vector<8x128xf32>
    %cst_35 = arith.constant 5.000000e-01 : f32
    %99 = vector.broadcast %cst_35 : f32 to vector<8x128xf32>
    %100 = arith.addf %98, %99 : vector<8x128xf32>
    %101 = vector.extract_strided_slice %100 {offsets = [0, 0], sizes = [8, 32], strides = [1, 1]} : vector<8x128xf32> to vector<8x32xf32>
    %102 = vector.extract_strided_slice %100 {offsets = [0, 32], sizes = [8, 32], strides = [1, 1]} : vector<8x128xf32> to vector<8x32xf32>
    %103 = vector.extract_strided_slice %100 {offsets = [0, 64], sizes = [8, 32], strides = [1, 1]} : vector<8x128xf32> to vector<8x32xf32>
    %104 = vector.extract_strided_slice %96 {offsets = [0, 96], sizes = [8, 32], strides = [1, 1]} : vector<8x128xf32> to vector<8x32xf32>
    %105 = arith.mulf %102, %87 : vector<8x32xf32>
    %106 = arith.mulf %101, %104 : vector<8x32xf32>
    %107 = arith.addf %105, %106 : vector<8x32xf32>
    %108 = math.tanh %107 : vector<8x32xf32>
    %109 = arith.mulf %103, %108 : vector<8x32xf32>
    %cst_36 = arith.constant dense<0.000000e+00> : vector<8x32xf32>
    %110 = tpu.matmul %109, %2, %cst_36 {dimension_numbers = #tpu.dot_dimension_numbers<[1], [0], [0], [1], [0, 0, 1, 1], [], []>} : vector<8x32xf32>, vector<32x32xf32>, vector<8x32xf32> -> vector<8x32xf32>
    %111 = arith.addf %110, %5 : vector<8x32xf32>
    %c24 = arith.constant 24 : index
    %c0_37 = arith.constant 0 : index
    %112 = vector.load %arg17[%c24, %c0_37] : memref<64x32xf32, #tpu.memory_space<vmem>>, vector<8x32xf32>
    tpu.vector_store %arg17[%c24, %c0_37], %111 {strides = array<i32>} : memref<64x32xf32, #tpu.memory_space<vmem>>, vector<8x32xf32>,
    %113 = vector.extract_strided_slice %10 {offsets = [16, 0], sizes = [8, 128], strides = [1, 1]} : vector<64x128xf32> to vector<8x128xf32>
    %cst_38 = arith.constant dense<0.000000e+00> : vector<8x128xf32>
    %114 = tpu.matmul %109, %1, %cst_38 {dimension_numbers = #tpu.dot_dimension_numbers<[1], [0], [0], [1], [0, 0, 1, 1], [], []>} : vector<8x32xf32>, vector<32x128xf32>, vector<8x128xf32> -> vector<8x128xf32>
    %115 = arith.addf %113, %114 : vector<8x128xf32>
    %116 = math.tanh %115 : vector<8x128xf32>
    %cst_39 = arith.constant 5.000000e-01 : f32
    %117 = vector.broadcast %cst_39 : f32 to vector<8x128xf32>
    %118 = arith.mulf %117, %116 : vector<8x128xf32>
    %cst_40 = arith.constant 5.000000e-01 : f32
    %119 = vector.broadcast %cst_40 : f32 to vector<8x128xf32>
    %120 = arith.addf %118, %119 : vector<8x128xf32>
    %121 = vector.extract_strided_slice %120 {offsets = [0, 0], sizes = [8, 32], strides = [1, 1]} : vector<8x128xf32> to vector<8x32xf32>
    %122 = vector.extract_strided_slice %120 {offsets = [0, 32], sizes = [8, 32], strides = [1, 1]} : vector<8x128xf32> to vector<8x32xf32>
    %123 = vector.extract_strided_slice %120 {offsets = [0, 64], sizes = [8, 32], strides = [1, 1]} : vector<8x128xf32> to vector<8x32xf32>
    %124 = vector.extract_strided_slice %116 {offsets = [0, 96], sizes = [8, 32], strides = [1, 1]} : vector<8x128xf32> to vector<8x32xf32>
    %125 = arith.mulf %122, %107 : vector<8x32xf32>
    %126 = arith.mulf %121, %124 : vector<8x32xf32>
    %127 = arith.addf %125, %126 : vector<8x32xf32>
    %128 = math.tanh %127 : vector<8x32xf32>
    %129 = arith.mulf %123, %128 : vector<8x32xf32>
    %cst_41 = arith.constant dense<0.000000e+00> : vector<8x32xf32>
    %130 = tpu.matmul %129, %2, %cst_41 {dimension_numbers = #tpu.dot_dimension_numbers<[1], [0], [0], [1], [0, 0, 1, 1], [], []>} : vector<8x32xf32>, vector<32x32xf32>, vector<8x32xf32> -> vector<8x32xf32>
    %131 = arith.addf %130, %5 : vector<8x32xf32>
    %c16 = arith.constant 16 : index
    %c0_42 = arith.constant 0 : index
    %132 = vector.load %arg17[%c16, %c0_42] : memref<64x32xf32, #tpu.memory_space<vmem>>, vector<8x32xf32>
    tpu.vector_store %arg17[%c16, %c0_42], %131 {strides = array<i32>} : memref<64x32xf32, #tpu.memory_space<vmem>>, vector<8x32xf32>,
    %133 = vector.extract_strided_slice %10 {offsets = [8, 0], sizes = [8, 128], strides = [1, 1]} : vector<64x128xf32> to vector<8x128xf32>
    %cst_43 = arith.constant dense<0.000000e+00> : vector<8x128xf32>
    %134 = tpu.matmul %129, %1, %cst_43 {dimension_numbers = #tpu.dot_dimension_numbers<[1], [0], [0], [1], [0, 0, 1, 1], [], []>} : vector<8x32xf32>, vector<32x128xf32>, vector<8x128xf32> -> vector<8x128xf32>
    %135 = arith.addf %133, %134 : vector<8x128xf32>
    %136 = math.tanh %135 : vector<8x128xf32>
    %cst_44 = arith.constant 5.000000e-01 : f32
    %137 = vector.broadcast %cst_44 : f32 to vector<8x128xf32>
    %138 = arith.mulf %137, %136 : vector<8x128xf32>
    %cst_45 = arith.constant 5.000000e-01 : f32
    %139 = vector.broadcast %cst_45 : f32 to vector<8x128xf32>
    %140 = arith.addf %138, %139 : vector<8x128xf32>
    %141 = vector.extract_strided_slice %140 {offsets = [0, 0], sizes = [8, 32], strides = [1, 1]} : vector<8x128xf32> to vector<8x32xf32>
    %142 = vector.extract_strided_slice %140 {offsets = [0, 32], sizes = [8, 32], strides = [1, 1]} : vector<8x128xf32> to vector<8x32xf32>
    %143 = vector.extract_strided_slice %140 {offsets = [0, 64], sizes = [8, 32], strides = [1, 1]} : vector<8x128xf32> to vector<8x32xf32>
    %144 = vector.extract_strided_slice %136 {offsets = [0, 96], sizes = [8, 32], strides = [1, 1]} : vector<8x128xf32> to vector<8x32xf32>
    %145 = arith.mulf %142, %127 : vector<8x32xf32>
    %146 = arith.mulf %141, %144 : vector<8x32xf32>
    %147 = arith.addf %145, %146 : vector<8x32xf32>
    %148 = math.tanh %147 : vector<8x32xf32>
    %149 = arith.mulf %143, %148 : vector<8x32xf32>
    %cst_46 = arith.constant dense<0.000000e+00> : vector<8x32xf32>
    %150 = tpu.matmul %149, %2, %cst_46 {dimension_numbers = #tpu.dot_dimension_numbers<[1], [0], [0], [1], [0, 0, 1, 1], [], []>} : vector<8x32xf32>, vector<32x32xf32>, vector<8x32xf32> -> vector<8x32xf32>
    %151 = arith.addf %150, %5 : vector<8x32xf32>
    %c8 = arith.constant 8 : index
    %c0_47 = arith.constant 0 : index
    %152 = vector.load %arg17[%c8, %c0_47] : memref<64x32xf32, #tpu.memory_space<vmem>>, vector<8x32xf32>
    tpu.vector_store %arg17[%c8, %c0_47], %151 {strides = array<i32>} : memref<64x32xf32, #tpu.memory_space<vmem>>, vector<8x32xf32>,
    %153 = vector.extract_strided_slice %10 {offsets = [0, 0], sizes = [8, 128], strides = [1, 1]} : vector<64x128xf32> to vector<8x128xf32>
    %cst_48 = arith.constant dense<0.000000e+00> : vector<8x128xf32>
    %154 = tpu.matmul %149, %1, %cst_48 {dimension_numbers = #tpu.dot_dimension_numbers<[1], [0], [0], [1], [0, 0, 1, 1], [], []>} : vector<8x32xf32>, vector<32x128xf32>, vector<8x128xf32> -> vector<8x128xf32>
    %155 = arith.addf %153, %154 : vector<8x128xf32>
    %156 = math.tanh %155 : vector<8x128xf32>
    %cst_49 = arith.constant 5.000000e-01 : f32
    %157 = vector.broadcast %cst_49 : f32 to vector<8x128xf32>
    %158 = arith.mulf %157, %156 : vector<8x128xf32>
    %cst_50 = arith.constant 5.000000e-01 : f32
    %159 = vector.broadcast %cst_50 : f32 to vector<8x128xf32>
    %160 = arith.addf %158, %159 : vector<8x128xf32>
    %161 = vector.extract_strided_slice %160 {offsets = [0, 0], sizes = [8, 32], strides = [1, 1]} : vector<8x128xf32> to vector<8x32xf32>
    %162 = vector.extract_strided_slice %160 {offsets = [0, 32], sizes = [8, 32], strides = [1, 1]} : vector<8x128xf32> to vector<8x32xf32>
    %163 = vector.extract_strided_slice %160 {offsets = [0, 64], sizes = [8, 32], strides = [1, 1]} : vector<8x128xf32> to vector<8x32xf32>
    %164 = vector.extract_strided_slice %156 {offsets = [0, 96], sizes = [8, 32], strides = [1, 1]} : vector<8x128xf32> to vector<8x32xf32>
    %165 = arith.mulf %162, %147 : vector<8x32xf32>
    %166 = arith.mulf %161, %164 : vector<8x32xf32>
    %167 = arith.addf %165, %166 : vector<8x32xf32>
    %168 = math.tanh %167 : vector<8x32xf32>
    %169 = arith.mulf %163, %168 : vector<8x32xf32>
    %cst_51 = arith.constant dense<0.000000e+00> : vector<8x32xf32>
    %170 = tpu.matmul %169, %2, %cst_51 {dimension_numbers = #tpu.dot_dimension_numbers<[1], [0], [0], [1], [0, 0, 1, 1], [], []>} : vector<8x32xf32>, vector<32x32xf32>, vector<8x32xf32> -> vector<8x32xf32>
    %171 = arith.addf %170, %5 : vector<8x32xf32>
    %c0_52 = arith.constant 0 : index
    %c0_53 = arith.constant 0 : index
    %172 = vector.load %arg17[%c0_52, %c0_53] : memref<64x32xf32, #tpu.memory_space<vmem>>, vector<8x32xf32>
    tpu.vector_store %arg17[%c0_52, %c0_53], %171 {strides = array<i32>} : memref<64x32xf32, #tpu.memory_space<vmem>>, vector<8x32xf32>,
    %c0_54 = arith.constant 0 : index
    %c0_55 = arith.constant 0 : index
    %173 = vector.load %arg7[%c0_54, %c0_55] : memref<48x128xf32, #tpu.memory_space<vmem>>, vector<48x128xf32>
    %c0_56 = arith.constant 0 : index
    %c0_57 = arith.constant 0 : index
    %174 = vector.load %arg9[%c0_56, %c0_57] : memref<32x32xf32, #tpu.memory_space<vmem>>, vector<32x32xf32>
    %c0_58 = arith.constant 0 : index
    %c0_59 = arith.constant 0 : index
    %175 = vector.load %arg10[%c0_58, %c0_59] : memref<32x32xf32, #tpu.memory_space<vmem>>, vector<32x32xf32>
    %c0_60 = arith.constant 0 : index
    %c0_61 = arith.constant 0 : index
    %176 = vector.load %arg12[%c0_60, %c0_61] : memref<48x128xf32, #tpu.memory_space<vmem>>, vector<48x128xf32>
    %c0_62 = arith.constant 0 : index
    %c0_63 = arith.constant 0 : index
    %177 = vector.load %arg8[%c0_62, %c0_63] : memref<1x128xf32, #tpu.memory_space<vmem>>, vector<1x128xf32>
    %178 = vector.shape_cast %177 : vector<1x128xf32> to vector<1x128xf32>
    %179 = vector.broadcast %178 : vector<1x128xf32> to vector<8x128xf32>
    %c0_64 = arith.constant 0 : index
    %c0_65 = arith.constant 0 : index
    %180 = vector.load %arg13[%c0_64, %c0_65] : memref<1x128xf32, #tpu.memory_space<vmem>>, vector<1x128xf32>
    %181 = vector.shape_cast %180 : vector<1x128xf32> to vector<1x128xf32>
    %182 = vector.broadcast %181 : vector<1x128xf32> to vector<8x128xf32>
    %c0_66 = arith.constant 0 : index
    %c0_67 = arith.constant 0 : index
    %183 = vector.load %arg11[%c0_66, %c0_67] : memref<1x32xf32, #tpu.memory_space<vmem>>, vector<1x32xf32>
    %184 = vector.shape_cast %183 : vector<1x32xf32> to vector<1x32xf32>
    %185 = vector.broadcast %184 : vector<1x32xf32> to vector<8x32xf32>
    %cst_68 = arith.constant 0.000000e+00 : f32
    %186 = vector.broadcast %cst_68 : f32 to vector<8x16xf32>
    %cst_69 = arith.constant 0.000000e+00 : f32
    %187 = vector.broadcast %cst_69 : f32 to vector<8x32xf32>
    %cst_70 = arith.constant 0.000000e+00 : f32
    %188 = vector.broadcast %cst_70 : f32 to vector<8x32xf32>
    %cst_71 = arith.constant 0.000000e+00 : f32
    %189 = vector.broadcast %cst_71 : f32 to vector<8x32xf32>
    %cst_72 = arith.constant 0.000000e+00 : f32
    %190 = vector.broadcast %cst_72 : f32 to vector<8x32xf32>
    %191 = tpu.concatenate %186, %187 in 1 : vector<8x16xf32>, vector<8x32xf32> -> vector<8x48xf32>
    %cst_73 = arith.constant dense<0.000000e+00> : vector<8x128xf32>
    %192 = tpu.matmul %191, %173, %cst_73 {dimension_numbers = #tpu.dot_dimension_numbers<[1], [0], [0], [1], [0, 0, 1, 1], [], []>} : vector<8x48xf32>, vector<48x128xf32>, vector<8x128xf32> -> vector<8x128xf32>
    %193 = arith.addf %192, %179 : vector<8x128xf32>
    %194 = math.tanh %193 : vector<8x128xf32>
    %cst_74 = arith.constant 5.000000e-01 : f32
    %195 = vector.broadcast %cst_74 : f32 to vector<8x128xf32>
    %196 = arith.mulf %195, %194 : vector<8x128xf32>
    %cst_75 = arith.constant 5.000000e-01 : f32
    %197 = vector.broadcast %cst_75 : f32 to vector<8x128xf32>
    %198 = arith.addf %196, %197 : vector<8x128xf32>
    %199 = vector.extract_strided_slice %198 {offsets = [0, 0], sizes = [8, 32], strides = [1, 1]} : vector<8x128xf32> to vector<8x32xf32>
    %200 = vector.extract_strided_slice %198 {offsets = [0, 32], sizes = [8, 32], strides = [1, 1]} : vector<8x128xf32> to vector<8x32xf32>
    %201 = vector.extract_strided_slice %198 {offsets = [0, 64], sizes = [8, 32], strides = [1, 1]} : vector<8x128xf32> to vector<8x32xf32>
    %202 = vector.extract_strided_slice %194 {offsets = [0, 96], sizes = [8, 32], strides = [1, 1]} : vector<8x128xf32> to vector<8x32xf32>
    %203 = arith.mulf %200, %188 : vector<8x32xf32>
    %204 = arith.mulf %199, %202 : vector<8x32xf32>
    %205 = arith.addf %203, %204 : vector<8x32xf32>
    %206 = math.tanh %205 : vector<8x32xf32>
    %207 = arith.mulf %201, %206 : vector<8x32xf32>
    %c0_76 = arith.constant 0 : index
    %c0_77 = arith.constant 0 : index
    %208 = vector.load %arg17[%c0_76, %c0_77] : memref<64x32xf32, #tpu.memory_space<vmem>>, vector<8x32xf32>
    %cst_78 = arith.constant dense<0.000000e+00> : vector<8x32xf32>
    %209 = tpu.matmul %207, %174, %cst_78 {dimension_numbers = #tpu.dot_dimension_numbers<[1], [0], [0], [1], [0, 0, 1, 1], [], []>} : vector<8x32xf32>, vector<32x32xf32>, vector<8x32xf32> -> vector<8x32xf32>
    %210 = arith.addf %208, %209 : vector<8x32xf32>
    %211 = math.tanh %210 : vector<8x32xf32>
    %cst_79 = arith.constant dense<0.000000e+00> : vector<8x32xf32>
    %212 = tpu.matmul %211, %175, %cst_79 {dimension_numbers = #tpu.dot_dimension_numbers<[1], [0], [0], [1], [0, 0, 1, 1], [], []>} : vector<8x32xf32>, vector<32x32xf32>, vector<8x32xf32> -> vector<8x32xf32>
    %213 = arith.addf %212, %185 : vector<8x32xf32>
    %214 = vector.extract_strided_slice %213 {offsets = [0, 0], sizes = [8, 16], strides = [1, 1]} : vector<8x32xf32> to vector<8x16xf32>
    %c0_80 = arith.constant 0 : index
    %c0_81 = arith.constant 0 : index
    %215 = vector.load %arg1[%c0_80, %c0_81] : memref<64x16xf32, #tpu.memory_space<vmem>>, vector<8x16xf32>
    %216 = vector.extract_strided_slice %213 {offsets = [0, 16], sizes = [8, 16], strides = [1, 1]} : vector<8x32xf32> to vector<8x16xf32>
    %217 = math.exp %216 : vector<8x16xf32>
    %218 = arith.mulf %215, %217 : vector<8x16xf32>
    %219 = arith.addf %214, %218 : vector<8x16xf32>
    %220 = tpu.concatenate %219, %189 in 1 : vector<8x16xf32>, vector<8x32xf32> -> vector<8x48xf32>
    %cst_82 = arith.constant dense<0.000000e+00> : vector<8x128xf32>
    %221 = tpu.matmul %220, %176, %cst_82 {dimension_numbers = #tpu.dot_dimension_numbers<[1], [0], [0], [1], [0, 0, 1, 1], [], []>} : vector<8x48xf32>, vector<48x128xf32>, vector<8x128xf32> -> vector<8x128xf32>
    %222 = arith.addf %221, %182 : vector<8x128xf32>
    %223 = math.tanh %222 : vector<8x128xf32>
    %cst_83 = arith.constant 5.000000e-01 : f32
    %224 = vector.broadcast %cst_83 : f32 to vector<8x128xf32>
    %225 = arith.mulf %224, %223 : vector<8x128xf32>
    %cst_84 = arith.constant 5.000000e-01 : f32
    %226 = vector.broadcast %cst_84 : f32 to vector<8x128xf32>
    %227 = arith.addf %225, %226 : vector<8x128xf32>
    %228 = vector.extract_strided_slice %227 {offsets = [0, 0], sizes = [8, 32], strides = [1, 1]} : vector<8x128xf32> to vector<8x32xf32>
    %229 = vector.extract_strided_slice %227 {offsets = [0, 32], sizes = [8, 32], strides = [1, 1]} : vector<8x128xf32> to vector<8x32xf32>
    %230 = vector.extract_strided_slice %227 {offsets = [0, 64], sizes = [8, 32], strides = [1, 1]} : vector<8x128xf32> to vector<8x32xf32>
    %231 = vector.extract_strided_slice %223 {offsets = [0, 96], sizes = [8, 32], strides = [1, 1]} : vector<8x128xf32> to vector<8x32xf32>
    %232 = arith.mulf %229, %190 : vector<8x32xf32>
    %233 = arith.mulf %228, %231 : vector<8x32xf32>
    %234 = arith.addf %232, %233 : vector<8x32xf32>
    %235 = math.tanh %234 : vector<8x32xf32>
    %236 = arith.mulf %230, %235 : vector<8x32xf32>
    %c0_85 = arith.constant 0 : index
    %c0_86 = arith.constant 0 : index
    %237 = vector.load %arg18[%c0_85, %c0_86] : memref<64x32xf32, #tpu.memory_space<vmem>>, vector<8x32xf32>
    tpu.vector_store %arg18[%c0_85, %c0_86], %236 {strides = array<i32>} : memref<64x32xf32, #tpu.memory_space<vmem>>, vector<8x32xf32>,
    %238 = tpu.concatenate %219, %207 in 1 : vector<8x16xf32>, vector<8x32xf32> -> vector<8x48xf32>
    %cst_87 = arith.constant dense<0.000000e+00> : vector<8x128xf32>
    %239 = tpu.matmul %238, %173, %cst_87 {dimension_numbers = #tpu.dot_dimension_numbers<[1], [0], [0], [1], [0, 0, 1, 1], [], []>} : vector<8x48xf32>, vector<48x128xf32>, vector<8x128xf32> -> vector<8x128xf32>
    %240 = arith.addf %239, %179 : vector<8x128xf32>
    %241 = math.tanh %240 : vector<8x128xf32>
    %cst_88 = arith.constant 5.000000e-01 : f32
    %242 = vector.broadcast %cst_88 : f32 to vector<8x128xf32>
    %243 = arith.mulf %242, %241 : vector<8x128xf32>
    %cst_89 = arith.constant 5.000000e-01 : f32
    %244 = vector.broadcast %cst_89 : f32 to vector<8x128xf32>
    %245 = arith.addf %243, %244 : vector<8x128xf32>
    %246 = vector.extract_strided_slice %245 {offsets = [0, 0], sizes = [8, 32], strides = [1, 1]} : vector<8x128xf32> to vector<8x32xf32>
    %247 = vector.extract_strided_slice %245 {offsets = [0, 32], sizes = [8, 32], strides = [1, 1]} : vector<8x128xf32> to vector<8x32xf32>
    %248 = vector.extract_strided_slice %245 {offsets = [0, 64], sizes = [8, 32], strides = [1, 1]} : vector<8x128xf32> to vector<8x32xf32>
    %249 = vector.extract_strided_slice %241 {offsets = [0, 96], sizes = [8, 32], strides = [1, 1]} : vector<8x128xf32> to vector<8x32xf32>
    %250 = arith.mulf %247, %205 : vector<8x32xf32>
    %251 = arith.mulf %246, %249 : vector<8x32xf32>
    %252 = arith.addf %250, %251 : vector<8x32xf32>
    %253 = math.tanh %252 : vector<8x32xf32>
    %254 = arith.mulf %248, %253 : vector<8x32xf32>
    %c8_90 = arith.constant 8 : index
    %c0_91 = arith.constant 0 : index
    %255 = vector.load %arg17[%c8_90, %c0_91] : memref<64x32xf32, #tpu.memory_space<vmem>>, vector<8x32xf32>
    %cst_92 = arith.constant dense<0.000000e+00> : vector<8x32xf32>
    %256 = tpu.matmul %254, %174, %cst_92 {dimension_numbers = #tpu.dot_dimension_numbers<[1], [0], [0], [1], [0, 0, 1, 1], [], []>} : vector<8x32xf32>, vector<32x32xf32>, vector<8x32xf32> -> vector<8x32xf32>
    %257 = arith.addf %255, %256 : vector<8x32xf32>
    %258 = math.tanh %257 : vector<8x32xf32>
    %cst_93 = arith.constant dense<0.000000e+00> : vector<8x32xf32>
    %259 = tpu.matmul %258, %175, %cst_93 {dimension_numbers = #tpu.dot_dimension_numbers<[1], [0], [0], [1], [0, 0, 1, 1], [], []>} : vector<8x32xf32>, vector<32x32xf32>, vector<8x32xf32> -> vector<8x32xf32>
    %260 = arith.addf %259, %185 : vector<8x32xf32>
    %261 = vector.extract_strided_slice %260 {offsets = [0, 0], sizes = [8, 16], strides = [1, 1]} : vector<8x32xf32> to vector<8x16xf32>
    %c8_94 = arith.constant 8 : index
    %c0_95 = arith.constant 0 : index
    %262 = vector.load %arg1[%c8_94, %c0_95] : memref<64x16xf32, #tpu.memory_space<vmem>>, vector<8x16xf32>
    %263 = vector.extract_strided_slice %260 {offsets = [0, 16], sizes = [8, 16], strides = [1, 1]} : vector<8x32xf32> to vector<8x16xf32>
    %264 = math.exp %263 : vector<8x16xf32>
    %265 = arith.mulf %262, %264 : vector<8x16xf32>
    %266 = arith.addf %261, %265 : vector<8x16xf32>
    %267 = tpu.concatenate %266, %236 in 1 : vector<8x16xf32>, vector<8x32xf32> -> vector<8x48xf32>
    %cst_96 = arith.constant dense<0.000000e+00> : vector<8x128xf32>
    %268 = tpu.matmul %267, %176, %cst_96 {dimension_numbers = #tpu.dot_dimension_numbers<[1], [0], [0], [1], [0, 0, 1, 1], [], []>} : vector<8x48xf32>, vector<48x128xf32>, vector<8x128xf32> -> vector<8x128xf32>
    %269 = arith.addf %268, %182 : vector<8x128xf32>
    %270 = math.tanh %269 : vector<8x128xf32>
    %cst_97 = arith.constant 5.000000e-01 : f32
    %271 = vector.broadcast %cst_97 : f32 to vector<8x128xf32>
    %272 = arith.mulf %271, %270 : vector<8x128xf32>
    %cst_98 = arith.constant 5.000000e-01 : f32
    %273 = vector.broadcast %cst_98 : f32 to vector<8x128xf32>
    %274 = arith.addf %272, %273 : vector<8x128xf32>
    %275 = vector.extract_strided_slice %274 {offsets = [0, 0], sizes = [8, 32], strides = [1, 1]} : vector<8x128xf32> to vector<8x32xf32>
    %276 = vector.extract_strided_slice %274 {offsets = [0, 32], sizes = [8, 32], strides = [1, 1]} : vector<8x128xf32> to vector<8x32xf32>
    %277 = vector.extract_strided_slice %274 {offsets = [0, 64], sizes = [8, 32], strides = [1, 1]} : vector<8x128xf32> to vector<8x32xf32>
    %278 = vector.extract_strided_slice %270 {offsets = [0, 96], sizes = [8, 32], strides = [1, 1]} : vector<8x128xf32> to vector<8x32xf32>
    %279 = arith.mulf %276, %234 : vector<8x32xf32>
    %280 = arith.mulf %275, %278 : vector<8x32xf32>
    %281 = arith.addf %279, %280 : vector<8x32xf32>
    %282 = math.tanh %281 : vector<8x32xf32>
    %283 = arith.mulf %277, %282 : vector<8x32xf32>
    %c8_99 = arith.constant 8 : index
    %c0_100 = arith.constant 0 : index
    %284 = vector.load %arg18[%c8_99, %c0_100] : memref<64x32xf32, #tpu.memory_space<vmem>>, vector<8x32xf32>
    tpu.vector_store %arg18[%c8_99, %c0_100], %283 {strides = array<i32>} : memref<64x32xf32, #tpu.memory_space<vmem>>, vector<8x32xf32>,
    %285 = tpu.concatenate %266, %254 in 1 : vector<8x16xf32>, vector<8x32xf32> -> vector<8x48xf32>
    %cst_101 = arith.constant dense<0.000000e+00> : vector<8x128xf32>
    %286 = tpu.matmul %285, %173, %cst_101 {dimension_numbers = #tpu.dot_dimension_numbers<[1], [0], [0], [1], [0, 0, 1, 1], [], []>} : vector<8x48xf32>, vector<48x128xf32>, vector<8x128xf32> -> vector<8x128xf32>
    %287 = arith.addf %286, %179 : vector<8x128xf32>
    %288 = math.tanh %287 : vector<8x128xf32>
    %cst_102 = arith.constant 5.000000e-01 : f32
    %289 = vector.broadcast %cst_102 : f32 to vector<8x128xf32>
    %290 = arith.mulf %289, %288 : vector<8x128xf32>
    %cst_103 = arith.constant 5.000000e-01 : f32
    %291 = vector.broadcast %cst_103 : f32 to vector<8x128xf32>
    %292 = arith.addf %290, %291 : vector<8x128xf32>
    %293 = vector.extract_strided_slice %292 {offsets = [0, 0], sizes = [8, 32], strides = [1, 1]} : vector<8x128xf32> to vector<8x32xf32>
    %294 = vector.extract_strided_slice %292 {offsets = [0, 32], sizes = [8, 32], strides = [1, 1]} : vector<8x128xf32> to vector<8x32xf32>
    %295 = vector.extract_strided_slice %292 {offsets = [0, 64], sizes = [8, 32], strides = [1, 1]} : vector<8x128xf32> to vector<8x32xf32>
    %296 = vector.extract_strided_slice %288 {offsets = [0, 96], sizes = [8, 32], strides = [1, 1]} : vector<8x128xf32> to vector<8x32xf32>
    %297 = arith.mulf %294, %252 : vector<8x32xf32>
    %298 = arith.mulf %293, %296 : vector<8x32xf32>
    %299 = arith.addf %297, %298 : vector<8x32xf32>
    %300 = math.tanh %299 : vector<8x32xf32>
    %301 = arith.mulf %295, %300 : vector<8x32xf32>
    %c16_104 = arith.constant 16 : index
    %c0_105 = arith.constant 0 : index
    %302 = vector.load %arg17[%c16_104, %c0_105] : memref<64x32xf32, #tpu.memory_space<vmem>>, vector<8x32xf32>
    %cst_106 = arith.constant dense<0.000000e+00> : vector<8x32xf32>
    %303 = tpu.matmul %301, %174, %cst_106 {dimension_numbers = #tpu.dot_dimension_numbers<[1], [0], [0], [1], [0, 0, 1, 1], [], []>} : vector<8x32xf32>, vector<32x32xf32>, vector<8x32xf32> -> vector<8x32xf32>
    %304 = arith.addf %302, %303 : vector<8x32xf32>
    %305 = math.tanh %304 : vector<8x32xf32>
    %cst_107 = arith.constant dense<0.000000e+00> : vector<8x32xf32>
    %306 = tpu.matmul %305, %175, %cst_107 {dimension_numbers = #tpu.dot_dimension_numbers<[1], [0], [0], [1], [0, 0, 1, 1], [], []>} : vector<8x32xf32>, vector<32x32xf32>, vector<8x32xf32> -> vector<8x32xf32>
    %307 = arith.addf %306, %185 : vector<8x32xf32>
    %308 = vector.extract_strided_slice %307 {offsets = [0, 0], sizes = [8, 16], strides = [1, 1]} : vector<8x32xf32> to vector<8x16xf32>
    %c16_108 = arith.constant 16 : index
    %c0_109 = arith.constant 0 : index
    %309 = vector.load %arg1[%c16_108, %c0_109] : memref<64x16xf32, #tpu.memory_space<vmem>>, vector<8x16xf32>
    %310 = vector.extract_strided_slice %307 {offsets = [0, 16], sizes = [8, 16], strides = [1, 1]} : vector<8x32xf32> to vector<8x16xf32>
    %311 = math.exp %310 : vector<8x16xf32>
    %312 = arith.mulf %309, %311 : vector<8x16xf32>
    %313 = arith.addf %308, %312 : vector<8x16xf32>
    %314 = tpu.concatenate %313, %283 in 1 : vector<8x16xf32>, vector<8x32xf32> -> vector<8x48xf32>
    %cst_110 = arith.constant dense<0.000000e+00> : vector<8x128xf32>
    %315 = tpu.matmul %314, %176, %cst_110 {dimension_numbers = #tpu.dot_dimension_numbers<[1], [0], [0], [1], [0, 0, 1, 1], [], []>} : vector<8x48xf32>, vector<48x128xf32>, vector<8x128xf32> -> vector<8x128xf32>
    %316 = arith.addf %315, %182 : vector<8x128xf32>
    %317 = math.tanh %316 : vector<8x128xf32>
    %cst_111 = arith.constant 5.000000e-01 : f32
    %318 = vector.broadcast %cst_111 : f32 to vector<8x128xf32>
    %319 = arith.mulf %318, %317 : vector<8x128xf32>
    %cst_112 = arith.constant 5.000000e-01 : f32
    %320 = vector.broadcast %cst_112 : f32 to vector<8x128xf32>
    %321 = arith.addf %319, %320 : vector<8x128xf32>
    %322 = vector.extract_strided_slice %321 {offsets = [0, 0], sizes = [8, 32], strides = [1, 1]} : vector<8x128xf32> to vector<8x32xf32>
    %323 = vector.extract_strided_slice %321 {offsets = [0, 32], sizes = [8, 32], strides = [1, 1]} : vector<8x128xf32> to vector<8x32xf32>
    %324 = vector.extract_strided_slice %321 {offsets = [0, 64], sizes = [8, 32], strides = [1, 1]} : vector<8x128xf32> to vector<8x32xf32>
    %325 = vector.extract_strided_slice %317 {offsets = [0, 96], sizes = [8, 32], strides = [1, 1]} : vector<8x128xf32> to vector<8x32xf32>
    %326 = arith.mulf %323, %281 : vector<8x32xf32>
    %327 = arith.mulf %322, %325 : vector<8x32xf32>
    %328 = arith.addf %326, %327 : vector<8x32xf32>
    %329 = math.tanh %328 : vector<8x32xf32>
    %330 = arith.mulf %324, %329 : vector<8x32xf32>
    %c16_113 = arith.constant 16 : index
    %c0_114 = arith.constant 0 : index
    %331 = vector.load %arg18[%c16_113, %c0_114] : memref<64x32xf32, #tpu.memory_space<vmem>>, vector<8x32xf32>
    tpu.vector_store %arg18[%c16_113, %c0_114], %330 {strides = array<i32>} : memref<64x32xf32, #tpu.memory_space<vmem>>, vector<8x32xf32>,
    %332 = tpu.concatenate %313, %301 in 1 : vector<8x16xf32>, vector<8x32xf32> -> vector<8x48xf32>
    %cst_115 = arith.constant dense<0.000000e+00> : vector<8x128xf32>
    %333 = tpu.matmul %332, %173, %cst_115 {dimension_numbers = #tpu.dot_dimension_numbers<[1], [0], [0], [1], [0, 0, 1, 1], [], []>} : vector<8x48xf32>, vector<48x128xf32>, vector<8x128xf32> -> vector<8x128xf32>
    %334 = arith.addf %333, %179 : vector<8x128xf32>
    %335 = math.tanh %334 : vector<8x128xf32>
    %cst_116 = arith.constant 5.000000e-01 : f32
    %336 = vector.broadcast %cst_116 : f32 to vector<8x128xf32>
    %337 = arith.mulf %336, %335 : vector<8x128xf32>
    %cst_117 = arith.constant 5.000000e-01 : f32
    %338 = vector.broadcast %cst_117 : f32 to vector<8x128xf32>
    %339 = arith.addf %337, %338 : vector<8x128xf32>
    %340 = vector.extract_strided_slice %339 {offsets = [0, 0], sizes = [8, 32], strides = [1, 1]} : vector<8x128xf32> to vector<8x32xf32>
    %341 = vector.extract_strided_slice %339 {offsets = [0, 32], sizes = [8, 32], strides = [1, 1]} : vector<8x128xf32> to vector<8x32xf32>
    %342 = vector.extract_strided_slice %339 {offsets = [0, 64], sizes = [8, 32], strides = [1, 1]} : vector<8x128xf32> to vector<8x32xf32>
    %343 = vector.extract_strided_slice %335 {offsets = [0, 96], sizes = [8, 32], strides = [1, 1]} : vector<8x128xf32> to vector<8x32xf32>
    %344 = arith.mulf %341, %299 : vector<8x32xf32>
    %345 = arith.mulf %340, %343 : vector<8x32xf32>
    %346 = arith.addf %344, %345 : vector<8x32xf32>
    %347 = math.tanh %346 : vector<8x32xf32>
    %348 = arith.mulf %342, %347 : vector<8x32xf32>
    %c24_118 = arith.constant 24 : index
    %c0_119 = arith.constant 0 : index
    %349 = vector.load %arg17[%c24_118, %c0_119] : memref<64x32xf32, #tpu.memory_space<vmem>>, vector<8x32xf32>
    %cst_120 = arith.constant dense<0.000000e+00> : vector<8x32xf32>
    %350 = tpu.matmul %348, %174, %cst_120 {dimension_numbers = #tpu.dot_dimension_numbers<[1], [0], [0], [1], [0, 0, 1, 1], [], []>} : vector<8x32xf32>, vector<32x32xf32>, vector<8x32xf32> -> vector<8x32xf32>
    %351 = arith.addf %349, %350 : vector<8x32xf32>
    %352 = math.tanh %351 : vector<8x32xf32>
    %cst_121 = arith.constant dense<0.000000e+00> : vector<8x32xf32>
    %353 = tpu.matmul %352, %175, %cst_121 {dimension_numbers = #tpu.dot_dimension_numbers<[1], [0], [0], [1], [0, 0, 1, 1], [], []>} : vector<8x32xf32>, vector<32x32xf32>, vector<8x32xf32> -> vector<8x32xf32>
    %354 = arith.addf %353, %185 : vector<8x32xf32>
    %355 = vector.extract_strided_slice %354 {offsets = [0, 0], sizes = [8, 16], strides = [1, 1]} : vector<8x32xf32> to vector<8x16xf32>
    %c24_122 = arith.constant 24 : index
    %c0_123 = arith.constant 0 : index
    %356 = vector.load %arg1[%c24_122, %c0_123] : memref<64x16xf32, #tpu.memory_space<vmem>>, vector<8x16xf32>
    %357 = vector.extract_strided_slice %354 {offsets = [0, 16], sizes = [8, 16], strides = [1, 1]} : vector<8x32xf32> to vector<8x16xf32>
    %358 = math.exp %357 : vector<8x16xf32>
    %359 = arith.mulf %356, %358 : vector<8x16xf32>
    %360 = arith.addf %355, %359 : vector<8x16xf32>
    %361 = tpu.concatenate %360, %330 in 1 : vector<8x16xf32>, vector<8x32xf32> -> vector<8x48xf32>
    %cst_124 = arith.constant dense<0.000000e+00> : vector<8x128xf32>
    %362 = tpu.matmul %361, %176, %cst_124 {dimension_numbers = #tpu.dot_dimension_numbers<[1], [0], [0], [1], [0, 0, 1, 1], [], []>} : vector<8x48xf32>, vector<48x128xf32>, vector<8x128xf32> -> vector<8x128xf32>
    %363 = arith.addf %362, %182 : vector<8x128xf32>
    %364 = math.tanh %363 : vector<8x128xf32>
    %cst_125 = arith.constant 5.000000e-01 : f32
    %365 = vector.broadcast %cst_125 : f32 to vector<8x128xf32>
    %366 = arith.mulf %365, %364 : vector<8x128xf32>
    %cst_126 = arith.constant 5.000000e-01 : f32
    %367 = vector.broadcast %cst_126 : f32 to vector<8x128xf32>
    %368 = arith.addf %366, %367 : vector<8x128xf32>
    %369 = vector.extract_strided_slice %368 {offsets = [0, 0], sizes = [8, 32], strides = [1, 1]} : vector<8x128xf32> to vector<8x32xf32>
    %370 = vector.extract_strided_slice %368 {offsets = [0, 32], sizes = [8, 32], strides = [1, 1]} : vector<8x128xf32> to vector<8x32xf32>
    %371 = vector.extract_strided_slice %368 {offsets = [0, 64], sizes = [8, 32], strides = [1, 1]} : vector<8x128xf32> to vector<8x32xf32>
    %372 = vector.extract_strided_slice %364 {offsets = [0, 96], sizes = [8, 32], strides = [1, 1]} : vector<8x128xf32> to vector<8x32xf32>
    %373 = arith.mulf %370, %328 : vector<8x32xf32>
    %374 = arith.mulf %369, %372 : vector<8x32xf32>
    %375 = arith.addf %373, %374 : vector<8x32xf32>
    %376 = math.tanh %375 : vector<8x32xf32>
    %377 = arith.mulf %371, %376 : vector<8x32xf32>
    %c24_127 = arith.constant 24 : index
    %c0_128 = arith.constant 0 : index
    %378 = vector.load %arg18[%c24_127, %c0_128] : memref<64x32xf32, #tpu.memory_space<vmem>>, vector<8x32xf32>
    tpu.vector_store %arg18[%c24_127, %c0_128], %377 {strides = array<i32>} : memref<64x32xf32, #tpu.memory_space<vmem>>, vector<8x32xf32>,
    %379 = tpu.concatenate %360, %348 in 1 : vector<8x16xf32>, vector<8x32xf32> -> vector<8x48xf32>
    %cst_129 = arith.constant dense<0.000000e+00> : vector<8x128xf32>
    %380 = tpu.matmul %379, %173, %cst_129 {dimension_numbers = #tpu.dot_dimension_numbers<[1], [0], [0], [1], [0, 0, 1, 1], [], []>} : vector<8x48xf32>, vector<48x128xf32>, vector<8x128xf32> -> vector<8x128xf32>
    %381 = arith.addf %380, %179 : vector<8x128xf32>
    %382 = math.tanh %381 : vector<8x128xf32>
    %cst_130 = arith.constant 5.000000e-01 : f32
    %383 = vector.broadcast %cst_130 : f32 to vector<8x128xf32>
    %384 = arith.mulf %383, %382 : vector<8x128xf32>
    %cst_131 = arith.constant 5.000000e-01 : f32
    %385 = vector.broadcast %cst_131 : f32 to vector<8x128xf32>
    %386 = arith.addf %384, %385 : vector<8x128xf32>
    %387 = vector.extract_strided_slice %386 {offsets = [0, 0], sizes = [8, 32], strides = [1, 1]} : vector<8x128xf32> to vector<8x32xf32>
    %388 = vector.extract_strided_slice %386 {offsets = [0, 32], sizes = [8, 32], strides = [1, 1]} : vector<8x128xf32> to vector<8x32xf32>
    %389 = vector.extract_strided_slice %386 {offsets = [0, 64], sizes = [8, 32], strides = [1, 1]} : vector<8x128xf32> to vector<8x32xf32>
    %390 = vector.extract_strided_slice %382 {offsets = [0, 96], sizes = [8, 32], strides = [1, 1]} : vector<8x128xf32> to vector<8x32xf32>
    %391 = arith.mulf %388, %346 : vector<8x32xf32>
    %392 = arith.mulf %387, %390 : vector<8x32xf32>
    %393 = arith.addf %391, %392 : vector<8x32xf32>
    %394 = math.tanh %393 : vector<8x32xf32>
    %395 = arith.mulf %389, %394 : vector<8x32xf32>
    %c32_132 = arith.constant 32 : index
    %c0_133 = arith.constant 0 : index
    %396 = vector.load %arg17[%c32_132, %c0_133] : memref<64x32xf32, #tpu.memory_space<vmem>>, vector<8x32xf32>
    %cst_134 = arith.constant dense<0.000000e+00> : vector<8x32xf32>
    %397 = tpu.matmul %395, %174, %cst_134 {dimension_numbers = #tpu.dot_dimension_numbers<[1], [0], [0], [1], [0, 0, 1, 1], [], []>} : vector<8x32xf32>, vector<32x32xf32>, vector<8x32xf32> -> vector<8x32xf32>
    %398 = arith.addf %396, %397 : vector<8x32xf32>
    %399 = math.tanh %398 : vector<8x32xf32>
    %cst_135 = arith.constant dense<0.000000e+00> : vector<8x32xf32>
    %400 = tpu.matmul %399, %175, %cst_135 {dimension_numbers = #tpu.dot_dimension_numbers<[1], [0], [0], [1], [0, 0, 1, 1], [], []>} : vector<8x32xf32>, vector<32x32xf32>, vector<8x32xf32> -> vector<8x32xf32>
    %401 = arith.addf %400, %185 : vector<8x32xf32>
    %402 = vector.extract_strided_slice %401 {offsets = [0, 0], sizes = [8, 16], strides = [1, 1]} : vector<8x32xf32> to vector<8x16xf32>
    %c32_136 = arith.constant 32 : index
    %c0_137 = arith.constant 0 : index
    %403 = vector.load %arg1[%c32_136, %c0_137] : memref<64x16xf32, #tpu.memory_space<vmem>>, vector<8x16xf32>
    %404 = vector.extract_strided_slice %401 {offsets = [0, 16], sizes = [8, 16], strides = [1, 1]} : vector<8x32xf32> to vector<8x16xf32>
    %405 = math.exp %404 : vector<8x16xf32>
    %406 = arith.mulf %403, %405 : vector<8x16xf32>
    %407 = arith.addf %402, %406 : vector<8x16xf32>
    %408 = tpu.concatenate %407, %377 in 1 : vector<8x16xf32>, vector<8x32xf32> -> vector<8x48xf32>
    %cst_138 = arith.constant dense<0.000000e+00> : vector<8x128xf32>
    %409 = tpu.matmul %408, %176, %cst_138 {dimension_numbers = #tpu.dot_dimension_numbers<[1], [0], [0], [1], [0, 0, 1, 1], [], []>} : vector<8x48xf32>, vector<48x128xf32>, vector<8x128xf32> -> vector<8x128xf32>
    %410 = arith.addf %409, %182 : vector<8x128xf32>
    %411 = math.tanh %410 : vector<8x128xf32>
    %cst_139 = arith.constant 5.000000e-01 : f32
    %412 = vector.broadcast %cst_139 : f32 to vector<8x128xf32>
    %413 = arith.mulf %412, %411 : vector<8x128xf32>
    %cst_140 = arith.constant 5.000000e-01 : f32
    %414 = vector.broadcast %cst_140 : f32 to vector<8x128xf32>
    %415 = arith.addf %413, %414 : vector<8x128xf32>
    %416 = vector.extract_strided_slice %415 {offsets = [0, 0], sizes = [8, 32], strides = [1, 1]} : vector<8x128xf32> to vector<8x32xf32>
    %417 = vector.extract_strided_slice %415 {offsets = [0, 32], sizes = [8, 32], strides = [1, 1]} : vector<8x128xf32> to vector<8x32xf32>
    %418 = vector.extract_strided_slice %415 {offsets = [0, 64], sizes = [8, 32], strides = [1, 1]} : vector<8x128xf32> to vector<8x32xf32>
    %419 = vector.extract_strided_slice %411 {offsets = [0, 96], sizes = [8, 32], strides = [1, 1]} : vector<8x128xf32> to vector<8x32xf32>
    %420 = arith.mulf %417, %375 : vector<8x32xf32>
    %421 = arith.mulf %416, %419 : vector<8x32xf32>
    %422 = arith.addf %420, %421 : vector<8x32xf32>
    %423 = math.tanh %422 : vector<8x32xf32>
    %424 = arith.mulf %418, %423 : vector<8x32xf32>
    %c32_141 = arith.constant 32 : index
    %c0_142 = arith.constant 0 : index
    %425 = vector.load %arg18[%c32_141, %c0_142] : memref<64x32xf32, #tpu.memory_space<vmem>>, vector<8x32xf32>
    tpu.vector_store %arg18[%c32_141, %c0_142], %424 {strides = array<i32>} : memref<64x32xf32, #tpu.memory_space<vmem>>, vector<8x32xf32>,
    %426 = tpu.concatenate %407, %395 in 1 : vector<8x16xf32>, vector<8x32xf32> -> vector<8x48xf32>
    %cst_143 = arith.constant dense<0.000000e+00> : vector<8x128xf32>
    %427 = tpu.matmul %426, %173, %cst_143 {dimension_numbers = #tpu.dot_dimension_numbers<[1], [0], [0], [1], [0, 0, 1, 1], [], []>} : vector<8x48xf32>, vector<48x128xf32>, vector<8x128xf32> -> vector<8x128xf32>
    %428 = arith.addf %427, %179 : vector<8x128xf32>
    %429 = math.tanh %428 : vector<8x128xf32>
    %cst_144 = arith.constant 5.000000e-01 : f32
    %430 = vector.broadcast %cst_144 : f32 to vector<8x128xf32>
    %431 = arith.mulf %430, %429 : vector<8x128xf32>
    %cst_145 = arith.constant 5.000000e-01 : f32
    %432 = vector.broadcast %cst_145 : f32 to vector<8x128xf32>
    %433 = arith.addf %431, %432 : vector<8x128xf32>
    %434 = vector.extract_strided_slice %433 {offsets = [0, 0], sizes = [8, 32], strides = [1, 1]} : vector<8x128xf32> to vector<8x32xf32>
    %435 = vector.extract_strided_slice %433 {offsets = [0, 32], sizes = [8, 32], strides = [1, 1]} : vector<8x128xf32> to vector<8x32xf32>
    %436 = vector.extract_strided_slice %433 {offsets = [0, 64], sizes = [8, 32], strides = [1, 1]} : vector<8x128xf32> to vector<8x32xf32>
    %437 = vector.extract_strided_slice %429 {offsets = [0, 96], sizes = [8, 32], strides = [1, 1]} : vector<8x128xf32> to vector<8x32xf32>
    %438 = arith.mulf %435, %393 : vector<8x32xf32>
    %439 = arith.mulf %434, %437 : vector<8x32xf32>
    %440 = arith.addf %438, %439 : vector<8x32xf32>
    %441 = math.tanh %440 : vector<8x32xf32>
    %442 = arith.mulf %436, %441 : vector<8x32xf32>
    %c40_146 = arith.constant 40 : index
    %c0_147 = arith.constant 0 : index
    %443 = vector.load %arg17[%c40_146, %c0_147] : memref<64x32xf32, #tpu.memory_space<vmem>>, vector<8x32xf32>
    %cst_148 = arith.constant dense<0.000000e+00> : vector<8x32xf32>
    %444 = tpu.matmul %442, %174, %cst_148 {dimension_numbers = #tpu.dot_dimension_numbers<[1], [0], [0], [1], [0, 0, 1, 1], [], []>} : vector<8x32xf32>, vector<32x32xf32>, vector<8x32xf32> -> vector<8x32xf32>
    %445 = arith.addf %443, %444 : vector<8x32xf32>
    %446 = math.tanh %445 : vector<8x32xf32>
    %cst_149 = arith.constant dense<0.000000e+00> : vector<8x32xf32>
    %447 = tpu.matmul %446, %175, %cst_149 {dimension_numbers = #tpu.dot_dimension_numbers<[1], [0], [0], [1], [0, 0, 1, 1], [], []>} : vector<8x32xf32>, vector<32x32xf32>, vector<8x32xf32> -> vector<8x32xf32>
    %448 = arith.addf %447, %185 : vector<8x32xf32>
    %449 = vector.extract_strided_slice %448 {offsets = [0, 0], sizes = [8, 16], strides = [1, 1]} : vector<8x32xf32> to vector<8x16xf32>
    %c40_150 = arith.constant 40 : index
    %c0_151 = arith.constant 0 : index
    %450 = vector.load %arg1[%c40_150, %c0_151] : memref<64x16xf32, #tpu.memory_space<vmem>>, vector<8x16xf32>
    %451 = vector.extract_strided_slice %448 {offsets = [0, 16], sizes = [8, 16], strides = [1, 1]} : vector<8x32xf32> to vector<8x16xf32>
    %452 = math.exp %451 : vector<8x16xf32>
    %453 = arith.mulf %450, %452 : vector<8x16xf32>
    %454 = arith.addf %449, %453 : vector<8x16xf32>
    %455 = tpu.concatenate %454, %424 in 1 : vector<8x16xf32>, vector<8x32xf32> -> vector<8x48xf32>
    %cst_152 = arith.constant dense<0.000000e+00> : vector<8x128xf32>
    %456 = tpu.matmul %455, %176, %cst_152 {dimension_numbers = #tpu.dot_dimension_numbers<[1], [0], [0], [1], [0, 0, 1, 1], [], []>} : vector<8x48xf32>, vector<48x128xf32>, vector<8x128xf32> -> vector<8x128xf32>
    %457 = arith.addf %456, %182 : vector<8x128xf32>
    %458 = math.tanh %457 : vector<8x128xf32>
    %cst_153 = arith.constant 5.000000e-01 : f32
    %459 = vector.broadcast %cst_153 : f32 to vector<8x128xf32>
    %460 = arith.mulf %459, %458 : vector<8x128xf32>
    %cst_154 = arith.constant 5.000000e-01 : f32
    %461 = vector.broadcast %cst_154 : f32 to vector<8x128xf32>
    %462 = arith.addf %460, %461 : vector<8x128xf32>
    %463 = vector.extract_strided_slice %462 {offsets = [0, 0], sizes = [8, 32], strides = [1, 1]} : vector<8x128xf32> to vector<8x32xf32>
    %464 = vector.extract_strided_slice %462 {offsets = [0, 32], sizes = [8, 32], strides = [1, 1]} : vector<8x128xf32> to vector<8x32xf32>
    %465 = vector.extract_strided_slice %462 {offsets = [0, 64], sizes = [8, 32], strides = [1, 1]} : vector<8x128xf32> to vector<8x32xf32>
    %466 = vector.extract_strided_slice %458 {offsets = [0, 96], sizes = [8, 32], strides = [1, 1]} : vector<8x128xf32> to vector<8x32xf32>
    %467 = arith.mulf %464, %422 : vector<8x32xf32>
    %468 = arith.mulf %463, %466 : vector<8x32xf32>
    %469 = arith.addf %467, %468 : vector<8x32xf32>
    %470 = math.tanh %469 : vector<8x32xf32>
    %471 = arith.mulf %465, %470 : vector<8x32xf32>
    %c40_155 = arith.constant 40 : index
    %c0_156 = arith.constant 0 : index
    %472 = vector.load %arg18[%c40_155, %c0_156] : memref<64x32xf32, #tpu.memory_space<vmem>>, vector<8x32xf32>
    tpu.vector_store %arg18[%c40_155, %c0_156], %471 {strides = array<i32>} : memref<64x32xf32, #tpu.memory_space<vmem>>, vector<8x32xf32>,
    %473 = tpu.concatenate %454, %442 in 1 : vector<8x16xf32>, vector<8x32xf32> -> vector<8x48xf32>
    %cst_157 = arith.constant dense<0.000000e+00> : vector<8x128xf32>
    %474 = tpu.matmul %473, %173, %cst_157 {dimension_numbers = #tpu.dot_dimension_numbers<[1], [0], [0], [1], [0, 0, 1, 1], [], []>} : vector<8x48xf32>, vector<48x128xf32>, vector<8x128xf32> -> vector<8x128xf32>
    %475 = arith.addf %474, %179 : vector<8x128xf32>
    %476 = math.tanh %475 : vector<8x128xf32>
    %cst_158 = arith.constant 5.000000e-01 : f32
    %477 = vector.broadcast %cst_158 : f32 to vector<8x128xf32>
    %478 = arith.mulf %477, %476 : vector<8x128xf32>
    %cst_159 = arith.constant 5.000000e-01 : f32
    %479 = vector.broadcast %cst_159 : f32 to vector<8x128xf32>
    %480 = arith.addf %478, %479 : vector<8x128xf32>
    %481 = vector.extract_strided_slice %480 {offsets = [0, 0], sizes = [8, 32], strides = [1, 1]} : vector<8x128xf32> to vector<8x32xf32>
    %482 = vector.extract_strided_slice %480 {offsets = [0, 32], sizes = [8, 32], strides = [1, 1]} : vector<8x128xf32> to vector<8x32xf32>
    %483 = vector.extract_strided_slice %480 {offsets = [0, 64], sizes = [8, 32], strides = [1, 1]} : vector<8x128xf32> to vector<8x32xf32>
    %484 = vector.extract_strided_slice %476 {offsets = [0, 96], sizes = [8, 32], strides = [1, 1]} : vector<8x128xf32> to vector<8x32xf32>
    %485 = arith.mulf %482, %440 : vector<8x32xf32>
    %486 = arith.mulf %481, %484 : vector<8x32xf32>
    %487 = arith.addf %485, %486 : vector<8x32xf32>
    %488 = math.tanh %487 : vector<8x32xf32>
    %489 = arith.mulf %483, %488 : vector<8x32xf32>
    %c48_160 = arith.constant 48 : index
    %c0_161 = arith.constant 0 : index
    %490 = vector.load %arg17[%c48_160, %c0_161] : memref<64x32xf32, #tpu.memory_space<vmem>>, vector<8x32xf32>
    %cst_162 = arith.constant dense<0.000000e+00> : vector<8x32xf32>
    %491 = tpu.matmul %489, %174, %cst_162 {dimension_numbers = #tpu.dot_dimension_numbers<[1], [0], [0], [1], [0, 0, 1, 1], [], []>} : vector<8x32xf32>, vector<32x32xf32>, vector<8x32xf32> -> vector<8x32xf32>
    %492 = arith.addf %490, %491 : vector<8x32xf32>
    %493 = math.tanh %492 : vector<8x32xf32>
    %cst_163 = arith.constant dense<0.000000e+00> : vector<8x32xf32>
    %494 = tpu.matmul %493, %175, %cst_163 {dimension_numbers = #tpu.dot_dimension_numbers<[1], [0], [0], [1], [0, 0, 1, 1], [], []>} : vector<8x32xf32>, vector<32x32xf32>, vector<8x32xf32> -> vector<8x32xf32>
    %495 = arith.addf %494, %185 : vector<8x32xf32>
    %496 = vector.extract_strided_slice %495 {offsets = [0, 0], sizes = [8, 16], strides = [1, 1]} : vector<8x32xf32> to vector<8x16xf32>
    %c48_164 = arith.constant 48 : index
    %c0_165 = arith.constant 0 : index
    %497 = vector.load %arg1[%c48_164, %c0_165] : memref<64x16xf32, #tpu.memory_space<vmem>>, vector<8x16xf32>
    %498 = vector.extract_strided_slice %495 {offsets = [0, 16], sizes = [8, 16], strides = [1, 1]} : vector<8x32xf32> to vector<8x16xf32>
    %499 = math.exp %498 : vector<8x16xf32>
    %500 = arith.mulf %497, %499 : vector<8x16xf32>
    %501 = arith.addf %496, %500 : vector<8x16xf32>
    %502 = tpu.concatenate %501, %471 in 1 : vector<8x16xf32>, vector<8x32xf32> -> vector<8x48xf32>
    %cst_166 = arith.constant dense<0.000000e+00> : vector<8x128xf32>
    %503 = tpu.matmul %502, %176, %cst_166 {dimension_numbers = #tpu.dot_dimension_numbers<[1], [0], [0], [1], [0, 0, 1, 1], [], []>} : vector<8x48xf32>, vector<48x128xf32>, vector<8x128xf32> -> vector<8x128xf32>
    %504 = arith.addf %503, %182 : vector<8x128xf32>
    %505 = math.tanh %504 : vector<8x128xf32>
    %cst_167 = arith.constant 5.000000e-01 : f32
    %506 = vector.broadcast %cst_167 : f32 to vector<8x128xf32>
    %507 = arith.mulf %506, %505 : vector<8x128xf32>
    %cst_168 = arith.constant 5.000000e-01 : f32
    %508 = vector.broadcast %cst_168 : f32 to vector<8x128xf32>
    %509 = arith.addf %507, %508 : vector<8x128xf32>
    %510 = vector.extract_strided_slice %509 {offsets = [0, 0], sizes = [8, 32], strides = [1, 1]} : vector<8x128xf32> to vector<8x32xf32>
    %511 = vector.extract_strided_slice %509 {offsets = [0, 32], sizes = [8, 32], strides = [1, 1]} : vector<8x128xf32> to vector<8x32xf32>
    %512 = vector.extract_strided_slice %509 {offsets = [0, 64], sizes = [8, 32], strides = [1, 1]} : vector<8x128xf32> to vector<8x32xf32>
    %513 = vector.extract_strided_slice %505 {offsets = [0, 96], sizes = [8, 32], strides = [1, 1]} : vector<8x128xf32> to vector<8x32xf32>
    %514 = arith.mulf %511, %469 : vector<8x32xf32>
    %515 = arith.mulf %510, %513 : vector<8x32xf32>
    %516 = arith.addf %514, %515 : vector<8x32xf32>
    %517 = math.tanh %516 : vector<8x32xf32>
    %518 = arith.mulf %512, %517 : vector<8x32xf32>
    %c48_169 = arith.constant 48 : index
    %c0_170 = arith.constant 0 : index
    %519 = vector.load %arg18[%c48_169, %c0_170] : memref<64x32xf32, #tpu.memory_space<vmem>>, vector<8x32xf32>
    tpu.vector_store %arg18[%c48_169, %c0_170], %518 {strides = array<i32>} : memref<64x32xf32, #tpu.memory_space<vmem>>, vector<8x32xf32>,
    %520 = tpu.concatenate %501, %489 in 1 : vector<8x16xf32>, vector<8x32xf32> -> vector<8x48xf32>
    %cst_171 = arith.constant dense<0.000000e+00> : vector<8x128xf32>
    %521 = tpu.matmul %520, %173, %cst_171 {dimension_numbers = #tpu.dot_dimension_numbers<[1], [0], [0], [1], [0, 0, 1, 1], [], []>} : vector<8x48xf32>, vector<48x128xf32>, vector<8x128xf32> -> vector<8x128xf32>
    %522 = arith.addf %521, %179 : vector<8x128xf32>
    %523 = math.tanh %522 : vector<8x128xf32>
    %cst_172 = arith.constant 5.000000e-01 : f32
    %524 = vector.broadcast %cst_172 : f32 to vector<8x128xf32>
    %525 = arith.mulf %524, %523 : vector<8x128xf32>
    %cst_173 = arith.constant 5.000000e-01 : f32
    %526 = vector.broadcast %cst_173 : f32 to vector<8x128xf32>
    %527 = arith.addf %525, %526 : vector<8x128xf32>
    %528 = vector.extract_strided_slice %527 {offsets = [0, 0], sizes = [8, 32], strides = [1, 1]} : vector<8x128xf32> to vector<8x32xf32>
    %529 = vector.extract_strided_slice %527 {offsets = [0, 32], sizes = [8, 32], strides = [1, 1]} : vector<8x128xf32> to vector<8x32xf32>
    %530 = vector.extract_strided_slice %527 {offsets = [0, 64], sizes = [8, 32], strides = [1, 1]} : vector<8x128xf32> to vector<8x32xf32>
    %531 = vector.extract_strided_slice %523 {offsets = [0, 96], sizes = [8, 32], strides = [1, 1]} : vector<8x128xf32> to vector<8x32xf32>
    %532 = arith.mulf %529, %487 : vector<8x32xf32>
    %533 = arith.mulf %528, %531 : vector<8x32xf32>
    %534 = arith.addf %532, %533 : vector<8x32xf32>
    %535 = math.tanh %534 : vector<8x32xf32>
    %536 = arith.mulf %530, %535 : vector<8x32xf32>
    %c56_174 = arith.constant 56 : index
    %c0_175 = arith.constant 0 : index
    %537 = vector.load %arg17[%c56_174, %c0_175] : memref<64x32xf32, #tpu.memory_space<vmem>>, vector<8x32xf32>
    %cst_176 = arith.constant dense<0.000000e+00> : vector<8x32xf32>
    %538 = tpu.matmul %536, %174, %cst_176 {dimension_numbers = #tpu.dot_dimension_numbers<[1], [0], [0], [1], [0, 0, 1, 1], [], []>} : vector<8x32xf32>, vector<32x32xf32>, vector<8x32xf32> -> vector<8x32xf32>
    %539 = arith.addf %537, %538 : vector<8x32xf32>
    %540 = math.tanh %539 : vector<8x32xf32>
    %cst_177 = arith.constant dense<0.000000e+00> : vector<8x32xf32>
    %541 = tpu.matmul %540, %175, %cst_177 {dimension_numbers = #tpu.dot_dimension_numbers<[1], [0], [0], [1], [0, 0, 1, 1], [], []>} : vector<8x32xf32>, vector<32x32xf32>, vector<8x32xf32> -> vector<8x32xf32>
    %542 = arith.addf %541, %185 : vector<8x32xf32>
    %543 = vector.extract_strided_slice %542 {offsets = [0, 0], sizes = [8, 16], strides = [1, 1]} : vector<8x32xf32> to vector<8x16xf32>
    %c56_178 = arith.constant 56 : index
    %c0_179 = arith.constant 0 : index
    %544 = vector.load %arg1[%c56_178, %c0_179] : memref<64x16xf32, #tpu.memory_space<vmem>>, vector<8x16xf32>
    %545 = vector.extract_strided_slice %542 {offsets = [0, 16], sizes = [8, 16], strides = [1, 1]} : vector<8x32xf32> to vector<8x16xf32>
    %546 = math.exp %545 : vector<8x16xf32>
    %547 = arith.mulf %544, %546 : vector<8x16xf32>
    %548 = arith.addf %543, %547 : vector<8x16xf32>
    %549 = tpu.concatenate %548, %518 in 1 : vector<8x16xf32>, vector<8x32xf32> -> vector<8x48xf32>
    %cst_180 = arith.constant dense<0.000000e+00> : vector<8x128xf32>
    %550 = tpu.matmul %549, %176, %cst_180 {dimension_numbers = #tpu.dot_dimension_numbers<[1], [0], [0], [1], [0, 0, 1, 1], [], []>} : vector<8x48xf32>, vector<48x128xf32>, vector<8x128xf32> -> vector<8x128xf32>
    %551 = arith.addf %550, %182 : vector<8x128xf32>
    %552 = math.tanh %551 : vector<8x128xf32>
    %cst_181 = arith.constant 5.000000e-01 : f32
    %553 = vector.broadcast %cst_181 : f32 to vector<8x128xf32>
    %554 = arith.mulf %553, %552 : vector<8x128xf32>
    %cst_182 = arith.constant 5.000000e-01 : f32
    %555 = vector.broadcast %cst_182 : f32 to vector<8x128xf32>
    %556 = arith.addf %554, %555 : vector<8x128xf32>
    %557 = vector.extract_strided_slice %556 {offsets = [0, 0], sizes = [8, 32], strides = [1, 1]} : vector<8x128xf32> to vector<8x32xf32>
    %558 = vector.extract_strided_slice %556 {offsets = [0, 32], sizes = [8, 32], strides = [1, 1]} : vector<8x128xf32> to vector<8x32xf32>
    %559 = vector.extract_strided_slice %556 {offsets = [0, 64], sizes = [8, 32], strides = [1, 1]} : vector<8x128xf32> to vector<8x32xf32>
    %560 = vector.extract_strided_slice %552 {offsets = [0, 96], sizes = [8, 32], strides = [1, 1]} : vector<8x128xf32> to vector<8x32xf32>
    %561 = arith.mulf %558, %516 : vector<8x32xf32>
    %562 = arith.mulf %557, %560 : vector<8x32xf32>
    %563 = arith.addf %561, %562 : vector<8x32xf32>
    %564 = math.tanh %563 : vector<8x32xf32>
    %565 = arith.mulf %559, %564 : vector<8x32xf32>
    %c56_183 = arith.constant 56 : index
    %c0_184 = arith.constant 0 : index
    %566 = vector.load %arg18[%c56_183, %c0_184] : memref<64x32xf32, #tpu.memory_space<vmem>>, vector<8x32xf32>
    tpu.vector_store %arg18[%c56_183, %c0_184], %565 {strides = array<i32>} : memref<64x32xf32, #tpu.memory_space<vmem>>, vector<8x32xf32>,
    %c0_185 = arith.constant 0 : index
    %c0_186 = arith.constant 0 : index
    %567 = vector.load %arg18[%c0_185, %c0_186] : memref<64x32xf32, #tpu.memory_space<vmem>>, vector<64x32xf32>
    %c0_187 = arith.constant 0 : index
    %c0_188 = arith.constant 0 : index
    %568 = vector.load %arg14[%c0_187, %c0_188] : memref<32x16xf32, #tpu.memory_space<vmem>>, vector<32x16xf32>
    %cst_189 = arith.constant dense<0.000000e+00> : vector<64x16xf32>
    %569 = tpu.matmul %567, %568, %cst_189 {dimension_numbers = #tpu.dot_dimension_numbers<[1], [0], [0], [1], [0, 0, 1, 1], [], []>} : vector<64x32xf32>, vector<32x16xf32>, vector<64x16xf32> -> vector<64x16xf32>
    %c0_190 = arith.constant 0 : index
    %c0_191 = arith.constant 0 : index
    %570 = vector.load %arg15[%c0_190, %c0_191] : memref<1x16xf32, #tpu.memory_space<vmem>>, vector<1x16xf32>
    %571 = vector.broadcast %570 : vector<1x16xf32> to vector<64x16xf32>
    %572 = arith.addf %569, %571 : vector<64x16xf32>
    %c0_192 = arith.constant 0 : index
    %c0_193 = arith.constant 0 : index
    %573 = vector.load %arg16[%c0_192, %c0_193] : memref<64x16xf32, #tpu.memory_space<vmem>>, vector<64x16xf32>
    tpu.vector_store %arg16[%c0_192, %c0_193], %572 {strides = array<i32>} : memref<64x16xf32, #tpu.memory_space<vmem>>, vector<64x16xf32>,
    return
  }
}

</mosaic_0001>

<llo_original>
// kernel: tpu_custom_call.1
$region0: #{tpu_custom_call.1}
  #allocation0 [shape = 'u32[]', space=smem, size = 0x4, offset = 0x4, fixed_abs, tag = 'smem constant byte address 0x4 - core index']
  #allocation1 [shape = 'u32[144,128]{1,0:T(1,128)}', space=vmem, size = 0x12000, scoped, tag = 'internal scratch']
  #allocation2 [shape = 'f32[64,32]{1,0:T(8,128)}', space=vmem, size = 0x8000, scoped, tag = 'scratch operand']
  #allocation3 [shape = 'f32[64,32]{1,0:T(8,128)}', space=vmem, size = 0x8000, scoped, tag = 'scratch operand']
  %s0 = inlined_call_operand.vmem [shape: f32[64,16], index: 0, kind: input, shape index: {}]
  %s1 = inlined_call_operand.vmem [shape: f32[64,16], index: 1, kind: input, shape index: {}]
  %s2 = inlined_call_operand.hbm [shape: f32[16,128], index: 2, kind: input, shape index: {}]
  %s3 = inlined_call_operand.vmem [shape: f32[32,128], index: 3, kind: input, shape index: {}]
  %s4 = inlined_call_operand.vmem [shape: f32[1,128], index: 4, kind: input, shape index: {}]
  %s5 = inlined_call_operand.vmem [shape: f32[32,32], index: 5, kind: input, shape index: {}]
  %s6 = inlined_call_operand.vmem [shape: f32[1,32], index: 6, kind: input, shape index: {}]
  %s7 = inlined_call_operand.vmem [shape: f32[48,128], index: 7, kind: input, shape index: {}]
  %s8 = inlined_call_operand.hbm [shape: f32[1,128], index: 8, kind: input, shape index: {}]
  %s9 = inlined_call_operand.vmem [shape: f32[32,32], index: 9, kind: input, shape index: {}]
  %s10 = inlined_call_operand.vmem [shape: f32[32,32], index: 10, kind: input, shape index: {}]
  %s11 = inlined_call_operand.vmem [shape: f32[1,32], index: 11, kind: input, shape index: {}]
  %s12 = inlined_call_operand.vmem [shape: f32[48,128], index: 12, kind: input, shape index: {}]
  %s13 = inlined_call_operand.vmem [shape: f32[1,128], index: 13, kind: input, shape index: {}]
  %s14 = inlined_call_operand.vmem [shape: f32[32,16], index: 14, kind: input, shape index: {}]
  %s15 = inlined_call_operand.vmem [shape: f32[1,16], index: 15, kind: input, shape index: {}]
  %s16 = inlined_call_operand.vmem [shape: f32[64,16], index: 16, kind: output, shape index: {}]
  %s17 = sld [smem:[#allocation0]]
  $region82: #{tpu_custom_call.1} parent=0
    _
  %s19 = ssub.s32 1, %s17
  %s20 = scalar_select 0, %s19, %s17
  $region1: #{tpu_custom_call.1} parent=0
    #allocation4 [shape = 'u8[8192]{0}', space=vmem, size = 0x2000, scoped, tag = 'input window, operand 2, single buffered']
    #allocation5 [shape = 's32[1]{0}', space=sflag, size = 0x4, scoped, tag = 'scoped memory for tpu_custom_call.1']
    #allocation6 [shape = 'u8[512]{0}', space=vmem, size = 0x400, scoped, tag = 'input window, operand 8, single buffered']
    #allocation7 [shape = 's32[1]{0}', space=sflag, size = 0x4, scoped, tag = 'scoped memory for tpu_custom_call.1']
    %21 = vsyncpa [#allocation5], 0
    %22 = vsyncpa [#allocation7], 0
    // Predicated region
    $region2: #{tpu_custom_call.1} parent=1 // pred_check
      _
    $region3: #{tpu_custom_call.1} parent=1 // pred_check_branch
      %24 = sbr.rel (0) target = $region5
    $region4: #{tpu_custom_call.1} parent=1 // pred_region
      _
    $region5: #{tpu_custom_call.1} parent=1 // pred_fallthru
      _
    // Predicated region
    $region6: #{tpu_custom_call.1} parent=1 // pred_check
      _
    $region7: #{tpu_custom_call.1} parent=1 // pred_check_branch
      %26 = sbr.rel (0) target = $region9
    $region8: #{tpu_custom_call.1} parent=1 // pred_region
      _
    $region9: #{tpu_custom_call.1} parent=1 // pred_fallthru
      _
    // Predicated region
    $region10: #{tpu_custom_call.1} parent=1 // pred_check
      _
    $region11: #{tpu_custom_call.1} parent=1 // pred_check_branch
      %28 = sbr.rel (0) target = $region13
    $region12: #{tpu_custom_call.1} parent=1 // pred_region
      %s30 = ssub.s32 256, 256
      %31 = vsyncadd [#allocation5], %s30
      %s32 = sshll.u32 [#allocation4], 4
      %s33 = int_to_ptr.vmem [resolvable:$true] %s32
      %38 = dma.hbm_to_vmem [thread:$0]  %s2, 256, %s33, [#allocation5], 128, 128, 8
    $region13: #{tpu_custom_call.1} parent=1 // pred_fallthru
      _
    // Predicated region
    $region14: #{tpu_custom_call.1} parent=1 // pred_check
      _
    $region15: #{tpu_custom_call.1} parent=1 // pred_check_branch
      %40 = sbr.rel (0) target = $region17
    $region16: #{tpu_custom_call.1} parent=1 // pred_region
      _
    $region17: #{tpu_custom_call.1} parent=1 // pred_fallthru
      _
    // Predicated region
    $region18: #{tpu_custom_call.1} parent=1 // pred_check
      _
    $region19: #{tpu_custom_call.1} parent=1 // pred_check_branch
      %42 = sbr.rel (0) target = $region21
    $region20: #{tpu_custom_call.1} parent=1 // pred_region
      _
    $region21: #{tpu_custom_call.1} parent=1 // pred_fallthru
      _
    // Predicated region
    $region22: #{tpu_custom_call.1} parent=1 // pred_check
      _
    $region23: #{tpu_custom_call.1} parent=1 // pred_check_branch
      %44 = sbr.rel (0) target = $region25
    $region24: #{tpu_custom_call.1} parent=1 // pred_region
      _
    $region25: #{tpu_custom_call.1} parent=1 // pred_fallthru
      _
    // Predicated region
    $region26: #{tpu_custom_call.1} parent=1 // pred_check
      _
    $region27: #{tpu_custom_call.1} parent=1 // pred_check_branch
      %46 = sbr.rel (0) target = $region29
    $region28: #{tpu_custom_call.1} parent=1 // pred_region
      _
    $region29: #{tpu_custom_call.1} parent=1 // pred_fallthru
      _
    // Predicated region
    $region30: #{tpu_custom_call.1} parent=1 // pred_check
      _
    $region31: #{tpu_custom_call.1} parent=1 // pred_check_branch
      %48 = sbr.rel (0) target = $region33
    $region32: #{tpu_custom_call.1} parent=1 // pred_region
      _
    $region33: #{tpu_custom_call.1} parent=1 // pred_fallthru
      _
    // Predicated region
    $region34: #{tpu_custom_call.1} parent=1 // pred_check
      _
    $region35: #{tpu_custom_call.1} parent=1 // pred_check_branch
      %50 = sbr.rel (0) target = $region37
    $region36: #{tpu_custom_call.1} parent=1 // pred_region
      %s52 = ssub.s32 16, 16
      %53 = vsyncadd [#allocation7], %s52
      %s55 = sshll.u32 [#allocation6], 4
      %s56 = int_to_ptr.vmem [resolvable:$true] %s55
      %58 = dma.hbm_to_vmem [thread:$0]  %s8, 16, %s56, [#allocation7]
    $region37: #{tpu_custom_call.1} parent=1 // pred_fallthru
      _
    // Predicated region
    $region38: #{tpu_custom_call.1} parent=1 // pred_check
      _
    $region39: #{tpu_custom_call.1} parent=1 // pred_check_branch
      %60 = sbr.rel (0) target = $region41
    $region40: #{tpu_custom_call.1} parent=1 // pred_region
      _
    $region41: #{tpu_custom_call.1} parent=1 // pred_fallthru
      _
    // Predicated region
    $region42: #{tpu_custom_call.1} parent=1 // pred_check
      _
    $region43: #{tpu_custom_call.1} parent=1 // pred_check_branch
      %62 = sbr.rel (0) target = $region45
    $region44: #{tpu_custom_call.1} parent=1 // pred_region
      _
    $region45: #{tpu_custom_call.1} parent=1 // pred_fallthru
      _
    // Predicated region
    $region46: #{tpu_custom_call.1} parent=1 // pred_check
      _
    $region47: #{tpu_custom_call.1} parent=1 // pred_check_branch
      %64 = sbr.rel (0) target = $region49
    $region48: #{tpu_custom_call.1} parent=1 // pred_region
      _
    $region49: #{tpu_custom_call.1} parent=1 // pred_fallthru
      _
    // Predicated region
    $region50: #{tpu_custom_call.1} parent=1 // pred_check
      _
    $region51: #{tpu_custom_call.1} parent=1 // pred_check_branch
      %66 = sbr.rel (0) target = $region53
    $region52: #{tpu_custom_call.1} parent=1 // pred_region
      _
    $region53: #{tpu_custom_call.1} parent=1 // pred_fallthru
      _
    // Predicated region
    $region54: #{tpu_custom_call.1} parent=1 // pred_check
      _
    $region55: #{tpu_custom_call.1} parent=1 // pred_check_branch
      %68 = sbr.rel (0) target = $region57
    $region56: #{tpu_custom_call.1} parent=1 // pred_region
      _
    $region57: #{tpu_custom_call.1} parent=1 // pred_fallthru
      _
    // Predicated region
    $region58: #{tpu_custom_call.1} parent=1 // pred_check
      _
    $region59: #{tpu_custom_call.1} parent=1 // pred_check_branch
      %70 = sbr.rel (0) target = $region61
    $region60: #{tpu_custom_call.1} parent=1 // pred_region
      _
    $region61: #{tpu_custom_call.1} parent=1 // pred_fallthru
      _
    // Predicated region
    $region62: #{tpu_custom_call.1} parent=1 // pred_check
      _
    $region63: #{tpu_custom_call.1} parent=1 // pred_check_branch
      %72 = sbr.rel (0) target = $region65
    $region64: #{tpu_custom_call.1} parent=1 // pred_region
      _
    $region65: #{tpu_custom_call.1} parent=1 // pred_fallthru
      _
    // Predicated region
    $region66: #{tpu_custom_call.1} parent=1 // pred_check
      _
    $region67: #{tpu_custom_call.1} parent=1 // pred_check_branch
      %74 = sbr.rel (0) target = $region69
    $region68: #{tpu_custom_call.1} parent=1 // pred_region
      %75 = dma.done [#allocation5], 256
    $region69: #{tpu_custom_call.1} parent=1 // pred_fallthru
      _
    // Predicated region
    $region70: #{tpu_custom_call.1} parent=1 // pred_check
      _
    $region71: #{tpu_custom_call.1} parent=1 // pred_check_branch
      %77 = sbr.rel (0) target = $region73
    $region72: #{tpu_custom_call.1} parent=1 // pred_region
      %78 = dma.done [#allocation7], 16
    $region73: #{tpu_custom_call.1} parent=1 // pred_fallthru
      _
    %v79 = vld [vmem:[#allocation4] sm:$0xff]
    %v80 = vld [vmem:[#allocation4 + $0x8] sm:$0xff]
    %v81 = vld [vmem:[%s3] sm:$0xff]
    %v82 = vld [vmem:[%s3 + $0x8] sm:$0xff]
    %v83 = vld [vmem:[%s3 + $0x10] sm:$0xff]
    %v84 = vld [vmem:[%s3 + $0x18] sm:$0xff]
    %v85 = vld [vmem:[%s5] sm:$0xff]
    %v86 = vld [vmem:[%s5 + $0x8] sm:$0xff]
    %v87 = vld [vmem:[%s5 + $0x10] sm:$0xff]
    %v88 = vld [vmem:[%s5 + $0x18] sm:$0xff]
    %v89 = vld [vmem:[%s6] sm:$0x1]
    %v91 = vlaneseq
    %v92 = vshrl.u32 %v91, 7
    %v93 = vsub.s32 0, %v92
    %v94 = vrot.slane %v89, %v93
    %v96 = vld [vmem:[%s0] sm:$0xff]
    %v97 = vld [vmem:[%s0 + $0x8] sm:$0xff]
    %v98 = vld [vmem:[%s0 + $0x10] sm:$0xff]
    %v99 = vld [vmem:[%s0 + $0x18] sm:$0xff]
    %v100 = vld [vmem:[%s0 + $0x20] sm:$0xff]
    %v101 = vld [vmem:[%s0 + $0x28] sm:$0xff]
    %v102 = vld [vmem:[%s0 + $0x30] sm:$0xff]
    %v103 = vld [vmem:[%s0 + $0x38] sm:$0xff]
    %v104 = vld [vmem:[%s4] sm:$0x1]
    %v106 = vlaneseq
    %v107 = vshrl.u32 %v106, 7
    %v108 = vsub.s32 0, %v107
    %v109 = vrot.slane %v104, %v108
    %vm111 = vcmask 130048
    %v113 = vsel %vm111, %v96, 0
    %v116 = vsel %vm111, %v97, 0
    %v119 = vsel %vm111, %v98, 0
    %v122 = vsel %vm111, %v99, 0
    %v125 = vsel %vm111, %v100, 0
    %v128 = vsel %vm111, %v101, 0
    %v131 = vsel %vm111, %v102, 0
    %v134 = vsel %vm111, %v103, 0
    %136 = vmatprep.subr.mxu0 0.0
    %137 = vmatpush1.msra.mxu0 %v79
    %138 = vmatprep.subr.mxu0 0.0
    %139 = vmatpush1.msra.mxu0 %v80
    %140 = vmatprep.subr.mxu0 0.0
    %141 = vmatpush1.msra.mxu0 0.0
    %142 = vmatprep.subr.mxu0 0.0
    %143 = vmatpush1.msra.mxu0 0.0
    %144 = vmatprep.subr.mxu0 0.0
    %145 = vmatpush1.msra.mxu0 0.0
    %146 = vmatprep.subr.mxu0 0.0
    %147 = vmatpush1.msra.mxu0 0.0
    %148 = vmatprep.subr.mxu0 0.0
    %149 = vmatpush1.msra.mxu0 0.0
    %150 = vmatprep.subr.mxu0 0.0
    %151 = vmatpush1.msra.mxu0 0.0
    %152 = vmatprep.subr.mxu0 0.0
    %153 = vmatpush1.msra.mxu0 0.0
    %154 = vmatprep.subr.mxu0 0.0
    %155 = vmatpush1.msra.mxu0 0.0
    %156 = vmatprep.subr.mxu0 0.0
    %157 = vmatpush1.msra.mxu0 0.0
    %158 = vmatprep.subr.mxu0 0.0
    %159 = vmatpush1.msra.mxu0 0.0
    %160 = vmatprep.subr.mxu0 0.0
    %161 = vmatpush1.msra.mxu0 0.0
    %162 = vmatprep.subr.mxu0 0.0
    %163 = vmatpush1.msra.mxu0 0.0
    %164 = vmatprep.subr.mxu0 0.0
    %165 = vmatpush1.msra.mxu0 0.0
    %166 = vmatprep.subr.mxu0 0.0
    %167 = vmatpush1.msra.mxu0 0.0
    %168 = vmatprep.subr.mxu0 0.0
    %169 = vmatpush1.msra.mxu0 0.0
    %170 = vmatprep.subr.mxu0 0.0
    %171 = vmatpush1.msra.mxu0 0.0
    %172 = vmatprep.subr.mxu0 0.0
    %173 = vmatpush1.msra.mxu0 0.0
    %174 = vmatprep.subr.mxu0 0.0
    %175 = vmatpush1.msra.mxu0 0.0
    %176 = vmatprep.subr.mxu0 0.0
    %177 = vmatpush1.msra.mxu0 0.0
    %178 = vmatprep.subr.mxu0 0.0
    %179 = vmatpush1.msra.mxu0 0.0
    %180 = vmatprep.subr.mxu0 0.0
    %181 = vmatpush1.msra.mxu0 0.0
    %182 = vmatprep.subr.mxu0 0.0
    %183 = vmatpush1.msra.mxu0 0.0
    %184 = vmatprep.subr.mxu0 0.0
    %185 = vmatpush1.msra.mxu0 0.0
    %186 = vmatprep.subr.mxu0 0.0
    %187 = vmatpush1.msra.mxu0 0.0
    %188 = vmatprep.subr.mxu0 0.0
    %189 = vmatpush1.msra.mxu0 0.0
    %190 = vmatprep.subr.mxu0 0.0
    %191 = vmatpush1.msra.mxu0 0.0
    %192 = vmatprep.subr.mxu0 0.0
    %193 = vmatpush1.msra.mxu0 0.0
    %194 = vmatprep.subr.mxu0 0.0
    %195 = vmatpush1.msra.mxu0 0.0
    %196 = vmatprep.subr.mxu0 0.0
    %197 = vmatpush1.msra.mxu0 0.0
    %198 = vmatprep.subr.mxu0 0.0
    %199 = vmatpush1.msra.mxu0 0.0
    %200 = vmatprep.mubr.f32.mxu0 0.0
    %201 = vmatmul.mubr.f32.gmra.mrb[0].mxu0 %v113
    %v202 = vpop.f32.mrb[0].mxu0
    %v203 = vadd.f32 %v109, %v202
    %v204 = vpop.f32.mrb[0].mxu0
    %205 = vmatprep.mubr.f32.mxu0 0.0
    %206 = vmatmul.mubr.f32.gmra.mrb[0].mxu0 %v116
    %v207 = vpop.f32.mrb[0].mxu0
    %v208 = vadd.f32 %v109, %v207
    %v209 = vpop.f32.mrb[0].mxu0
    %210 = vmatprep.mubr.f32.mxu0 0.0
    %211 = vmatmul.mubr.f32.gmra.mrb[0].mxu0 %v119
    %v212 = vpop.f32.mrb[0].mxu0
    %v213 = vadd.f32 %v109, %v212
    %v214 = vpop.f32.mrb[0].mxu0
    %215 = vmatprep.mubr.f32.mxu0 0.0
    %216 = vmatmul.mubr.f32.gmra.mrb[0].mxu0 %v122
    %v217 = vpop.f32.mrb[0].mxu0
    %v218 = vadd.f32 %v109, %v217
    %v219 = vpop.f32.mrb[0].mxu0
    %220 = vmatprep.mubr.f32.mxu0 0.0
    %221 = vmatmul.mubr.f32.gmra.mrb[0].mxu0 %v125
    %v222 = vpop.f32.mrb[0].mxu0
    %v223 = vadd.f32 %v109, %v222
    %v224 = vpop.f32.mrb[0].mxu0
    %225 = vmatprep.mubr.f32.mxu0 0.0
    %226 = vmatmul.mubr.f32.gmra.mrb[0].mxu0 %v128
    %v227 = vpop.f32.mrb[0].mxu0
    %v228 = vadd.f32 %v109, %v227
    %v229 = vpop.f32.mrb[0].mxu0
    %230 = vmatprep.mubr.f32.mxu0 0.0
    %231 = vmatmul.mubr.f32.gmra.mrb[0].mxu0 %v131
    %v232 = vpop.f32.mrb[0].mxu0
    %v233 = vadd.f32 %v109, %v232
    %v234 = vpop.f32.mrb[0].mxu0
    %235 = vmatprep.mubr.f32.mxu0 0.0
    %236 = vmatmul.mubr.f32.gmra.mrb[0].mxu0 %v134
    %v237 = vpop.f32.mrb[0].mxu0
    %v238 = vadd.f32 %v109, %v237
    %v239 = vpop.f32.mrb[0].mxu0
    %240 = vdwg.mxu0
    %vm241 = vcmask 261120
    %v243 = vsel %vm241, 0.0, 0
    %245 = vmatprep.subr.mxu0 0.0
    %246 = vmatpush1.msra.mxu0 %v81
    %247 = vmatprep.subr.mxu0 0.0
    %248 = vmatpush1.msra.mxu0 %v82
    %249 = vmatprep.subr.mxu0 0.0
    %250 = vmatpush1.msra.mxu0 %v83
    %251 = vmatprep.subr.mxu0 0.0
    %252 = vmatpush1.msra.mxu0 %v84
    %253 = vmatprep.subr.mxu0 0.0
    %254 = vmatpush1.msra.mxu0 0.0
    %255 = vmatprep.subr.mxu0 0.0
    %256 = vmatpush1.msra.mxu0 0.0
    %257 = vmatprep.subr.mxu0 0.0
    %258 = vmatpush1.msra.mxu0 0.0
    %259 = vmatprep.subr.mxu0 0.0
    %260 = vmatpush1.msra.mxu0 0.0
    %261 = vmatprep.subr.mxu0 0.0
    %262 = vmatpush1.msra.mxu0 0.0
    %263 = vmatprep.subr.mxu0 0.0
    %264 = vmatpush1.msra.mxu0 0.0
    %265 = vmatprep.subr.mxu0 0.0
    %266 = vmatpush1.msra.mxu0 0.0
    %267 = vmatprep.subr.mxu0 0.0
    %268 = vmatpush1.msra.mxu0 0.0
    %269 = vmatprep.subr.mxu0 0.0
    %270 = vmatpush1.msra.mxu0 0.0
    %271 = vmatprep.subr.mxu0 0.0
    %272 = vmatpush1.msra.mxu0 0.0
    %273 = vmatprep.subr.mxu0 0.0
    %274 = vmatpush1.msra.mxu0 0.0
    %275 = vmatprep.subr.mxu0 0.0
    %276 = vmatpush1.msra.mxu0 0.0
    %277 = vmatprep.subr.mxu0 0.0
    %278 = vmatpush1.msra.mxu0 0.0
    %279 = vmatprep.subr.mxu0 0.0
    %280 = vmatpush1.msra.mxu0 0.0
    %281 = vmatprep.subr.mxu0 0.0
    %282 = vmatpush1.msra.mxu0 0.0
    %283 = vmatprep.subr.mxu0 0.0
    %284 = vmatpush1.msra.mxu0 0.0
    %285 = vmatprep.subr.mxu0 0.0
    %286 = vmatpush1.msra.mxu0 0.0
    %287 = vmatprep.subr.mxu0 0.0
    %288 = vmatpush1.msra.mxu0 0.0
    %289 = vmatprep.subr.mxu0 0.0
    %290 = vmatpush1.msra.mxu0 0.0
    %291 = vmatprep.subr.mxu0 0.0
    %292 = vmatpush1.msra.mxu0 0.0
    %293 = vmatprep.subr.mxu0 0.0
    %294 = vmatpush1.msra.mxu0 0.0
    %295 = vmatprep.subr.mxu0 0.0
    %296 = vmatpush1.msra.mxu0 0.0
    %297 = vmatprep.subr.mxu0 0.0
    %298 = vmatpush1.msra.mxu0 0.0
    %299 = vmatprep.subr.mxu0 0.0
    %300 = vmatpush1.msra.mxu0 0.0
    %301 = vmatprep.subr.mxu0 0.0
    %302 = vmatpush1.msra.mxu0 0.0
    %303 = vmatprep.subr.mxu0 0.0
    %304 = vmatpush1.msra.mxu0 0.0
    %305 = vmatprep.subr.mxu0 0.0
    %306 = vmatpush1.msra.mxu0 0.0
    %307 = vmatprep.subr.mxu0 0.0
    %308 = vmatpush1.msra.mxu0 0.0
    %309 = vmatprep.mubr.f32.mxu0 0.0
    %310 = vmatmul.mubr.f32.gmra.mrb[0].mxu0 %v243
    %v311 = vpop.f32.mrb[0].mxu0
    %v312 = vadd.f32 0.0, %v311
    %v313 = vpop.f32.mrb[0].mxu0
    %314 = vdwg.mxu0
    %v315 = vadd.f32 %v238, %v312
    %v316 = vtanh.pop %v315
    %v317 = vmul.f32 %v316, 0.5
    %v318 = vadd.f32 %v317, 0.5
    %v319 = vmul.f32 %v318, 0.0
    %321 = vrot.lane.b32.xlu0 %v316, 32
    %v322 = vpop.permute.xlu0 %321
    %v324 = vmul.f32 %v318, %v322
    %326 = vrot.lane.b32.xlu0 %v324, 32
    %v327 = vpop.permute.xlu0 %326
    %v329 = vadd.f32 %v319, %v327
    %v330 = vtanh.pop %v329
    %332 = vrot.lane.b32.xlu0 %v330, 32
    %v333 = vpop.permute.xlu0 %332
    %v335 = vmul.f32 %v318, %v333
    %337 = vrot.lane.b32.xlu0 %v335, 64
    %v338 = vpop.permute.xlu0 %337
    %v339 = vsel %vm241, %v338, 0
    %341 = vmatprep.subr.mxu0 0.0
    %342 = vmatpush1.msra.mxu0 %v85
    %343 = vmatprep.subr.mxu0 0.0
    %344 = vmatpush1.msra.mxu0 %v86
    %345 = vmatprep.subr.mxu0 0.0
    %346 = vmatpush1.msra.mxu0 %v87
    %347 = vmatprep.subr.mxu0 0.0
    %348 = vmatpush1.msra.mxu0 %v88
    %349 = vmatprep.subr.mxu0 0.0
    %350 = vmatpush1.msra.mxu0 0.0
    %351 = vmatprep.subr.mxu0 0.0
    %352 = vmatpush1.msra.mxu0 0.0
    %353 = vmatprep.subr.mxu0 0.0
    %354 = vmatpush1.msra.mxu0 0.0
    %355 = vmatprep.subr.mxu0 0.0
    %356 = vmatpush1.msra.mxu0 0.0
    %357 = vmatprep.subr.mxu0 0.0
    %358 = vmatpush1.msra.mxu0 0.0
    %359 = vmatprep.subr.mxu0 0.0
    %360 = vmatpush1.msra.mxu0 0.0
    %361 = vmatprep.subr.mxu0 0.0
    %362 = vmatpush1.msra.mxu0 0.0
    %363 = vmatprep.subr.mxu0 0.0
    %364 = vmatpush1.msra.mxu0 0.0
    %365 = vmatprep.subr.mxu0 0.0
    %366 = vmatpush1.msra.mxu0 0.0
    %367 = vmatprep.subr.mxu0 0.0
    %368 = vmatpush1.msra.mxu0 0.0
    %369 = vmatprep.subr.mxu0 0.0
    %370 = vmatpush1.msra.mxu0 0.0
    %371 = vmatprep.subr.mxu0 0.0
    %372 = vmatpush1.msra.mxu0 0.0
    %373 = vmatprep.subr.mxu0 0.0
    %374 = vmatpush1.msra.mxu0 0.0
    %375 = vmatprep.subr.mxu0 0.0
    %376 = vmatpush1.msra.mxu0 0.0
    %377 = vmatprep.subr.mxu0 0.0
    %378 = vmatpush1.msra.mxu0 0.0
    %379 = vmatprep.subr.mxu0 0.0
    %380 = vmatpush1.msra.mxu0 0.0
    %381 = vmatprep.subr.mxu0 0.0
    %382 = vmatpush1.msra.mxu0 0.0
    %383 = vmatprep.subr.mxu0 0.0
    %384 = vmatpush1.msra.mxu0 0.0
    %385 = vmatprep.subr.mxu0 0.0
    %386 = vmatpush1.msra.mxu0 0.0
    %387 = vmatprep.subr.mxu0 0.0
    %388 = vmatpush1.msra.mxu0 0.0
    %389 = vmatprep.subr.mxu0 0.0
    %390 = vmatpush1.msra.mxu0 0.0
    %391 = vmatprep.subr.mxu0 0.0
    %392 = vmatpush1.msra.mxu0 0.0
    %393 = vmatprep.subr.mxu0 0.0
    %394 = vmatpush1.msra.mxu0 0.0
    %395 = vmatprep.subr.mxu0 0.0
    %396 = vmatpush1.msra.mxu0 0.0
    %397 = vmatprep.subr.mxu0 0.0
    %398 = vmatpush1.msra.mxu0 0.0
    %399 = vmatprep.subr.mxu0 0.0
    %400 = vmatpush1.msra.mxu0 0.0
    %401 = vmatprep.subr.mxu0 0.0
    %402 = vmatpush1.msra.mxu0 0.0
    %403 = vmatprep.subr.mxu0 0.0
    %404 = vmatpush1.msra.mxu0 0.0
    %405 = vmatprep.mubr.f32.mxu0 0.0
    %406 = vmatmul.mubr.f32.gmra.mrb[0].mxu0 %v339
    %v407 = vpop.f32.mrb[0].mxu0
    %v408 = vadd.f32 %v94, %v407
    %v409 = vpop.f32.mrb[0].mxu0
    %410 = vdwg.mxu0
    %411 = vst.msk [vmem:[#allocation2 + $0x38] sm:$0xff] %vm241, %v408
    %412 = vmatprep.subr.mxu0 0.0
    %413 = vmatpush1.msra.mxu0 %v81
    %414 = vmatprep.subr.mxu0 0.0
    %415 = vmatpush1.msra.mxu0 %v82
    %416 = vmatprep.subr.mxu0 0.0
    %417 = vmatpush1.msra.mxu0 %v83
    %418 = vmatprep.subr.mxu0 0.0
    %419 = vmatpush1.msra.mxu0 %v84
    %420 = vmatprep.subr.mxu0 0.0
    %421 = vmatpush1.msra.mxu0 0.0
    %422 = vmatprep.subr.mxu0 0.0
    %423 = vmatpush1.msra.mxu0 0.0
    %424 = vmatprep.subr.mxu0 0.0
    %425 = vmatpush1.msra.mxu0 0.0
    %426 = vmatprep.subr.mxu0 0.0
    %427 = vmatpush1.msra.mxu0 0.0
    %428 = vmatprep.subr.mxu0 0.0
    %429 = vmatpush1.msra.mxu0 0.0
    %430 = vmatprep.subr.mxu0 0.0
    %431 = vmatpush1.msra.mxu0 0.0
    %432 = vmatprep.subr.mxu0 0.0
    %433 = vmatpush1.msra.mxu0 0.0
    %434 = vmatprep.subr.mxu0 0.0
    %435 = vmatpush1.msra.mxu0 0.0
    %436 = vmatprep.subr.mxu0 0.0
    %437 = vmatpush1.msra.mxu0 0.0
    %438 = vmatprep.subr.mxu0 0.0
    %439 = vmatpush1.msra.mxu0 0.0
    %440 = vmatprep.subr.mxu0 0.0
    %441 = vmatpush1.msra.mxu0 0.0
    %442 = vmatprep.subr.mxu0 0.0
    %443 = vmatpush1.msra.mxu0 0.0
    %444 = vmatprep.subr.mxu0 0.0
    %445 = vmatpush1.msra.mxu0 0.0
    %446 = vmatprep.subr.mxu0 0.0
    %447 = vmatpush1.msra.mxu0 0.0
    %448 = vmatprep.subr.mxu0 0.0
    %449 = vmatpush1.msra.mxu0 0.0
    %450 = vmatprep.subr.mxu0 0.0
    %451 = vmatpush1.msra.mxu0 0.0
    %452 = vmatprep.subr.mxu0 0.0
    %453 = vmatpush1.msra.mxu0 0.0
    %454 = vmatprep.subr.mxu0 0.0
    %455 = vmatpush1.msra.mxu0 0.0
    %456 = vmatprep.subr.mxu0 0.0
    %457 = vmatpush1.msra.mxu0 0.0
    %458 = vmatprep.subr.mxu0 0.0
    %459 = vmatpush1.msra.mxu0 0.0
    %460 = vmatprep.subr.mxu0 0.0
    %461 = vmatpush1.msra.mxu0 0.0
    %462 = vmatprep.subr.mxu0 0.0
    %463 = vmatpush1.msra.mxu0 0.0
    %464 = vmatprep.subr.mxu0 0.0
    %465 = vmatpush1.msra.mxu0 0.0
    %466 = vmatprep.subr.mxu0 0.0
    %467 = vmatpush1.msra.mxu0 0.0
    %468 = vmatprep.subr.mxu0 0.0
    %469 = vmatpush1.msra.mxu0 0.0
    %470 = vmatprep.subr.mxu0 0.0
    %471 = vmatpush1.msra.mxu0 0.0
    %472 = vmatprep.subr.mxu0 0.0
    %473 = vmatpush1.msra.mxu0 0.0
    %474 = vmatprep.subr.mxu0 0.0
    %475 = vmatpush1.msra.mxu0 0.0
    %476 = vmatprep.mubr.f32.mxu0 0.0
    %477 = vmatmul.mubr.f32.gmra.mrb[0].mxu0 %v339
    %v478 = vpop.f32.mrb[0].mxu0
    %v479 = vadd.f32 0.0, %v478
    %v480 = vpop.f32.mrb[0].mxu0
    %481 = vdwg.mxu0
    %v482 = vadd.f32 %v233, %v479
    %v483 = vtanh.pop %v482
    %v484 = vmul.f32 %v483, 0.5
    %v485 = vadd.f32 %v484, 0.5
    %v486 = vmul.f32 %v485, %v329
    %488 = vrot.lane.b32.xlu0 %v483, 32
    %v489 = vpop.permute.xlu0 %488
    %v491 = vmul.f32 %v485, %v489
    %493 = vrot.lane.b32.xlu0 %v491, 32
    %v494 = vpop.permute.xlu0 %493
    %v496 = vadd.f32 %v486, %v494
    %v497 = vtanh.pop %v496
    %499 = vrot.lane.b32.xlu0 %v497, 32
    %v500 = vpop.permute.xlu0 %499
    %v502 = vmul.f32 %v485, %v500
    %504 = vrot.lane.b32.xlu0 %v502, 64
    %v505 = vpop.permute.xlu0 %504
    %v506 = vsel %vm241, %v505, 0
    %508 = vmatprep.subr.mxu0 0.0
    %509 = vmatpush1.msra.mxu0 %v85
    %510 = vmatprep.subr.mxu0 0.0
    %511 = vmatpush1.msra.mxu0 %v86
    %512 = vmatprep.subr.mxu0 0.0
    %513 = vmatpush1.msra.mxu0 %v87
    %514 = vmatprep.subr.mxu0 0.0
    %515 = vmatpush1.msra.mxu0 %v88
    %516 = vmatprep.subr.mxu0 0.0
    %517 = vmatpush1.msra.mxu0 0.0
    %518 = vmatprep.subr.mxu0 0.0
    %519 = vmatpush1.msra.mxu0 0.0
    %520 = vmatprep.subr.mxu0 0.0
    %521 = vmatpush1.msra.mxu0 0.0
    %522 = vmatprep.subr.mxu0 0.0
    %523 = vmatpush1.msra.mxu0 0.0
    %524 = vmatprep.subr.mxu0 0.0
    %525 = vmatpush1.msra.mxu0 0.0
    %526 = vmatprep.subr.mxu0 0.0
    %527 = vmatpush1.msra.mxu0 0.0
    %528 = vmatprep.subr.mxu0 0.0
    %529 = vmatpush1.msra.mxu0 0.0
    %530 = vmatprep.subr.mxu0 0.0
    %531 = vmatpush1.msra.mxu0 0.0
    %532 = vmatprep.subr.mxu0 0.0
    %533 = vmatpush1.msra.mxu0 0.0
    %534 = vmatprep.subr.mxu0 0.0
    %535 = vmatpush1.msra.mxu0 0.0
    %536 = vmatprep.subr.mxu0 0.0
    %537 = vmatpush1.msra.mxu0 0.0
    %538 = vmatprep.subr.mxu0 0.0
    %539 = vmatpush1.msra.mxu0 0.0
    %540 = vmatprep.subr.mxu0 0.0
    %541 = vmatpush1.msra.mxu0 0.0
    %542 = vmatprep.subr.mxu0 0.0
    %543 = vmatpush1.msra.mxu0 0.0
    %544 = vmatprep.subr.mxu0 0.0
    %545 = vmatpush1.msra.mxu0 0.0
    %546 = vmatprep.subr.mxu0 0.0
    %547 = vmatpush1.msra.mxu0 0.0
    %548 = vmatprep.subr.mxu0 0.0
    %549 = vmatpush1.msra.mxu0 0.0
    %550 = vmatprep.subr.mxu0 0.0
    %551 = vmatpush1.msra.mxu0 0.0
    %552 = vmatprep.subr.mxu0 0.0
    %553 = vmatpush1.msra.mxu0 0.0
    %554 = vmatprep.subr.mxu0 0.0
    %555 = vmatpush1.msra.mxu0 0.0
    %556 = vmatprep.subr.mxu0 0.0
    %557 = vmatpush1.msra.mxu0 0.0
    %558 = vmatprep.subr.mxu0 0.0
    %559 = vmatpush1.msra.mxu0 0.0
    %560 = vmatprep.subr.mxu0 0.0
    %561 = vmatpush1.msra.mxu0 0.0
    %562 = vmatprep.subr.mxu0 0.0
    %563 = vmatpush1.msra.mxu0 0.0
    %564 = vmatprep.subr.mxu0 0.0
    %565 = vmatpush1.msra.mxu0 0.0
    %566 = vmatprep.subr.mxu0 0.0
    %567 = vmatpush1.msra.mxu0 0.0
    %568 = vmatprep.subr.mxu0 0.0
    %569 = vmatpush1.msra.mxu0 0.0
    %570 = vmatprep.subr.mxu0 0.0
    %571 = vmatpush1.msra.mxu0 0.0
    %572 = vmatprep.mubr.f32.mxu0 0.0
    %573 = vmatmul.mubr.f32.gmra.mrb[0].mxu0 %v506
    %v574 = vpop.f32.mrb[0].mxu0
    %v575 = vadd.f32 %v94, %v574
    %v576 = vpop.f32.mrb[0].mxu0
    %577 = vdwg.mxu0
    %578 = vst.msk [vmem:[#allocation2 + $0x30] sm:$0xff] %vm241, %v575
    %579 = vmatprep.subr.mxu0 0.0
    %580 = vmatpush1.msra.mxu0 %v81
    %581 = vmatprep.subr.mxu0 0.0
    %582 = vmatpush1.msra.mxu0 %v82
    %583 = vmatprep.subr.mxu0 0.0
    %584 = vmatpush1.msra.mxu0 %v83
    %585 = vmatprep.subr.mxu0 0.0
    %586 = vmatpush1.msra.mxu0 %v84
    %587 = vmatprep.subr.mxu0 0.0
    %588 = vmatpush1.msra.mxu0 0.0
    %589 = vmatprep.subr.mxu0 0.0
    %590 = vmatpush1.msra.mxu0 0.0
    %591 = vmatprep.subr.mxu0 0.0
    %592 = vmatpush1.msra.mxu0 0.0
    %593 = vmatprep.subr.mxu0 0.0
    %594 = vmatpush1.msra.mxu0 0.0
    %595 = vmatprep.subr.mxu0 0.0
    %596 = vmatpush1.msra.mxu0 0.0
    %597 = vmatprep.subr.mxu0 0.0
    %598 = vmatpush1.msra.mxu0 0.0
    %599 = vmatprep.subr.mxu0 0.0
    %600 = vmatpush1.msra.mxu0 0.0
    %601 = vmatprep.subr.mxu0 0.0
    %602 = vmatpush1.msra.mxu0 0.0
    %603 = vmatprep.subr.mxu0 0.0
    %604 = vmatpush1.msra.mxu0 0.0
    %605 = vmatprep.subr.mxu0 0.0
    %606 = vmatpush1.msra.mxu0 0.0
    %607 = vmatprep.subr.mxu0 0.0
    %608 = vmatpush1.msra.mxu0 0.0
    %609 = vmatprep.subr.mxu0 0.0
    %610 = vmatpush1.msra.mxu0 0.0
    %611 = vmatprep.subr.mxu0 0.0
    %612 = vmatpush1.msra.mxu0 0.0
    %613 = vmatprep.subr.mxu0 0.0
    %614 = vmatpush1.msra.mxu0 0.0
    %615 = vmatprep.subr.mxu0 0.0
    %616 = vmatpush1.msra.mxu0 0.0
    %617 = vmatprep.subr.mxu0 0.0
    %618 = vmatpush1.msra.mxu0 0.0
    %619 = vmatprep.subr.mxu0 0.0
    %620 = vmatpush1.msra.mxu0 0.0
    %621 = vmatprep.subr.mxu0 0.0
    %622 = vmatpush1.msra.mxu0 0.0
    %623 = vmatprep.subr.mxu0 0.0
    %624 = vmatpush1.msra.mxu0 0.0
    %625 = vmatprep.subr.mxu0 0.0
    %626 = vmatpush1.msra.mxu0 0.0
    %627 = vmatprep.subr.mxu0 0.0
    %628 = vmatpush1.msra.mxu0 0.0
    %629 = vmatprep.subr.mxu0 0.0
    %630 = vmatpush1.msra.mxu0 0.0
    %631 = vmatprep.subr.mxu0 0.0
    %632 = vmatpush1.msra.mxu0 0.0
    %633 = vmatprep.subr.mxu0 0.0
    %634 = vmatpush1.msra.mxu0 0.0
    %635 = vmatprep.subr.mxu0 0.0
    %636 = vmatpush1.msra.mxu0 0.0
    %637 = vmatprep.subr.mxu0 0.0
    %638 = vmatpush1.msra.mxu0 0.0
    %639 = vmatprep.subr.mxu0 0.0
    %640 = vmatpush1.msra.mxu0 0.0
    %641 = vmatprep.subr.mxu0 0.0
    %642 = vmatpush1.msra.mxu0 0.0
    %643 = vmatprep.mubr.f32.mxu0 0.0
    %644 = vmatmul.mubr.f32.gmra.mrb[0].mxu0 %v506
    %v645 = vpop.f32.mrb[0].mxu0
    %v646 = vadd.f32 0.0, %v645
    %v647 = vpop.f32.mrb[0].mxu0
    %648 = vdwg.mxu0
    %v649 = vadd.f32 %v228, %v646
    %v650 = vtanh.pop %v649
    %v651 = vmul.f32 %v650, 0.5
    %v652 = vadd.f32 %v651, 0.5
    %v653 = vmul.f32 %v652, %v496
    %655 = vrot.lane.b32.xlu0 %v650, 32
    %v656 = vpop.permute.xlu0 %655
    %v658 = vmul.f32 %v652, %v656
    %660 = vrot.lane.b32.xlu0 %v658, 32
    %v661 = vpop.permute.xlu0 %660
    %v663 = vadd.f32 %v653, %v661
    %v664 = vtanh.pop %v663
    %666 = vrot.lane.b32.xlu0 %v664, 32
    %v667 = vpop.permute.xlu0 %666
    %v669 = vmul.f32 %v652, %v667
    %671 = vrot.lane.b32.xlu0 %v669, 64
    %v672 = vpop.permute.xlu0 %671
    %v673 = vsel %vm241, %v672, 0
    %675 = vmatprep.subr.mxu0 0.0
    %676 = vmatpush1.msra.mxu0 %v85
    %677 = vmatprep.subr.mxu0 0.0
    %678 = vmatpush1.msra.mxu0 %v86
    %679 = vmatprep.subr.mxu0 0.0
    %680 = vmatpush1.msra.mxu0 %v87
    %681 = vmatprep.subr.mxu0 0.0
    %682 = vmatpush1.msra.mxu0 %v88
    %683 = vmatprep.subr.mxu0 0.0
    %684 = vmatpush1.msra.mxu0 0.0
    %685 = vmatprep.subr.mxu0 0.0
    %686 = vmatpush1.msra.mxu0 0.0
    %687 = vmatprep.subr.mxu0 0.0
    %688 = vmatpush1.msra.mxu0 0.0
    %689 = vmatprep.subr.mxu0 0.0
    %690 = vmatpush1.msra.mxu0 0.0
    %691 = vmatprep.subr.mxu0 0.0
    %692 = vmatpush1.msra.mxu0 0.0
    %693 = vmatprep.subr.mxu0 0.0
    %694 = vmatpush1.msra.mxu0 0.0
    %695 = vmatprep.subr.mxu0 0.0
    %696 = vmatpush1.msra.mxu0 0.0
    %697 = vmatprep.subr.mxu0 0.0
    %698 = vmatpush1.msra.mxu0 0.0
    %699 = vmatprep.subr.mxu0 0.0
    %700 = vmatpush1.msra.mxu0 0.0
    %701 = vmatprep.subr.mxu0 0.0
    %702 = vmatpush1.msra.mxu0 0.0
    %703 = vmatprep.subr.mxu0 0.0
    %704 = vmatpush1.msra.mxu0 0.0
    %705 = vmatprep.subr.mxu0 0.0
    %706 = vmatpush1.msra.mxu0 0.0
    %707 = vmatprep.subr.mxu0 0.0
    %708 = vmatpush1.msra.mxu0 0.0
    %709 = vmatprep.subr.mxu0 0.0
    %710 = vmatpush1.msra.mxu0 0.0
    %711 = vmatprep.subr.mxu0 0.0
    %712 = vmatpush1.msra.mxu0 0.0
    %713 = vmatprep.subr.mxu0 0.0
    %714 = vmatpush1.msra.mxu0 0.0
    %715 = vmatprep.subr.mxu0 0.0
    %716 = vmatpush1.msra.mxu0 0.0
    %717 = vmatprep.subr.mxu0 0.0
    %718 = vmatpush1.msra.mxu0 0.0
    %719 = vmatprep.subr.mxu0 0.0
    %720 = vmatpush1.msra.mxu0 0.0
    %721 = vmatprep.subr.mxu0 0.0
    %722 = vmatpush1.msra.mxu0 0.0
    %723 = vmatprep.subr.mxu0 0.0
    %724 = vmatpush1.msra.mxu0 0.0
    %725 = vmatprep.subr.mxu0 0.0
    %726 = vmatpush1.msra.mxu0 0.0
    %727 = vmatprep.subr.mxu0 0.0
    %728 = vmatpush1.msra.mxu0 0.0
    %729 = vmatprep.subr.mxu0 0.0
    %730 = vmatpush1.msra.mxu0 0.0
    %731 = vmatprep.subr.mxu0 0.0
    %732 = vmatpush1.msra.mxu0 0.0
    %733 = vmatprep.subr.mxu0 0.0
    %734 = vmatpush1.msra.mxu0 0.0
    %735 = vmatprep.subr.mxu0 0.0
    %736 = vmatpush1.msra.mxu0 0.0
    %737 = vmatprep.subr.mxu0 0.0
    %738 = vmatpush1.msra.mxu0 0.0
    %739 = vmatprep.mubr.f32.mxu0 0.0
    %740 = vmatmul.mubr.f32.gmra.mrb[0].mxu0 %v673
    %v741 = vpop.f32.mrb[0].mxu0
    %v742 = vadd.f32 %v94, %v741
    %v743 = vpop.f32.mrb[0].mxu0
    %744 = vdwg.mxu0
    %745 = vst.msk [vmem:[#allocation2 + $0x28] sm:$0xff] %vm241, %v742
    %746 = vmatprep.subr.mxu0 0.0
    %747 = vmatpush1.msra.mxu0 %v81
    %748 = vmatprep.subr.mxu0 0.0
    %749 = vmatpush1.msra.mxu0 %v82
    %750 = vmatprep.subr.mxu0 0.0
    %751 = vmatpush1.msra.mxu0 %v83
    %752 = vmatprep.subr.mxu0 0.0
    %753 = vmatpush1.msra.mxu0 %v84
    %754 = vmatprep.subr.mxu0 0.0
    %755 = vmatpush1.msra.mxu0 0.0
    %756 = vmatprep.subr.mxu0 0.0
    %757 = vmatpush1.msra.mxu0 0.0
    %758 = vmatprep.subr.mxu0 0.0
    %759 = vmatpush1.msra.mxu0 0.0
    %760 = vmatprep.subr.mxu0 0.0
    %761 = vmatpush1.msra.mxu0 0.0
    %762 = vmatprep.subr.mxu0 0.0
    %763 = vmatpush1.msra.mxu0 0.0
    %764 = vmatprep.subr.mxu0 0.0
    %765 = vmatpush1.msra.mxu0 0.0
    %766 = vmatprep.subr.mxu0 0.0
    %767 = vmatpush1.msra.mxu0 0.0
    %768 = vmatprep.subr.mxu0 0.0
    %769 = vmatpush1.msra.mxu0 0.0
    %770 = vmatprep.subr.mxu0 0.0
    %771 = vmatpush1.msra.mxu0 0.0
    %772 = vmatprep.subr.mxu0 0.0
    %773 = vmatpush1.msra.mxu0 0.0
    %774 = vmatprep.subr.mxu0 0.0
    %775 = vmatpush1.msra.mxu0 0.0
    %776 = vmatprep.subr.mxu0 0.0
    %777 = vmatpush1.msra.mxu0 0.0
    %778 = vmatprep.subr.mxu0 0.0
    %779 = vmatpush1.msra.mxu0 0.0
    %780 = vmatprep.subr.mxu0 0.0
    %781 = vmatpush1.msra.mxu0 0.0
    %782 = vmatprep.subr.mxu0 0.0
    %783 = vmatpush1.msra.mxu0 0.0
    %784 = vmatprep.subr.mxu0 0.0
    %785 = vmatpush1.msra.mxu0 0.0
    %786 = vmatprep.subr.mxu0 0.0
    %787 = vmatpush1.msra.mxu0 0.0
    %788 = vmatprep.subr.mxu0 0.0
    %789 = vmatpush1.msra.mxu0 0.0
    %790 = vmatprep.subr.mxu0 0.0
    %791 = vmatpush1.msra.mxu0 0.0
    %792 = vmatprep.subr.mxu0 0.0
    %793 = vmatpush1.msra.mxu0 0.0
    %794 = vmatprep.subr.mxu0 0.0
    %795 = vmatpush1.msra.mxu0 0.0
    %796 = vmatprep.subr.mxu0 0.0
    %797 = vmatpush1.msra.mxu0 0.0
    %798 = vmatprep.subr.mxu0 0.0
    %799 = vmatpush1.msra.mxu0 0.0
    %800 = vmatprep.subr.mxu0 0.0
    %801 = vmatpush1.msra.mxu0 0.0
    %802 = vmatprep.subr.mxu0 0.0
    %803 = vmatpush1.msra.mxu0 0.0
    %804 = vmatprep.subr.mxu0 0.0
    %805 = vmatpush1.msra.mxu0 0.0
    %806 = vmatprep.subr.mxu0 0.0
    %807 = vmatpush1.msra.mxu0 0.0
    %808 = vmatprep.subr.mxu0 0.0
    %809 = vmatpush1.msra.mxu0 0.0
    %810 = vmatprep.mubr.f32.mxu0 0.0
    %811 = vmatmul.mubr.f32.gmra.mrb[0].mxu0 %v673
    %v812 = vpop.f32.mrb[0].mxu0
    %v813 = vadd.f32 0.0, %v812
    %v814 = vpop.f32.mrb[0].mxu0
    %815 = vdwg.mxu0
    %v816 = vadd.f32 %v223, %v813
    %v817 = vtanh.pop %v816
    %v818 = vmul.f32 %v817, 0.5
    %v819 = vadd.f32 %v818, 0.5
    %v820 = vmul.f32 %v819, %v663
    %822 = vrot.lane.b32.xlu0 %v817, 32
    %v823 = vpop.permute.xlu0 %822
    %v825 = vmul.f32 %v819, %v823
    %827 = vrot.lane.b32.xlu0 %v825, 32
    %v828 = vpop.permute.xlu0 %827
    %v830 = vadd.f32 %v820, %v828
    %v831 = vtanh.pop %v830
    %833 = vrot.lane.b32.xlu0 %v831, 32
    %v834 = vpop.permute.xlu0 %833
    %v836 = vmul.f32 %v819, %v834
    %838 = vrot.lane.b32.xlu0 %v836, 64
    %v839 = vpop.permute.xlu0 %838
    %v840 = vsel %vm241, %v839, 0
    %842 = vmatprep.subr.mxu0 0.0
    %843 = vmatpush1.msra.mxu0 %v85
    %844 = vmatprep.subr.mxu0 0.0
    %845 = vmatpush1.msra.mxu0 %v86
    %846 = vmatprep.subr.mxu0 0.0
    %847 = vmatpush1.msra.mxu0 %v87
    %848 = vmatprep.subr.mxu0 0.0
    %849 = vmatpush1.msra.mxu0 %v88
    %850 = vmatprep.subr.mxu0 0.0
    %851 = vmatpush1.msra.mxu0 0.0
    %852 = vmatprep.subr.mxu0 0.0
    %853 = vmatpush1.msra.mxu0 0.0
    %854 = vmatprep.subr.mxu0 0.0
    %855 = vmatpush1.msra.mxu0 0.0
    %856 = vmatprep.subr.mxu0 0.0
    %857 = vmatpush1.msra.mxu0 0.0
    %858 = vmatprep.subr.mxu0 0.0
    %859 = vmatpush1.msra.mxu0 0.0
    %860 = vmatprep.subr.mxu0 0.0
    %861 = vmatpush1.msra.mxu0 0.0
    %862 = vmatprep.subr.mxu0 0.0
    %863 = vmatpush1.msra.mxu0 0.0
    %864 = vmatprep.subr.mxu0 0.0
    %865 = vmatpush1.msra.mxu0 0.0
    %866 = vmatprep.subr.mxu0 0.0
    %867 = vmatpush1.msra.mxu0 0.0
    %868 = vmatprep.subr.mxu0 0.0
    %869 = vmatpush1.msra.mxu0 0.0
    %870 = vmatprep.subr.mxu0 0.0
    %871 = vmatpush1.msra.mxu0 0.0
    %872 = vmatprep.subr.mxu0 0.0
    %873 = vmatpush1.msra.mxu0 0.0
    %874 = vmatprep.subr.mxu0 0.0
    %875 = vmatpush1.msra.mxu0 0.0
    %876 = vmatprep.subr.mxu0 0.0
    %877 = vmatpush1.msra.mxu0 0.0
    %878 = vmatprep.subr.mxu0 0.0
    %879 = vmatpush1.msra.mxu0 0.0
    %880 = vmatprep.subr.mxu0 0.0
    %881 = vmatpush1.msra.mxu0 0.0
    %882 = vmatprep.subr.mxu0 0.0
    %883 = vmatpush1.msra.mxu0 0.0
    %884 = vmatprep.subr.mxu0 0.0
    %885 = vmatpush1.msra.mxu0 0.0
    %886 = vmatprep.subr.mxu0 0.0
    %887 = vmatpush1.msra.mxu0 0.0
    %888 = vmatprep.subr.mxu0 0.0
    %889 = vmatpush1.msra.mxu0 0.0
    %890 = vmatprep.subr.mxu0 0.0
    %891 = vmatpush1.msra.mxu0 0.0
    %892 = vmatprep.subr.mxu0 0.0
    %893 = vmatpush1.msra.mxu0 0.0
    %894 = vmatprep.subr.mxu0 0.0
    %895 = vmatpush1.msra.mxu0 0.0
    %896 = vmatprep.subr.mxu0 0.0
    %897 = vmatpush1.msra.mxu0 0.0
    %898 = vmatprep.subr.mxu0 0.0
    %899 = vmatpush1.msra.mxu0 0.0
    %900 = vmatprep.subr.mxu0 0.0
    %901 = vmatpush1.msra.mxu0 0.0
    %902 = vmatprep.subr.mxu0 0.0
    %903 = vmatpush1.msra.mxu0 0.0
    %904 = vmatprep.subr.mxu0 0.0
    %905 = vmatpush1.msra.mxu0 0.0
    %906 = vmatprep.mubr.f32.mxu0 0.0
    %907 = vmatmul.mubr.f32.gmra.mrb[0].mxu0 %v840
    %v908 = vpop.f32.mrb[0].mxu0
    %v909 = vadd.f32 %v94, %v908
    %v910 = vpop.f32.mrb[0].mxu0
    %911 = vdwg.mxu0
    %912 = vst.msk [vmem:[#allocation2 + $0x20] sm:$0xff] %vm241, %v909
    %913 = vmatprep.subr.mxu0 0.0
    %914 = vmatpush1.msra.mxu0 %v81
    %915 = vmatprep.subr.mxu0 0.0
    %916 = vmatpush1.msra.mxu0 %v82
    %917 = vmatprep.subr.mxu0 0.0
    %918 = vmatpush1.msra.mxu0 %v83
    %919 = vmatprep.subr.mxu0 0.0
    %920 = vmatpush1.msra.mxu0 %v84
    %921 = vmatprep.subr.mxu0 0.0
    %922 = vmatpush1.msra.mxu0 0.0
    %923 = vmatprep.subr.mxu0 0.0
    %924 = vmatpush1.msra.mxu0 0.0
    %925 = vmatprep.subr.mxu0 0.0
    %926 = vmatpush1.msra.mxu0 0.0
    %927 = vmatprep.subr.mxu0 0.0
    %928 = vmatpush1.msra.mxu0 0.0
    %929 = vmatprep.subr.mxu0 0.0
    %930 = vmatpush1.msra.mxu0 0.0
    %931 = vmatprep.subr.mxu0 0.0
    %932 = vmatpush1.msra.mxu0 0.0
    %933 = vmatprep.subr.mxu0 0.0
    %934 = vmatpush1.msra.mxu0 0.0
    %935 = vmatprep.subr.mxu0 0.0
    %936 = vmatpush1.msra.mxu0 0.0
    %937 = vmatprep.subr.mxu0 0.0
    %938 = vmatpush1.msra.mxu0 0.0
    %939 = vmatprep.subr.mxu0 0.0
    %940 = vmatpush1.msra.mxu0 0.0
    %941 = vmatprep.subr.mxu0 0.0
    %942 = vmatpush1.msra.mxu0 0.0
    %943 = vmatprep.subr.mxu0 0.0
    %944 = vmatpush1.msra.mxu0 0.0
    %945 = vmatprep.subr.mxu0 0.0
    %946 = vmatpush1.msra.mxu0 0.0
    %947 = vmatprep.subr.mxu0 0.0
    %948 = vmatpush1.msra.mxu0 0.0
    %949 = vmatprep.subr.mxu0 0.0
    %950 = vmatpush1.msra.mxu0 0.0
    %951 = vmatprep.subr.mxu0 0.0
    %952 = vmatpush1.msra.mxu0 0.0
    %953 = vmatprep.subr.mxu0 0.0
    %954 = vmatpush1.msra.mxu0 0.0
    %955 = vmatprep.subr.mxu0 0.0
    %956 = vmatpush1.msra.mxu0 0.0
    %957 = vmatprep.subr.mxu0 0.0
    %958 = vmatpush1.msra.mxu0 0.0
    %959 = vmatprep.subr.mxu0 0.0
    %960 = vmatpush1.msra.mxu0 0.0
    %961 = vmatprep.subr.mxu0 0.0
    %962 = vmatpush1.msra.mxu0 0.0
    %963 = vmatprep.subr.mxu0 0.0
    %964 = vmatpush1.msra.mxu0 0.0
    %965 = vmatprep.subr.mxu0 0.0
    %966 = vmatpush1.msra.mxu0 0.0
    %967 = vmatprep.subr.mxu0 0.0
    %968 = vmatpush1.msra.mxu0 0.0
    %969 = vmatprep.subr.mxu0 0.0
    %970 = vmatpush1.msra.mxu0 0.0
    %971 = vmatprep.subr.mxu0 0.0
    %972 = vmatpush1.msra.mxu0 0.0
    %973 = vmatprep.subr.mxu0 0.0
    %974 = vmatpush1.msra.mxu0 0.0
    %975 = vmatprep.subr.mxu0 0.0
    %976 = vmatpush1.msra.mxu0 0.0
    %977 = vmatprep.mubr.f32.mxu0 0.0
    %978 = vmatmul.mubr.f32.gmra.mrb[0].mxu0 %v840
    %v979 = vpop.f32.mrb[0].mxu0
    %v980 = vadd.f32 0.0, %v979
    %v981 = vpop.f32.mrb[0].mxu0
    %982 = vdwg.mxu0
    %v983 = vadd.f32 %v218, %v980
    %v984 = vtanh.pop %v983
    %v985 = vmul.f32 %v984, 0.5
    %v986 = vadd.f32 %v985, 0.5
    %v987 = vmul.f32 %v986, %v830
    %989 = vrot.lane.b32.xlu0 %v984, 32
    %v990 = vpop.permute.xlu0 %989
    %v992 = vmul.f32 %v986, %v990
    %994 = vrot.lane.b32.xlu0 %v992, 32
    %v995 = vpop.permute.xlu0 %994
    %v997 = vadd.f32 %v987, %v995
    %v998 = vtanh.pop %v997
    %1000 = vrot.lane.b32.xlu0 %v998, 32
    %v1001 = vpop.permute.xlu0 %1000
    %v1003 = vmul.f32 %v986, %v1001
    %1005 = vrot.lane.b32.xlu0 %v1003, 64
    %v1006 = vpop.permute.xlu0 %1005
    %v1007 = vsel %vm241, %v1006, 0
    %1009 = vmatprep.subr.mxu0 0.0
    %1010 = vmatpush1.msra.mxu0 %v85
    %1011 = vmatprep.subr.mxu0 0.0
    %1012 = vmatpush1.msra.mxu0 %v86
    %1013 = vmatprep.subr.mxu0 0.0
    %1014 = vmatpush1.msra.mxu0 %v87
    %1015 = vmatprep.subr.mxu0 0.0
    %1016 = vmatpush1.msra.mxu0 %v88
    %1017 = vmatprep.subr.mxu0 0.0
    %1018 = vmatpush1.msra.mxu0 0.0
    %1019 = vmatprep.subr.mxu0 0.0
    %1020 = vmatpush1.msra.mxu0 0.0
    %1021 = vmatprep.subr.mxu0 0.0
    %1022 = vmatpush1.msra.mxu0 0.0
    %1023 = vmatprep.subr.mxu0 0.0
    %1024 = vmatpush1.msra.mxu0 0.0
    %1025 = vmatprep.subr.mxu0 0.0
    %1026 = vmatpush1.msra.mxu0 0.0
    %1027 = vmatprep.subr.mxu0 0.0
    %1028 = vmatpush1.msra.mxu0 0.0
    %1029 = vmatprep.subr.mxu0 0.0
    %1030 = vmatpush1.msra.mxu0 0.0
    %1031 = vmatprep.subr.mxu0 0.0
    %1032 = vmatpush1.msra.mxu0 0.0
    %1033 = vmatprep.subr.mxu0 0.0
    %1034 = vmatpush1.msra.mxu0 0.0
    %1035 = vmatprep.subr.mxu0 0.0
    %1036 = vmatpush1.msra.mxu0 0.0
    %1037 = vmatprep.subr.mxu0 0.0
    %1038 = vmatpush1.msra.mxu0 0.0
    %1039 = vmatprep.subr.mxu0 0.0
    %1040 = vmatpush1.msra.mxu0 0.0
    %1041 = vmatprep.subr.mxu0 0.0
    %1042 = vmatpush1.msra.mxu0 0.0
    %1043 = vmatprep.subr.mxu0 0.0
    %1044 = vmatpush1.msra.mxu0 0.0
    %1045 = vmatprep.subr.mxu0 0.0
    %1046 = vmatpush1.msra.mxu0 0.0
    %1047 = vmatprep.subr.mxu0 0.0
    %1048 = vmatpush1.msra.mxu0 0.0
    %1049 = vmatprep.subr.mxu0 0.0
    %1050 = vmatpush1.msra.mxu0 0.0
    %1051 = vmatprep.subr.mxu0 0.0
    %1052 = vmatpush1.msra.mxu0 0.0
    %1053 = vmatprep.subr.mxu0 0.0
    %1054 = vmatpush1.msra.mxu0 0.0
    %1055 = vmatprep.subr.mxu0 0.0
    %1056 = vmatpush1.msra.mxu0 0.0
    %1057 = vmatprep.subr.mxu0 0.0
    %1058 = vmatpush1.msra.mxu0 0.0
    %1059 = vmatprep.subr.mxu0 0.0
    %1060 = vmatpush1.msra.mxu0 0.0
    %1061 = vmatprep.subr.mxu0 0.0
    %1062 = vmatpush1.msra.mxu0 0.0
    %1063 = vmatprep.subr.mxu0 0.0
    %1064 = vmatpush1.msra.mxu0 0.0
    %1065 = vmatprep.subr.mxu0 0.0
    %1066 = vmatpush1.msra.mxu0 0.0
    %1067 = vmatprep.subr.mxu0 0.0
    %1068 = vmatpush1.msra.mxu0 0.0
    %1069 = vmatprep.subr.mxu0 0.0
    %1070 = vmatpush1.msra.mxu0 0.0
    %1071 = vmatprep.subr.mxu0 0.0
    %1072 = vmatpush1.msra.mxu0 0.0
    %1073 = vmatprep.mubr.f32.mxu0 0.0
    %1074 = vmatmul.mubr.f32.gmra.mrb[0].mxu0 %v1007
    %v1075 = vpop.f32.mrb[0].mxu0
    %v1076 = vadd.f32 %v94, %v1075
    %v1077 = vpop.f32.mrb[0].mxu0
    %1078 = vdwg.mxu0
    %1079 = vst.msk [vmem:[#allocation2 + $0x18] sm:$0xff] %vm241, %v1076
    %1080 = vmatprep.subr.mxu0 0.0
    %1081 = vmatpush1.msra.mxu0 %v81
    %1082 = vmatprep.subr.mxu0 0.0
    %1083 = vmatpush1.msra.mxu0 %v82
    %1084 = vmatprep.subr.mxu0 0.0
    %1085 = vmatpush1.msra.mxu0 %v83
    %1086 = vmatprep.subr.mxu0 0.0
    %1087 = vmatpush1.msra.mxu0 %v84
    %1088 = vmatprep.subr.mxu0 0.0
    %1089 = vmatpush1.msra.mxu0 0.0
    %1090 = vmatprep.subr.mxu0 0.0
    %1091 = vmatpush1.msra.mxu0 0.0
    %1092 = vmatprep.subr.mxu0 0.0
    %1093 = vmatpush1.msra.mxu0 0.0
    %1094 = vmatprep.subr.mxu0 0.0
    %1095 = vmatpush1.msra.mxu0 0.0
    %1096 = vmatprep.subr.mxu0 0.0
    %1097 = vmatpush1.msra.mxu0 0.0
    %1098 = vmatprep.subr.mxu0 0.0
    %1099 = vmatpush1.msra.mxu0 0.0
    %1100 = vmatprep.subr.mxu0 0.0
    %1101 = vmatpush1.msra.mxu0 0.0
    %1102 = vmatprep.subr.mxu0 0.0
    %1103 = vmatpush1.msra.mxu0 0.0
    %1104 = vmatprep.subr.mxu0 0.0
    %1105 = vmatpush1.msra.mxu0 0.0
    %1106 = vmatprep.subr.mxu0 0.0
    %1107 = vmatpush1.msra.mxu0 0.0
    %1108 = vmatprep.subr.mxu0 0.0
    %1109 = vmatpush1.msra.mxu0 0.0
    %1110 = vmatprep.subr.mxu0 0.0
    %1111 = vmatpush1.msra.mxu0 0.0
    %1112 = vmatprep.subr.mxu0 0.0
    %1113 = vmatpush1.msra.mxu0 0.0
    %1114 = vmatprep.subr.mxu0 0.0
    %1115 = vmatpush1.msra.mxu0 0.0
    %1116 = vmatprep.subr.mxu0 0.0
    %1117 = vmatpush1.msra.mxu0 0.0
    %1118 = vmatprep.subr.mxu0 0.0
    %1119 = vmatpush1.msra.mxu0 0.0
    %1120 = vmatprep.subr.mxu0 0.0
    %1121 = vmatpush1.msra.mxu0 0.0
    %1122 = vmatprep.subr.mxu0 0.0
    %1123 = vmatpush1.msra.mxu0 0.0
    %1124 = vmatprep.subr.mxu0 0.0
    %1125 = vmatpush1.msra.mxu0 0.0
    %1126 = vmatprep.subr.mxu0 0.0
    %1127 = vmatpush1.msra.mxu0 0.0
    %1128 = vmatprep.subr.mxu0 0.0
    %1129 = vmatpush1.msra.mxu0 0.0
    %1130 = vmatprep.subr.mxu0 0.0
    %1131 = vmatpush1.msra.mxu0 0.0
    %1132 = vmatprep.subr.mxu0 0.0
    %1133 = vmatpush1.msra.mxu0 0.0
    %1134 = vmatprep.subr.mxu0 0.0
    %1135 = vmatpush1.msra.mxu0 0.0
    %1136 = vmatprep.subr.mxu0 0.0
    %1137 = vmatpush1.msra.mxu0 0.0
    %1138 = vmatprep.subr.mxu0 0.0
    %1139 = vmatpush1.msra.mxu0 0.0
    %1140 = vmatprep.subr.mxu0 0.0
    %1141 = vmatpush1.msra.mxu0 0.0
    %1142 = vmatprep.subr.mxu0 0.0
    %1143 = vmatpush1.msra.mxu0 0.0
    %1144 = vmatprep.mubr.f32.mxu0 0.0
    %1145 = vmatmul.mubr.f32.gmra.mrb[0].mxu0 %v1007
    %v1146 = vpop.f32.mrb[0].mxu0
    %v1147 = vadd.f32 0.0, %v1146
    %v1148 = vpop.f32.mrb[0].mxu0
    %1149 = vdwg.mxu0
    %v1150 = vadd.f32 %v213, %v1147
    %v1151 = vtanh.pop %v1150
    %v1152 = vmul.f32 %v1151, 0.5
    %v1153 = vadd.f32 %v1152, 0.5
    %v1154 = vmul.f32 %v1153, %v997
    %1156 = vrot.lane.b32.xlu0 %v1151, 32
    %v1157 = vpop.permute.xlu0 %1156
    %v1159 = vmul.f32 %v1153, %v1157
    %1161 = vrot.lane.b32.xlu0 %v1159, 32
    %v1162 = vpop.permute.xlu0 %1161
    %v1164 = vadd.f32 %v1154, %v1162
    %v1165 = vtanh.pop %v1164
    %1167 = vrot.lane.b32.xlu0 %v1165, 32
    %v1168 = vpop.permute.xlu0 %1167
    %v1170 = vmul.f32 %v1153, %v1168
    %1172 = vrot.lane.b32.xlu0 %v1170, 64
    %v1173 = vpop.permute.xlu0 %1172
    %v1174 = vsel %vm241, %v1173, 0
    %1176 = vmatprep.subr.mxu0 0.0
    %1177 = vmatpush1.msra.mxu0 %v85
    %1178 = vmatprep.subr.mxu0 0.0
    %1179 = vmatpush1.msra.mxu0 %v86
    %1180 = vmatprep.subr.mxu0 0.0
    %1181 = vmatpush1.msra.mxu0 %v87
    %1182 = vmatprep.subr.mxu0 0.0
    %1183 = vmatpush1.msra.mxu0 %v88
    %1184 = vmatprep.subr.mxu0 0.0
    %1185 = vmatpush1.msra.mxu0 0.0
    %1186 = vmatprep.subr.mxu0 0.0
    %1187 = vmatpush1.msra.mxu0 0.0
    %1188 = vmatprep.subr.mxu0 0.0
    %1189 = vmatpush1.msra.mxu0 0.0
    %1190 = vmatprep.subr.mxu0 0.0
    %1191 = vmatpush1.msra.mxu0 0.0
    %1192 = vmatprep.subr.mxu0 0.0
    %1193 = vmatpush1.msra.mxu0 0.0
    %1194 = vmatprep.subr.mxu0 0.0
    %1195 = vmatpush1.msra.mxu0 0.0
    %1196 = vmatprep.subr.mxu0 0.0
    %1197 = vmatpush1.msra.mxu0 0.0
    %1198 = vmatprep.subr.mxu0 0.0
    %1199 = vmatpush1.msra.mxu0 0.0
    %1200 = vmatprep.subr.mxu0 0.0
    %1201 = vmatpush1.msra.mxu0 0.0
    %1202 = vmatprep.subr.mxu0 0.0
    %1203 = vmatpush1.msra.mxu0 0.0
    %1204 = vmatprep.subr.mxu0 0.0
    %1205 = vmatpush1.msra.mxu0 0.0
    %1206 = vmatprep.subr.mxu0 0.0
    %1207 = vmatpush1.msra.mxu0 0.0
    %1208 = vmatprep.subr.mxu0 0.0
    %1209 = vmatpush1.msra.mxu0 0.0
    %1210 = vmatprep.subr.mxu0 0.0
    %1211 = vmatpush1.msra.mxu0 0.0
    %1212 = vmatprep.subr.mxu0 0.0
    %1213 = vmatpush1.msra.mxu0 0.0
    %1214 = vmatprep.subr.mxu0 0.0
    %1215 = vmatpush1.msra.mxu0 0.0
    %1216 = vmatprep.subr.mxu0 0.0
    %1217 = vmatpush1.msra.mxu0 0.0
    %1218 = vmatprep.subr.mxu0 0.0
    %1219 = vmatpush1.msra.mxu0 0.0
    %1220 = vmatprep.subr.mxu0 0.0
    %1221 = vmatpush1.msra.mxu0 0.0
    %1222 = vmatprep.subr.mxu0 0.0
    %1223 = vmatpush1.msra.mxu0 0.0
    %1224 = vmatprep.subr.mxu0 0.0
    %1225 = vmatpush1.msra.mxu0 0.0
    %1226 = vmatprep.subr.mxu0 0.0
    %1227 = vmatpush1.msra.mxu0 0.0
    %1228 = vmatprep.subr.mxu0 0.0
    %1229 = vmatpush1.msra.mxu0 0.0
    %1230 = vmatprep.subr.mxu0 0.0
    %1231 = vmatpush1.msra.mxu0 0.0
    %1232 = vmatprep.subr.mxu0 0.0
    %1233 = vmatpush1.msra.mxu0 0.0
    %1234 = vmatprep.subr.mxu0 0.0
    %1235 = vmatpush1.msra.mxu0 0.0
    %1236 = vmatprep.subr.mxu0 0.0
    %1237 = vmatpush1.msra.mxu0 0.0
    %1238 = vmatprep.subr.mxu0 0.0
    %1239 = vmatpush1.msra.mxu0 0.0
    %1240 = vmatprep.mubr.f32.mxu0 0.0
    %1241 = vmatmul.mubr.f32.gmra.mrb[0].mxu0 %v1174
    %v1242 = vpop.f32.mrb[0].mxu0
    %v1243 = vadd.f32 %v94, %v1242
    %v1244 = vpop.f32.mrb[0].mxu0
    %1245 = vdwg.mxu0
    %1246 = vst.msk [vmem:[#allocation2 + $0x10] sm:$0xff] %vm241, %v1243
    %1247 = vmatprep.subr.mxu0 0.0
    %1248 = vmatpush1.msra.mxu0 %v81
    %1249 = vmatprep.subr.mxu0 0.0
    %1250 = vmatpush1.msra.mxu0 %v82
    %1251 = vmatprep.subr.mxu0 0.0
    %1252 = vmatpush1.msra.mxu0 %v83
    %1253 = vmatprep.subr.mxu0 0.0
    %1254 = vmatpush1.msra.mxu0 %v84
    %1255 = vmatprep.subr.mxu0 0.0
    %1256 = vmatpush1.msra.mxu0 0.0
    %1257 = vmatprep.subr.mxu0 0.0
    %1258 = vmatpush1.msra.mxu0 0.0
    %1259 = vmatprep.subr.mxu0 0.0
    %1260 = vmatpush1.msra.mxu0 0.0
    %1261 = vmatprep.subr.mxu0 0.0
    %1262 = vmatpush1.msra.mxu0 0.0
    %1263 = vmatprep.subr.mxu0 0.0
    %1264 = vmatpush1.msra.mxu0 0.0
    %1265 = vmatprep.subr.mxu0 0.0
    %1266 = vmatpush1.msra.mxu0 0.0
    %1267 = vmatprep.subr.mxu0 0.0
    %1268 = vmatpush1.msra.mxu0 0.0
    %1269 = vmatprep.subr.mxu0 0.0
    %1270 = vmatpush1.msra.mxu0 0.0
    %1271 = vmatprep.subr.mxu0 0.0
    %1272 = vmatpush1.msra.mxu0 0.0
    %1273 = vmatprep.subr.mxu0 0.0
    %1274 = vmatpush1.msra.mxu0 0.0
    %1275 = vmatprep.subr.mxu0 0.0
    %1276 = vmatpush1.msra.mxu0 0.0
    %1277 = vmatprep.subr.mxu0 0.0
    %1278 = vmatpush1.msra.mxu0 0.0
    %1279 = vmatprep.subr.mxu0 0.0
    %1280 = vmatpush1.msra.mxu0 0.0
    %1281 = vmatprep.subr.mxu0 0.0
    %1282 = vmatpush1.msra.mxu0 0.0
    %1283 = vmatprep.subr.mxu0 0.0
    %1284 = vmatpush1.msra.mxu0 0.0
    %1285 = vmatprep.subr.mxu0 0.0
    %1286 = vmatpush1.msra.mxu0 0.0
    %1287 = vmatprep.subr.mxu0 0.0
    %1288 = vmatpush1.msra.mxu0 0.0
    %1289 = vmatprep.subr.mxu0 0.0
    %1290 = vmatpush1.msra.mxu0 0.0
    %1291 = vmatprep.subr.mxu0 0.0
    %1292 = vmatpush1.msra.mxu0 0.0
    %1293 = vmatprep.subr.mxu0 0.0
    %1294 = vmatpush1.msra.mxu0 0.0
    %1295 = vmatprep.subr.mxu0 0.0
    %1296 = vmatpush1.msra.mxu0 0.0
    %1297 = vmatprep.subr.mxu0 0.0
    %1298 = vmatpush1.msra.mxu0 0.0
    %1299 = vmatprep.subr.mxu0 0.0
    %1300 = vmatpush1.msra.mxu0 0.0
    %1301 = vmatprep.subr.mxu0 0.0
    %1302 = vmatpush1.msra.mxu0 0.0
    %1303 = vmatprep.subr.mxu0 0.0
    %1304 = vmatpush1.msra.mxu0 0.0
    %1305 = vmatprep.subr.mxu0 0.0
    %1306 = vmatpush1.msra.mxu0 0.0
    %1307 = vmatprep.subr.mxu0 0.0
    %1308 = vmatpush1.msra.mxu0 0.0
    %1309 = vmatprep.subr.mxu0 0.0
    %1310 = vmatpush1.msra.mxu0 0.0
    %1311 = vmatprep.mubr.f32.mxu0 0.0
    %1312 = vmatmul.mubr.f32.gmra.mrb[0].mxu0 %v1174
    %v1313 = vpop.f32.mrb[0].mxu0
    %v1314 = vadd.f32 0.0, %v1313
    %v1315 = vpop.f32.mrb[0].mxu0
    %1316 = vdwg.mxu0
    %v1317 = vadd.f32 %v208, %v1314
    %v1318 = vtanh.pop %v1317
    %v1319 = vmul.f32 %v1318, 0.5
    %v1320 = vadd.f32 %v1319, 0.5
    %v1321 = vmul.f32 %v1320, %v1164
    %1323 = vrot.lane.b32.xlu0 %v1318, 32
    %v1324 = vpop.permute.xlu0 %1323
    %v1326 = vmul.f32 %v1320, %v1324
    %1328 = vrot.lane.b32.xlu0 %v1326, 32
    %v1329 = vpop.permute.xlu0 %1328
    %v1331 = vadd.f32 %v1321, %v1329
    %v1332 = vtanh.pop %v1331
    %1334 = vrot.lane.b32.xlu0 %v1332, 32
    %v1335 = vpop.permute.xlu0 %1334
    %v1337 = vmul.f32 %v1320, %v1335
    %1339 = vrot.lane.b32.xlu0 %v1337, 64
    %v1340 = vpop.permute.xlu0 %1339
    %v1341 = vsel %vm241, %v1340, 0
    %1343 = vmatprep.subr.mxu0 0.0
    %1344 = vmatpush1.msra.mxu0 %v85
    %1345 = vmatprep.subr.mxu0 0.0
    %1346 = vmatpush1.msra.mxu0 %v86
    %1347 = vmatprep.subr.mxu0 0.0
    %1348 = vmatpush1.msra.mxu0 %v87
    %1349 = vmatprep.subr.mxu0 0.0
    %1350 = vmatpush1.msra.mxu0 %v88
    %1351 = vmatprep.subr.mxu0 0.0
    %1352 = vmatpush1.msra.mxu0 0.0
    %1353 = vmatprep.subr.mxu0 0.0
    %1354 = vmatpush1.msra.mxu0 0.0
    %1355 = vmatprep.subr.mxu0 0.0
    %1356 = vmatpush1.msra.mxu0 0.0
    %1357 = vmatprep.subr.mxu0 0.0
    %1358 = vmatpush1.msra.mxu0 0.0
    %1359 = vmatprep.subr.mxu0 0.0
    %1360 = vmatpush1.msra.mxu0 0.0
    %1361 = vmatprep.subr.mxu0 0.0
    %1362 = vmatpush1.msra.mxu0 0.0
    %1363 = vmatprep.subr.mxu0 0.0
    %1364 = vmatpush1.msra.mxu0 0.0
    %1365 = vmatprep.subr.mxu0 0.0
    %1366 = vmatpush1.msra.mxu0 0.0
    %1367 = vmatprep.subr.mxu0 0.0
    %1368 = vmatpush1.msra.mxu0 0.0
    %1369 = vmatprep.subr.mxu0 0.0
    %1370 = vmatpush1.msra.mxu0 0.0
    %1371 = vmatprep.subr.mxu0 0.0
    %1372 = vmatpush1.msra.mxu0 0.0
    %1373 = vmatprep.subr.mxu0 0.0
    %1374 = vmatpush1.msra.mxu0 0.0
    %1375 = vmatprep.subr.mxu0 0.0
    %1376 = vmatpush1.msra.mxu0 0.0
    %1377 = vmatprep.subr.mxu0 0.0
    %1378 = vmatpush1.msra.mxu0 0.0
    %1379 = vmatprep.subr.mxu0 0.0
    %1380 = vmatpush1.msra.mxu0 0.0
    %1381 = vmatprep.subr.mxu0 0.0
    %1382 = vmatpush1.msra.mxu0 0.0
    %1383 = vmatprep.subr.mxu0 0.0
    %1384 = vmatpush1.msra.mxu0 0.0
    %1385 = vmatprep.subr.mxu0 0.0
    %1386 = vmatpush1.msra.mxu0 0.0
    %1387 = vmatprep.subr.mxu0 0.0
    %1388 = vmatpush1.msra.mxu0 0.0
    %1389 = vmatprep.subr.mxu0 0.0
    %1390 = vmatpush1.msra.mxu0 0.0
    %1391 = vmatprep.subr.mxu0 0.0
    %1392 = vmatpush1.msra.mxu0 0.0
    %1393 = vmatprep.subr.mxu0 0.0
    %1394 = vmatpush1.msra.mxu0 0.0
    %1395 = vmatprep.subr.mxu0 0.0
    %1396 = vmatpush1.msra.mxu0 0.0
    %1397 = vmatprep.subr.mxu0 0.0
    %1398 = vmatpush1.msra.mxu0 0.0
    %1399 = vmatprep.subr.mxu0 0.0
    %1400 = vmatpush1.msra.mxu0 0.0
    %1401 = vmatprep.subr.mxu0 0.0
    %1402 = vmatpush1.msra.mxu0 0.0
    %1403 = vmatprep.subr.mxu0 0.0
    %1404 = vmatpush1.msra.mxu0 0.0
    %1405 = vmatprep.subr.mxu0 0.0
    %1406 = vmatpush1.msra.mxu0 0.0
    %1407 = vmatprep.mubr.f32.mxu0 0.0
    %1408 = vmatmul.mubr.f32.gmra.mrb[0].mxu0 %v1341
    %v1409 = vpop.f32.mrb[0].mxu0
    %v1410 = vadd.f32 %v94, %v1409
    %v1411 = vpop.f32.mrb[0].mxu0
    %1412 = vdwg.mxu0
    %1413 = vst.msk [vmem:[#allocation2 + $0x8] sm:$0xff] %vm241, %v1410
    %1414 = vmatprep.subr.mxu0 0.0
    %1415 = vmatpush1.msra.mxu0 %v81
    %1416 = vmatprep.subr.mxu0 0.0
    %1417 = vmatpush1.msra.mxu0 %v82
    %1418 = vmatprep.subr.mxu0 0.0
    %1419 = vmatpush1.msra.mxu0 %v83
    %1420 = vmatprep.subr.mxu0 0.0
    %1421 = vmatpush1.msra.mxu0 %v84
    %1422 = vmatprep.subr.mxu0 0.0
    %1423 = vmatpush1.msra.mxu0 0.0
    %1424 = vmatprep.subr.mxu0 0.0
    %1425 = vmatpush1.msra.mxu0 0.0
    %1426 = vmatprep.subr.mxu0 0.0
    %1427 = vmatpush1.msra.mxu0 0.0
    %1428 = vmatprep.subr.mxu0 0.0
    %1429 = vmatpush1.msra.mxu0 0.0
    %1430 = vmatprep.subr.mxu0 0.0
    %1431 = vmatpush1.msra.mxu0 0.0
    %1432 = vmatprep.subr.mxu0 0.0
    %1433 = vmatpush1.msra.mxu0 0.0
    %1434 = vmatprep.subr.mxu0 0.0
    %1435 = vmatpush1.msra.mxu0 0.0
    %1436 = vmatprep.subr.mxu0 0.0
    %1437 = vmatpush1.msra.mxu0 0.0
    %1438 = vmatprep.subr.mxu0 0.0
    %1439 = vmatpush1.msra.mxu0 0.0
    %1440 = vmatprep.subr.mxu0 0.0
    %1441 = vmatpush1.msra.mxu0 0.0
    %1442 = vmatprep.subr.mxu0 0.0
    %1443 = vmatpush1.msra.mxu0 0.0
    %1444 = vmatprep.subr.mxu0 0.0
    %1445 = vmatpush1.msra.mxu0 0.0
    %1446 = vmatprep.subr.mxu0 0.0
    %1447 = vmatpush1.msra.mxu0 0.0
    %1448 = vmatprep.subr.mxu0 0.0
    %1449 = vmatpush1.msra.mxu0 0.0
    %1450 = vmatprep.subr.mxu0 0.0
    %1451 = vmatpush1.msra.mxu0 0.0
    %1452 = vmatprep.subr.mxu0 0.0
    %1453 = vmatpush1.msra.mxu0 0.0
    %1454 = vmatprep.subr.mxu0 0.0
    %1455 = vmatpush1.msra.mxu0 0.0
    %1456 = vmatprep.subr.mxu0 0.0
    %1457 = vmatpush1.msra.mxu0 0.0
    %1458 = vmatprep.subr.mxu0 0.0
    %1459 = vmatpush1.msra.mxu0 0.0
    %1460 = vmatprep.subr.mxu0 0.0
    %1461 = vmatpush1.msra.mxu0 0.0
    %1462 = vmatprep.subr.mxu0 0.0
    %1463 = vmatpush1.msra.mxu0 0.0
    %1464 = vmatprep.subr.mxu0 0.0
    %1465 = vmatpush1.msra.mxu0 0.0
    %1466 = vmatprep.subr.mxu0 0.0
    %1467 = vmatpush1.msra.mxu0 0.0
    %1468 = vmatprep.subr.mxu0 0.0
    %1469 = vmatpush1.msra.mxu0 0.0
    %1470 = vmatprep.subr.mxu0 0.0
    %1471 = vmatpush1.msra.mxu0 0.0
    %1472 = vmatprep.subr.mxu0 0.0
    %1473 = vmatpush1.msra.mxu0 0.0
    %1474 = vmatprep.subr.mxu0 0.0
    %1475 = vmatpush1.msra.mxu0 0.0
    %1476 = vmatprep.subr.mxu0 0.0
    %1477 = vmatpush1.msra.mxu0 0.0
    %1478 = vmatprep.mubr.f32.mxu0 0.0
    %1479 = vmatmul.mubr.f32.gmra.mrb[0].mxu0 %v1341
    %v1480 = vpop.f32.mrb[0].mxu0
    %v1481 = vadd.f32 0.0, %v1480
    %v1482 = vpop.f32.mrb[0].mxu0
    %1483 = vdwg.mxu0
    %v1484 = vadd.f32 %v203, %v1481
    %v1485 = vtanh.pop %v1484
    %v1486 = vmul.f32 %v1485, 0.5
    %v1487 = vadd.f32 %v1486, 0.5
    %v1488 = vmul.f32 %v1487, %v1331
    %1490 = vrot.lane.b32.xlu0 %v1485, 32
    %v1491 = vpop.permute.xlu0 %1490
    %v1493 = vmul.f32 %v1487, %v1491
    %1495 = vrot.lane.b32.xlu0 %v1493, 32
    %v1496 = vpop.permute.xlu0 %1495
    %v1498 = vadd.f32 %v1488, %v1496
    %v1499 = vtanh.pop %v1498
    %1501 = vrot.lane.b32.xlu0 %v1499, 32
    %v1502 = vpop.permute.xlu0 %1501
    %v1504 = vmul.f32 %v1487, %v1502
    %1506 = vrot.lane.b32.xlu0 %v1504, 64
    %v1507 = vpop.permute.xlu0 %1506
    %v1508 = vsel %vm241, %v1507, 0
    %1510 = vmatprep.subr.mxu0 0.0
    %1511 = vmatpush1.msra.mxu0 %v85
    %1512 = vmatprep.subr.mxu0 0.0
    %1513 = vmatpush1.msra.mxu0 %v86
    %1514 = vmatprep.subr.mxu0 0.0
    %1515 = vmatpush1.msra.mxu0 %v87
    %1516 = vmatprep.subr.mxu0 0.0
    %1517 = vmatpush1.msra.mxu0 %v88
    %1518 = vmatprep.subr.mxu0 0.0
    %1519 = vmatpush1.msra.mxu0 0.0
    %1520 = vmatprep.subr.mxu0 0.0
    %1521 = vmatpush1.msra.mxu0 0.0
    %1522 = vmatprep.subr.mxu0 0.0
    %1523 = vmatpush1.msra.mxu0 0.0
    %1524 = vmatprep.subr.mxu0 0.0
    %1525 = vmatpush1.msra.mxu0 0.0
    %1526 = vmatprep.subr.mxu0 0.0
    %1527 = vmatpush1.msra.mxu0 0.0
    %1528 = vmatprep.subr.mxu0 0.0
    %1529 = vmatpush1.msra.mxu0 0.0
    %1530 = vmatprep.subr.mxu0 0.0
    %1531 = vmatpush1.msra.mxu0 0.0
    %1532 = vmatprep.subr.mxu0 0.0
    %1533 = vmatpush1.msra.mxu0 0.0
    %1534 = vmatprep.subr.mxu0 0.0
    %1535 = vmatpush1.msra.mxu0 0.0
    %1536 = vmatprep.subr.mxu0 0.0
    %1537 = vmatpush1.msra.mxu0 0.0
    %1538 = vmatprep.subr.mxu0 0.0
    %1539 = vmatpush1.msra.mxu0 0.0
    %1540 = vmatprep.subr.mxu0 0.0
    %1541 = vmatpush1.msra.mxu0 0.0
    %1542 = vmatprep.subr.mxu0 0.0
    %1543 = vmatpush1.msra.mxu0 0.0
    %1544 = vmatprep.subr.mxu0 0.0
    %1545 = vmatpush1.msra.mxu0 0.0
    %1546 = vmatprep.subr.mxu0 0.0
    %1547 = vmatpush1.msra.mxu0 0.0
    %1548 = vmatprep.subr.mxu0 0.0
    %1549 = vmatpush1.msra.mxu0 0.0
    %1550 = vmatprep.subr.mxu0 0.0
    %1551 = vmatpush1.msra.mxu0 0.0
    %1552 = vmatprep.subr.mxu0 0.0
    %1553 = vmatpush1.msra.mxu0 0.0
    %1554 = vmatprep.subr.mxu0 0.0
    %1555 = vmatpush1.msra.mxu0 0.0
    %1556 = vmatprep.subr.mxu0 0.0
    %1557 = vmatpush1.msra.mxu0 0.0
    %1558 = vmatprep.subr.mxu0 0.0
    %1559 = vmatpush1.msra.mxu0 0.0
    %1560 = vmatprep.subr.mxu0 0.0
    %1561 = vmatpush1.msra.mxu0 0.0
    %1562 = vmatprep.subr.mxu0 0.0
    %1563 = vmatpush1.msra.mxu0 0.0
    %1564 = vmatprep.subr.mxu0 0.0
    %1565 = vmatpush1.msra.mxu0 0.0
    %1566 = vmatprep.subr.mxu0 0.0
    %1567 = vmatpush1.msra.mxu0 0.0
    %1568 = vmatprep.subr.mxu0 0.0
    %1569 = vmatpush1.msra.mxu0 0.0
    %1570 = vmatprep.subr.mxu0 0.0
    %1571 = vmatpush1.msra.mxu0 0.0
    %1572 = vmatprep.subr.mxu0 0.0
    %1573 = vmatpush1.msra.mxu0 0.0
    %1574 = vmatprep.mubr.f32.mxu0 0.0
    %1575 = vmatmul.mubr.f32.gmra.mrb[0].mxu0 %v1508
    %v1576 = vpop.f32.mrb[0].mxu0
    %v1577 = vadd.f32 %v94, %v1576
    %v1578 = vpop.f32.mrb[0].mxu0
    %1579 = vdwg.mxu0
    %1580 = vst.msk [vmem:[#allocation2] sm:$0xff] %vm241, %v1577
    %v1581 = vld [vmem:[%s7] sm:$0xff]
    %v1582 = vld [vmem:[%s7 + $0x8] sm:$0xff]
    %v1583 = vld [vmem:[%s7 + $0x10] sm:$0xff]
    %v1584 = vld [vmem:[%s7 + $0x18] sm:$0xff]
    %v1585 = vld [vmem:[%s7 + $0x20] sm:$0xff]
    %v1586 = vld [vmem:[%s7 + $0x28] sm:$0xff]
    %v1587 = vld [vmem:[%s9] sm:$0xff]
    %v1588 = vld [vmem:[%s9 + $0x8] sm:$0xff]
    %v1589 = vld [vmem:[%s9 + $0x10] sm:$0xff]
    %v1590 = vld [vmem:[%s9 + $0x18] sm:$0xff]
    %v1591 = vld [vmem:[%s10] sm:$0xff]
    %v1592 = vld [vmem:[%s10 + $0x8] sm:$0xff]
    %v1593 = vld [vmem:[%s10 + $0x10] sm:$0xff]
    %v1594 = vld [vmem:[%s10 + $0x18] sm:$0xff]
    %v1595 = vld [vmem:[%s12] sm:$0xff]
    %v1596 = vld [vmem:[%s12 + $0x8] sm:$0xff]
    %v1597 = vld [vmem:[%s12 + $0x10] sm:$0xff]
    %v1598 = vld [vmem:[%s12 + $0x18] sm:$0xff]
    %v1599 = vld [vmem:[%s12 + $0x20] sm:$0xff]
    %v1600 = vld [vmem:[%s12 + $0x28] sm:$0xff]
    %v1601 = vld [vmem:[#allocation6] sm:$0x1]
    %v1603 = vlaneseq
    %v1604 = vshrl.u32 %v1603, 7
    %v1605 = vsub.s32 0, %v1604
    %v1606 = vrot.slane %v1601, %v1605
    %v1608 = vld [vmem:[%s13] sm:$0x1]
    %v1610 = vlaneseq
    %v1611 = vshrl.u32 %v1610, 7
    %v1612 = vsub.s32 0, %v1611
    %v1613 = vrot.slane %v1608, %v1612
    %v1615 = vld [vmem:[%s11] sm:$0x1]
    %v1617 = vlaneseq
    %v1618 = vshrl.u32 %v1617, 7
    %v1619 = vsub.s32 0, %v1618
    %v1620 = vrot.slane %v1615, %v1619
    %vm1622 = vcmask 392192
    %v1623 = vsel %vm1622, 0.0, 0
    %1625 = vmatprep.subr.mxu0 0.0
    %1626 = vmatpush1.msra.mxu0 %v1581
    %1627 = vmatprep.subr.mxu0 0.0
    %1628 = vmatpush1.msra.mxu0 %v1582
    %1629 = vmatprep.subr.mxu0 0.0
    %1630 = vmatpush1.msra.mxu0 %v1583
    %1631 = vmatprep.subr.mxu0 0.0
    %1632 = vmatpush1.msra.mxu0 %v1584
    %1633 = vmatprep.subr.mxu0 0.0
    %1634 = vmatpush1.msra.mxu0 %v1585
    %1635 = vmatprep.subr.mxu0 0.0
    %1636 = vmatpush1.msra.mxu0 %v1586
    %1637 = vmatprep.subr.mxu0 0.0
    %1638 = vmatpush1.msra.mxu0 0.0
    %1639 = vmatprep.subr.mxu0 0.0
    %1640 = vmatpush1.msra.mxu0 0.0
    %1641 = vmatprep.subr.mxu0 0.0
    %1642 = vmatpush1.msra.mxu0 0.0
    %1643 = vmatprep.subr.mxu0 0.0
    %1644 = vmatpush1.msra.mxu0 0.0
    %1645 = vmatprep.subr.mxu0 0.0
    %1646 = vmatpush1.msra.mxu0 0.0
    %1647 = vmatprep.subr.mxu0 0.0
    %1648 = vmatpush1.msra.mxu0 0.0
    %1649 = vmatprep.subr.mxu0 0.0
    %1650 = vmatpush1.msra.mxu0 0.0
    %1651 = vmatprep.subr.mxu0 0.0
    %1652 = vmatpush1.msra.mxu0 0.0
    %1653 = vmatprep.subr.mxu0 0.0
    %1654 = vmatpush1.msra.mxu0 0.0
    %1655 = vmatprep.subr.mxu0 0.0
    %1656 = vmatpush1.msra.mxu0 0.0
    %1657 = vmatprep.subr.mxu0 0.0
    %1658 = vmatpush1.msra.mxu0 0.0
    %1659 = vmatprep.subr.mxu0 0.0
    %1660 = vmatpush1.msra.mxu0 0.0
    %1661 = vmatprep.subr.mxu0 0.0
    %1662 = vmatpush1.msra.mxu0 0.0
    %1663 = vmatprep.subr.mxu0 0.0
    %1664 = vmatpush1.msra.mxu0 0.0
    %1665 = vmatprep.subr.mxu0 0.0
    %1666 = vmatpush1.msra.mxu0 0.0
    %1667 = vmatprep.subr.mxu0 0.0
    %1668 = vmatpush1.msra.mxu0 0.0
    %1669 = vmatprep.subr.mxu0 0.0
    %1670 = vmatpush1.msra.mxu0 0.0
    %1671 = vmatprep.subr.mxu0 0.0
    %1672 = vmatpush1.msra.mxu0 0.0
    %1673 = vmatprep.subr.mxu0 0.0
    %1674 = vmatpush1.msra.mxu0 0.0
    %1675 = vmatprep.subr.mxu0 0.0
    %1676 = vmatpush1.msra.mxu0 0.0
    %1677 = vmatprep.subr.mxu0 0.0
    %1678 = vmatpush1.msra.mxu0 0.0
    %1679 = vmatprep.subr.mxu0 0.0
    %1680 = vmatpush1.msra.mxu0 0.0
    %1681 = vmatprep.subr.mxu0 0.0
    %1682 = vmatpush1.msra.mxu0 0.0
    %1683 = vmatprep.subr.mxu0 0.0
    %1684 = vmatpush1.msra.mxu0 0.0
    %1685 = vmatprep.subr.mxu0 0.0
    %1686 = vmatpush1.msra.mxu0 0.0
    %1687 = vmatprep.subr.mxu0 0.0
    %1688 = vmatpush1.msra.mxu0 0.0
    %1689 = vmatprep.mubr.f32.mxu0 0.0
    %1690 = vmatmul.mubr.f32.gmra.mrb[0].mxu0 %v1623
    %v1691 = vpop.f32.mrb[0].mxu0
    %v1692 = vadd.f32 %v1606, %v1691
    %v1693 = vpop.f32.mrb[0].mxu0
    %1694 = vdwg.mxu0
    %v1695 = vtanh.pop %v1692
    %v1696 = vmul.f32 %v1695, 0.5
    %v1697 = vadd.f32 %v1696, 0.5
    %v1698 = vmul.f32 %v1697, 0.0
    %1700 = vrot.lane.b32.xlu0 %v1695, 32
    %v1701 = vpop.permute.xlu0 %1700
    %v1703 = vmul.f32 %v1697, %v1701
    %1705 = vrot.lane.b32.xlu0 %v1703, 32
    %v1706 = vpop.permute.xlu0 %1705
    %v1708 = vadd.f32 %v1698, %v1706
    %v1709 = vtanh.pop %v1708
    %1711 = vrot.lane.b32.xlu0 %v1709, 32
    %v1712 = vpop.permute.xlu0 %1711
    %v1714 = vmul.f32 %v1697, %v1712
    %v1715 = vld [vmem:[#allocation2] sm:$0xff]
    %1717 = vrot.lane.b32.xlu0 %v1714, 64
    %v1718 = vpop.permute.xlu0 %1717
    %v1719 = vsel %vm241, %v1718, 0
    %1721 = vmatprep.subr.mxu0 0.0
    %1722 = vmatpush1.msra.mxu0 %v1587
    %1723 = vmatprep.subr.mxu0 0.0
    %1724 = vmatpush1.msra.mxu0 %v1588
    %1725 = vmatprep.subr.mxu0 0.0
    %1726 = vmatpush1.msra.mxu0 %v1589
    %1727 = vmatprep.subr.mxu0 0.0
    %1728 = vmatpush1.msra.mxu0 %v1590
    %1729 = vmatprep.subr.mxu0 0.0
    %1730 = vmatpush1.msra.mxu0 0.0
    %1731 = vmatprep.subr.mxu0 0.0
    %1732 = vmatpush1.msra.mxu0 0.0
    %1733 = vmatprep.subr.mxu0 0.0
    %1734 = vmatpush1.msra.mxu0 0.0
    %1735 = vmatprep.subr.mxu0 0.0
    %1736 = vmatpush1.msra.mxu0 0.0
    %1737 = vmatprep.subr.mxu0 0.0
    %1738 = vmatpush1.msra.mxu0 0.0
    %1739 = vmatprep.subr.mxu0 0.0
    %1740 = vmatpush1.msra.mxu0 0.0
    %1741 = vmatprep.subr.mxu0 0.0
    %1742 = vmatpush1.msra.mxu0 0.0
    %1743 = vmatprep.subr.mxu0 0.0
    %1744 = vmatpush1.msra.mxu0 0.0
    %1745 = vmatprep.subr.mxu0 0.0
    %1746 = vmatpush1.msra.mxu0 0.0
    %1747 = vmatprep.subr.mxu0 0.0
    %1748 = vmatpush1.msra.mxu0 0.0
    %1749 = vmatprep.subr.mxu0 0.0
    %1750 = vmatpush1.msra.mxu0 0.0
    %1751 = vmatprep.subr.mxu0 0.0
    %1752 = vmatpush1.msra.mxu0 0.0
    %1753 = vmatprep.subr.mxu0 0.0
    %1754 = vmatpush1.msra.mxu0 0.0
    %1755 = vmatprep.subr.mxu0 0.0
    %1756 = vmatpush1.msra.mxu0 0.0
    %1757 = vmatprep.subr.mxu0 0.0
    %1758 = vmatpush1.msra.mxu0 0.0
    %1759 = vmatprep.subr.mxu0 0.0
    %1760 = vmatpush1.msra.mxu0 0.0
    %1761 = vmatprep.subr.mxu0 0.0
    %1762 = vmatpush1.msra.mxu0 0.0
    %1763 = vmatprep.subr.mxu0 0.0
    %1764 = vmatpush1.msra.mxu0 0.0
    %1765 = vmatprep.subr.mxu0 0.0
    %1766 = vmatpush1.msra.mxu0 0.0
    %1767 = vmatprep.subr.mxu0 0.0
    %1768 = vmatpush1.msra.mxu0 0.0
    %1769 = vmatprep.subr.mxu0 0.0
    %1770 = vmatpush1.msra.mxu0 0.0
    %1771 = vmatprep.subr.mxu0 0.0
    %1772 = vmatpush1.msra.mxu0 0.0
    %1773 = vmatprep.subr.mxu0 0.0
    %1774 = vmatpush1.msra.mxu0 0.0
    %1775 = vmatprep.subr.mxu0 0.0
    %1776 = vmatpush1.msra.mxu0 0.0
    %1777 = vmatprep.subr.mxu0 0.0
    %1778 = vmatpush1.msra.mxu0 0.0
    %1779 = vmatprep.subr.mxu0 0.0
    %1780 = vmatpush1.msra.mxu0 0.0
    %1781 = vmatprep.subr.mxu0 0.0
    %1782 = vmatpush1.msra.mxu0 0.0
    %1783 = vmatprep.subr.mxu0 0.0
    %1784 = vmatpush1.msra.mxu0 0.0
    %1785 = vmatprep.mubr.f32.mxu0 0.0
    %1786 = vmatmul.mubr.f32.gmra.mrb[0].mxu0 %v1719
    %v1787 = vpop.f32.mrb[0].mxu0
    %v1788 = vadd.f32 0.0, %v1787
    %v1789 = vpop.f32.mrb[0].mxu0
    %1790 = vdwg.mxu0
    %v1791 = vadd.f32 %v1715, %v1788
    %v1792 = vtanh.pop %v1791
    %v1794 = vsel %vm241, %v1792, 0
    %1796 = vmatprep.subr.mxu0 0.0
    %1797 = vmatpush1.msra.mxu0 %v1591
    %1798 = vmatprep.subr.mxu0 0.0
    %1799 = vmatpush1.msra.mxu0 %v1592
    %1800 = vmatprep.subr.mxu0 0.0
    %1801 = vmatpush1.msra.mxu0 %v1593
    %1802 = vmatprep.subr.mxu0 0.0
    %1803 = vmatpush1.msra.mxu0 %v1594
    %1804 = vmatprep.subr.mxu0 0.0
    %1805 = vmatpush1.msra.mxu0 0.0
    %1806 = vmatprep.subr.mxu0 0.0
    %1807 = vmatpush1.msra.mxu0 0.0
    %1808 = vmatprep.subr.mxu0 0.0
    %1809 = vmatpush1.msra.mxu0 0.0
    %1810 = vmatprep.subr.mxu0 0.0
    %1811 = vmatpush1.msra.mxu0 0.0
    %1812 = vmatprep.subr.mxu0 0.0
    %1813 = vmatpush1.msra.mxu0 0.0
    %1814 = vmatprep.subr.mxu0 0.0
    %1815 = vmatpush1.msra.mxu0 0.0
    %1816 = vmatprep.subr.mxu0 0.0
    %1817 = vmatpush1.msra.mxu0 0.0
    %1818 = vmatprep.subr.mxu0 0.0
    %1819 = vmatpush1.msra.mxu0 0.0
    %1820 = vmatprep.subr.mxu0 0.0
    %1821 = vmatpush1.msra.mxu0 0.0
    %1822 = vmatprep.subr.mxu0 0.0
    %1823 = vmatpush1.msra.mxu0 0.0
    %1824 = vmatprep.subr.mxu0 0.0
    %1825 = vmatpush1.msra.mxu0 0.0
    %1826 = vmatprep.subr.mxu0 0.0
    %1827 = vmatpush1.msra.mxu0 0.0
    %1828 = vmatprep.subr.mxu0 0.0
    %1829 = vmatpush1.msra.mxu0 0.0
    %1830 = vmatprep.subr.mxu0 0.0
    %1831 = vmatpush1.msra.mxu0 0.0
    %1832 = vmatprep.subr.mxu0 0.0
    %1833 = vmatpush1.msra.mxu0 0.0
    %1834 = vmatprep.subr.mxu0 0.0
    %1835 = vmatpush1.msra.mxu0 0.0
    %1836 = vmatprep.subr.mxu0 0.0
    %1837 = vmatpush1.msra.mxu0 0.0
    %1838 = vmatprep.subr.mxu0 0.0
    %1839 = vmatpush1.msra.mxu0 0.0
    %1840 = vmatprep.subr.mxu0 0.0
    %1841 = vmatpush1.msra.mxu0 0.0
    %1842 = vmatprep.subr.mxu0 0.0
    %1843 = vmatpush1.msra.mxu0 0.0
    %1844 = vmatprep.subr.mxu0 0.0
    %1845 = vmatpush1.msra.mxu0 0.0
    %1846 = vmatprep.subr.mxu0 0.0
    %1847 = vmatpush1.msra.mxu0 0.0
    %1848 = vmatprep.subr.mxu0 0.0
    %1849 = vmatpush1.msra.mxu0 0.0
    %1850 = vmatprep.subr.mxu0 0.0
    %1851 = vmatpush1.msra.mxu0 0.0
    %1852 = vmatprep.subr.mxu0 0.0
    %1853 = vmatpush1.msra.mxu0 0.0
    %1854 = vmatprep.subr.mxu0 0.0
    %1855 = vmatpush1.msra.mxu0 0.0
    %1856 = vmatprep.subr.mxu0 0.0
    %1857 = vmatpush1.msra.mxu0 0.0
    %1858 = vmatprep.subr.mxu0 0.0
    %1859 = vmatpush1.msra.mxu0 0.0
    %1860 = vmatprep.mubr.f32.mxu0 0.0
    %1861 = vmatmul.mubr.f32.gmra.mrb[0].mxu0 %v1794
    %v1862 = vpop.f32.mrb[0].mxu0
    %v1863 = vadd.f32 %v1620, %v1862
    %v1864 = vpop.f32.mrb[0].mxu0
    %1865 = vdwg.mxu0
    %v1866 = vld [vmem:[%s1] sm:$0xff]
    %v1867 = vmul.f32 %v1863, 1.442695
    %v1868 = vpow.pop %v1867
    %1870 = vrot.lane.b32.xlu0 %v1868, 112
    %v1871 = vpop.permute.xlu0 %1870
    %v1873 = vmul.f32 %v1866, %v1871
    %v1874 = vadd.f32 %v1863, %v1873
    %v1875 = vsel %vm111, %v1874, 0.0
    %v1877 = vsel %vm1622, %v1875, 0
    %1879 = vmatprep.subr.mxu0 0.0
    %1880 = vmatpush1.msra.mxu0 %v1595
    %1881 = vmatprep.subr.mxu0 0.0
    %1882 = vmatpush1.msra.mxu0 %v1596
    %1883 = vmatprep.subr.mxu0 0.0
    %1884 = vmatpush1.msra.mxu0 %v1597
    %1885 = vmatprep.subr.mxu0 0.0
    %1886 = vmatpush1.msra.mxu0 %v1598
    %1887 = vmatprep.subr.mxu0 0.0
    %1888 = vmatpush1.msra.mxu0 %v1599
    %1889 = vmatprep.subr.mxu0 0.0
    %1890 = vmatpush1.msra.mxu0 %v1600
    %1891 = vmatprep.subr.mxu0 0.0
    %1892 = vmatpush1.msra.mxu0 0.0
    %1893 = vmatprep.subr.mxu0 0.0
    %1894 = vmatpush1.msra.mxu0 0.0
    %1895 = vmatprep.subr.mxu0 0.0
    %1896 = vmatpush1.msra.mxu0 0.0
    %1897 = vmatprep.subr.mxu0 0.0
    %1898 = vmatpush1.msra.mxu0 0.0
    %1899 = vmatprep.subr.mxu0 0.0
    %1900 = vmatpush1.msra.mxu0 0.0
    %1901 = vmatprep.subr.mxu0 0.0
    %1902 = vmatpush1.msra.mxu0 0.0
    %1903 = vmatprep.subr.mxu0 0.0
    %1904 = vmatpush1.msra.mxu0 0.0
    %1905 = vmatprep.subr.mxu0 0.0
    %1906 = vmatpush1.msra.mxu0 0.0
    %1907 = vmatprep.subr.mxu0 0.0
    %1908 = vmatpush1.msra.mxu0 0.0
    %1909 = vmatprep.subr.mxu0 0.0
    %1910 = vmatpush1.msra.mxu0 0.0
    %1911 = vmatprep.subr.mxu0 0.0
    %1912 = vmatpush1.msra.mxu0 0.0
    %1913 = vmatprep.subr.mxu0 0.0
    %1914 = vmatpush1.msra.mxu0 0.0
    %1915 = vmatprep.subr.mxu0 0.0
    %1916 = vmatpush1.msra.mxu0 0.0
    %1917 = vmatprep.subr.mxu0 0.0
    %1918 = vmatpush1.msra.mxu0 0.0
    %1919 = vmatprep.subr.mxu0 0.0
    %1920 = vmatpush1.msra.mxu0 0.0
    %1921 = vmatprep.subr.mxu0 0.0
    %1922 = vmatpush1.msra.mxu0 0.0
    %1923 = vmatprep.subr.mxu0 0.0
    %1924 = vmatpush1.msra.mxu0 0.0
    %1925 = vmatprep.subr.mxu0 0.0
    %1926 = vmatpush1.msra.mxu0 0.0
    %1927 = vmatprep.subr.mxu0 0.0
    %1928 = vmatpush1.msra.mxu0 0.0
    %1929 = vmatprep.subr.mxu0 0.0
    %1930 = vmatpush1.msra.mxu0 0.0
    %1931 = vmatprep.subr.mxu0 0.0
    %1932 = vmatpush1.msra.mxu0 0.0
    %1933 = vmatprep.subr.mxu0 0.0
    %1934 = vmatpush1.msra.mxu0 0.0
    %1935 = vmatprep.subr.mxu0 0.0
    %1936 = vmatpush1.msra.mxu0 0.0
    %1937 = vmatprep.subr.mxu0 0.0
    %1938 = vmatpush1.msra.mxu0 0.0
    %1939 = vmatprep.subr.mxu0 0.0
    %1940 = vmatpush1.msra.mxu0 0.0
    %1941 = vmatprep.subr.mxu0 0.0
    %1942 = vmatpush1.msra.mxu0 0.0
    %1943 = vmatprep.mubr.f32.mxu0 0.0
    %1944 = vmatmul.mubr.f32.gmra.mrb[0].mxu0 %v1877
    %v1945 = vpop.f32.mrb[0].mxu0
    %v1946 = vadd.f32 %v1613, %v1945
    %v1947 = vpop.f32.mrb[0].mxu0
    %1948 = vdwg.mxu0
    %v1949 = vtanh.pop %v1946
    %v1950 = vmul.f32 %v1949, 0.5
    %v1951 = vadd.f32 %v1950, 0.5
    %v1952 = vmul.f32 %v1951, 0.0
    %1954 = vrot.lane.b32.xlu0 %v1949, 32
    %v1955 = vpop.permute.xlu0 %1954
    %v1957 = vmul.f32 %v1951, %v1955
    %1959 = vrot.lane.b32.xlu0 %v1957, 32
    %v1960 = vpop.permute.xlu0 %1959
    %v1962 = vadd.f32 %v1952, %v1960
    %v1963 = vtanh.pop %v1962
    %1965 = vrot.lane.b32.xlu0 %v1963, 32
    %v1966 = vpop.permute.xlu0 %1965
    %v1968 = vmul.f32 %v1951, %v1966
    %1970 = vrot.lane.b32.xlu0 %v1968, 64
    %v1971 = vpop.permute.xlu0 %1970
    %1973 = vst.msk [vmem:[#allocation3] sm:$0xff] %vm241, %v1971
    %1974 = vrot.lane.b32.xlu0 %v1714, 80
    %v1975 = vpop.permute.xlu0 %1974
    %v1977 = vsel %vm111, %v1874, %v1975
    %v1979 = vsel %vm1622, %v1977, 0
    %1981 = vmatprep.subr.mxu0 0.0
    %1982 = vmatpush1.msra.mxu0 %v1581
    %1983 = vmatprep.subr.mxu0 0.0
    %1984 = vmatpush1.msra.mxu0 %v1582
    %1985 = vmatprep.subr.mxu0 0.0
    %1986 = vmatpush1.msra.mxu0 %v1583
    %1987 = vmatprep.subr.mxu0 0.0
    %1988 = vmatpush1.msra.mxu0 %v1584
    %1989 = vmatprep.subr.mxu0 0.0
    %1990 = vmatpush1.msra.mxu0 %v1585
    %1991 = vmatprep.subr.mxu0 0.0
    %1992 = vmatpush1.msra.mxu0 %v1586
    %1993 = vmatprep.subr.mxu0 0.0
    %1994 = vmatpush1.msra.mxu0 0.0
    %1995 = vmatprep.subr.mxu0 0.0
    %1996 = vmatpush1.msra.mxu0 0.0
    %1997 = vmatprep.subr.mxu0 0.0
    %1998 = vmatpush1.msra.mxu0 0.0
    %1999 = vmatprep.subr.mxu0 0.0
    %2000 = vmatpush1.msra.mxu0 0.0
    %2001 = vmatprep.subr.mxu0 0.0
    %2002 = vmatpush1.msra.mxu0 0.0
    %2003 = vmatprep.subr.mxu0 0.0
    %2004 = vmatpush1.msra.mxu0 0.0
    %2005 = vmatprep.subr.mxu0 0.0
    %2006 = vmatpush1.msra.mxu0 0.0
    %2007 = vmatprep.subr.mxu0 0.0
    %2008 = vmatpush1.msra.mxu0 0.0
    %2009 = vmatprep.subr.mxu0 0.0
    %2010 = vmatpush1.msra.mxu0 0.0
    %2011 = vmatprep.subr.mxu0 0.0
    %2012 = vmatpush1.msra.mxu0 0.0
    %2013 = vmatprep.subr.mxu0 0.0
    %2014 = vmatpush1.msra.mxu0 0.0
    %2015 = vmatprep.subr.mxu0 0.0
    %2016 = vmatpush1.msra.mxu0 0.0
    %2017 = vmatprep.subr.mxu0 0.0
    %2018 = vmatpush1.msra.mxu0 0.0
    %2019 = vmatprep.subr.mxu0 0.0
    %2020 = vmatpush1.msra.mxu0 0.0
    %2021 = vmatprep.subr.mxu0 0.0
    %2022 = vmatpush1.msra.mxu0 0.0
    %2023 = vmatprep.subr.mxu0 0.0
    %2024 = vmatpush1.msra.mxu0 0.0
    %2025 = vmatprep.subr.mxu0 0.0
    %2026 = vmatpush1.msra.mxu0 0.0
    %2027 = vmatprep.subr.mxu0 0.0
    %2028 = vmatpush1.msra.mxu0 0.0
    %2029 = vmatprep.subr.mxu0 0.0
    %2030 = vmatpush1.msra.mxu0 0.0
    %2031 = vmatprep.subr.mxu0 0.0
    %2032 = vmatpush1.msra.mxu0 0.0
    %2033 = vmatprep.subr.mxu0 0.0
    %2034 = vmatpush1.msra.mxu0 0.0
    %2035 = vmatprep.subr.mxu0 0.0
    %2036 = vmatpush1.msra.mxu0 0.0
    %2037 = vmatprep.subr.mxu0 0.0
    %2038 = vmatpush1.msra.mxu0 0.0
    %2039 = vmatprep.subr.mxu0 0.0
    %2040 = vmatpush1.msra.mxu0 0.0
    %2041 = vmatprep.subr.mxu0 0.0
    %2042 = vmatpush1.msra.mxu0 0.0
    %2043 = vmatprep.subr.mxu0 0.0
    %2044 = vmatpush1.msra.mxu0 0.0
    %2045 = vmatprep.mubr.f32.mxu0 0.0
    %2046 = vmatmul.mubr.f32.gmra.mrb[0].mxu0 %v1979
    %v2047 = vpop.f32.mrb[0].mxu0
    %v2048 = vadd.f32 %v1606, %v2047
    %v2049 = vpop.f32.mrb[0].mxu0
    %2050 = vdwg.mxu0
    %v2051 = vtanh.pop %v2048
    %v2052 = vmul.f32 %v2051, 0.5
    %v2053 = vadd.f32 %v2052, 0.5
    %v2054 = vmul.f32 %v2053, %v1708
    %2056 = vrot.lane.b32.xlu0 %v2051, 32
    %v2057 = vpop.permute.xlu0 %2056
    %v2059 = vmul.f32 %v2053, %v2057
    %2061 = vrot.lane.b32.xlu0 %v2059, 32
    %v2062 = vpop.permute.xlu0 %2061
    %v2064 = vadd.f32 %v2054, %v2062
    %v2065 = vtanh.pop %v2064
    %2067 = vrot.lane.b32.xlu0 %v2065, 32
    %v2068 = vpop.permute.xlu0 %2067
    %v2070 = vmul.f32 %v2053, %v2068
    %v2071 = vld [vmem:[#allocation2 + $0x8] sm:$0xff]
    %2073 = vrot.lane.b32.xlu0 %v2070, 64
    %v2074 = vpop.permute.xlu0 %2073
    %v2075 = vsel %vm241, %v2074, 0
    %2077 = vmatprep.subr.mxu0 0.0
    %2078 = vmatpush1.msra.mxu0 %v1587
    %2079 = vmatprep.subr.mxu0 0.0
    %2080 = vmatpush1.msra.mxu0 %v1588
    %2081 = vmatprep.subr.mxu0 0.0
    %2082 = vmatpush1.msra.mxu0 %v1589
    %2083 = vmatprep.subr.mxu0 0.0
    %2084 = vmatpush1.msra.mxu0 %v1590
    %2085 = vmatprep.subr.mxu0 0.0
    %2086 = vmatpush1.msra.mxu0 0.0
    %2087 = vmatprep.subr.mxu0 0.0
    %2088 = vmatpush1.msra.mxu0 0.0
    %2089 = vmatprep.subr.mxu0 0.0
    %2090 = vmatpush1.msra.mxu0 0.0
    %2091 = vmatprep.subr.mxu0 0.0
    %2092 = vmatpush1.msra.mxu0 0.0
    %2093 = vmatprep.subr.mxu0 0.0
    %2094 = vmatpush1.msra.mxu0 0.0
    %2095 = vmatprep.subr.mxu0 0.0
    %2096 = vmatpush1.msra.mxu0 0.0
    %2097 = vmatprep.subr.mxu0 0.0
    %2098 = vmatpush1.msra.mxu0 0.0
    %2099 = vmatprep.subr.mxu0 0.0
    %2100 = vmatpush1.msra.mxu0 0.0
    %2101 = vmatprep.subr.mxu0 0.0
    %2102 = vmatpush1.msra.mxu0 0.0
    %2103 = vmatprep.subr.mxu0 0.0
    %2104 = vmatpush1.msra.mxu0 0.0
    %2105 = vmatprep.subr.mxu0 0.0
    %2106 = vmatpush1.msra.mxu0 0.0
    %2107 = vmatprep.subr.mxu0 0.0
    %2108 = vmatpush1.msra.mxu0 0.0
    %2109 = vmatprep.subr.mxu0 0.0
    %2110 = vmatpush1.msra.mxu0 0.0
    %2111 = vmatprep.subr.mxu0 0.0
    %2112 = vmatpush1.msra.mxu0 0.0
    %2113 = vmatprep.subr.mxu0 0.0
    %2114 = vmatpush1.msra.mxu0 0.0
    %2115 = vmatprep.subr.mxu0 0.0
    %2116 = vmatpush1.msra.mxu0 0.0
    %2117 = vmatprep.subr.mxu0 0.0
    %2118 = vmatpush1.msra.mxu0 0.0
    %2119 = vmatprep.subr.mxu0 0.0
    %2120 = vmatpush1.msra.mxu0 0.0
    %2121 = vmatprep.subr.mxu0 0.0
    %2122 = vmatpush1.msra.mxu0 0.0
    %2123 = vmatprep.subr.mxu0 0.0
    %2124 = vmatpush1.msra.mxu0 0.0
    %2125 = vmatprep.subr.mxu0 0.0
    %2126 = vmatpush1.msra.mxu0 0.0
    %2127 = vmatprep.subr.mxu0 0.0
    %2128 = vmatpush1.msra.mxu0 0.0
    %2129 = vmatprep.subr.mxu0 0.0
    %2130 = vmatpush1.msra.mxu0 0.0
    %2131 = vmatprep.subr.mxu0 0.0
    %2132 = vmatpush1.msra.mxu0 0.0
    %2133 = vmatprep.subr.mxu0 0.0
    %2134 = vmatpush1.msra.mxu0 0.0
    %2135 = vmatprep.subr.mxu0 0.0
    %2136 = vmatpush1.msra.mxu0 0.0
    %2137 = vmatprep.subr.mxu0 0.0
    %2138 = vmatpush1.msra.mxu0 0.0
    %2139 = vmatprep.subr.mxu0 0.0
    %2140 = vmatpush1.msra.mxu0 0.0
    %2141 = vmatprep.mubr.f32.mxu0 0.0
    %2142 = vmatmul.mubr.f32.gmra.mrb[0].mxu0 %v2075
    %v2143 = vpop.f32.mrb[0].mxu0
    %v2144 = vadd.f32 0.0, %v2143
    %v2145 = vpop.f32.mrb[0].mxu0
    %2146 = vdwg.mxu0
    %v2147 = vadd.f32 %v2071, %v2144
    %v2148 = vtanh.pop %v2147
    %v2150 = vsel %vm241, %v2148, 0
    %2152 = vmatprep.subr.mxu0 0.0
    %2153 = vmatpush1.msra.mxu0 %v1591
    %2154 = vmatprep.subr.mxu0 0.0
    %2155 = vmatpush1.msra.mxu0 %v1592
    %2156 = vmatprep.subr.mxu0 0.0
    %2157 = vmatpush1.msra.mxu0 %v1593
    %2158 = vmatprep.subr.mxu0 0.0
    %2159 = vmatpush1.msra.mxu0 %v1594
    %2160 = vmatprep.subr.mxu0 0.0
    %2161 = vmatpush1.msra.mxu0 0.0
    %2162 = vmatprep.subr.mxu0 0.0
    %2163 = vmatpush1.msra.mxu0 0.0
    %2164 = vmatprep.subr.mxu0 0.0
    %2165 = vmatpush1.msra.mxu0 0.0
    %2166 = vmatprep.subr.mxu0 0.0
    %2167 = vmatpush1.msra.mxu0 0.0
    %2168 = vmatprep.subr.mxu0 0.0
    %2169 = vmatpush1.msra.mxu0 0.0
    %2170 = vmatprep.subr.mxu0 0.0
    %2171 = vmatpush1.msra.mxu0 0.0
    %2172 = vmatprep.subr.mxu0 0.0
    %2173 = vmatpush1.msra.mxu0 0.0
    %2174 = vmatprep.subr.mxu0 0.0
    %2175 = vmatpush1.msra.mxu0 0.0
    %2176 = vmatprep.subr.mxu0 0.0
    %2177 = vmatpush1.msra.mxu0 0.0
    %2178 = vmatprep.subr.mxu0 0.0
    %2179 = vmatpush1.msra.mxu0 0.0
    %2180 = vmatprep.subr.mxu0 0.0
    %2181 = vmatpush1.msra.mxu0 0.0
    %2182 = vmatprep.subr.mxu0 0.0
    %2183 = vmatpush1.msra.mxu0 0.0
    %2184 = vmatprep.subr.mxu0 0.0
    %2185 = vmatpush1.msra.mxu0 0.0
    %2186 = vmatprep.subr.mxu0 0.0
    %2187 = vmatpush1.msra.mxu0 0.0
    %2188 = vmatprep.subr.mxu0 0.0
    %2189 = vmatpush1.msra.mxu0 0.0
    %2190 = vmatprep.subr.mxu0 0.0
    %2191 = vmatpush1.msra.mxu0 0.0
    %2192 = vmatprep.subr.mxu0 0.0
    %2193 = vmatpush1.msra.mxu0 0.0
    %2194 = vmatprep.subr.mxu0 0.0
    %2195 = vmatpush1.msra.mxu0 0.0
    %2196 = vmatprep.subr.mxu0 0.0
    %2197 = vmatpush1.msra.mxu0 0.0
    %2198 = vmatprep.subr.mxu0 0.0
    %2199 = vmatpush1.msra.mxu0 0.0
    %2200 = vmatprep.subr.mxu0 0.0
    %2201 = vmatpush1.msra.mxu0 0.0
    %2202 = vmatprep.subr.mxu0 0.0
    %2203 = vmatpush1.msra.mxu0 0.0
    %2204 = vmatprep.subr.mxu0 0.0
    %2205 = vmatpush1.msra.mxu0 0.0
    %2206 = vmatprep.subr.mxu0 0.0
    %2207 = vmatpush1.msra.mxu0 0.0
    %2208 = vmatprep.subr.mxu0 0.0
    %2209 = vmatpush1.msra.mxu0 0.0
    %2210 = vmatprep.subr.mxu0 0.0
    %2211 = vmatpush1.msra.mxu0 0.0
    %2212 = vmatprep.subr.mxu0 0.0
    %2213 = vmatpush1.msra.mxu0 0.0
    %2214 = vmatprep.subr.mxu0 0.0
    %2215 = vmatpush1.msra.mxu0 0.0
    %2216 = vmatprep.mubr.f32.mxu0 0.0
    %2217 = vmatmul.mubr.f32.gmra.mrb[0].mxu0 %v2150
    %v2218 = vpop.f32.mrb[0].mxu0
    %v2219 = vadd.f32 %v1620, %v2218
    %v2220 = vpop.f32.mrb[0].mxu0
    %2221 = vdwg.mxu0
    %v2222 = vld [vmem:[%s1 + $0x8] sm:$0xff]
    %v2223 = vmul.f32 %v2219, 1.442695
    %v2224 = vpow.pop %v2223
    %2226 = vrot.lane.b32.xlu0 %v2224, 112
    %v2227 = vpop.permute.xlu0 %2226
    %v2229 = vmul.f32 %v2222, %v2227
    %v2230 = vadd.f32 %v2219, %v2229
    %2231 = vrot.lane.b32.xlu0 %v1968, 80
    %v2232 = vpop.permute.xlu0 %2231
    %v2234 = vsel %vm111, %v2230, %v2232
    %v2236 = vsel %vm1622, %v2234, 0
    %2238 = vmatprep.subr.mxu0 0.0
    %2239 = vmatpush1.msra.mxu0 %v1595
    %2240 = vmatprep.subr.mxu0 0.0
    %2241 = vmatpush1.msra.mxu0 %v1596
    %2242 = vmatprep.subr.mxu0 0.0
    %2243 = vmatpush1.msra.mxu0 %v1597
    %2244 = vmatprep.subr.mxu0 0.0
    %2245 = vmatpush1.msra.mxu0 %v1598
    %2246 = vmatprep.subr.mxu0 0.0
    %2247 = vmatpush1.msra.mxu0 %v1599
    %2248 = vmatprep.subr.mxu0 0.0
    %2249 = vmatpush1.msra.mxu0 %v1600
    %2250 = vmatprep.subr.mxu0 0.0
    %2251 = vmatpush1.msra.mxu0 0.0
    %2252 = vmatprep.subr.mxu0 0.0
    %2253 = vmatpush1.msra.mxu0 0.0
    %2254 = vmatprep.subr.mxu0 0.0
    %2255 = vmatpush1.msra.mxu0 0.0
    %2256 = vmatprep.subr.mxu0 0.0
    %2257 = vmatpush1.msra.mxu0 0.0
    %2258 = vmatprep.subr.mxu0 0.0
    %2259 = vmatpush1.msra.mxu0 0.0
    %2260 = vmatprep.subr.mxu0 0.0
    %2261 = vmatpush1.msra.mxu0 0.0
    %2262 = vmatprep.subr.mxu0 0.0
    %2263 = vmatpush1.msra.mxu0 0.0
    %2264 = vmatprep.subr.mxu0 0.0
    %2265 = vmatpush1.msra.mxu0 0.0
    %2266 = vmatprep.subr.mxu0 0.0
    %2267 = vmatpush1.msra.mxu0 0.0
    %2268 = vmatprep.subr.mxu0 0.0
    %2269 = vmatpush1.msra.mxu0 0.0
    %2270 = vmatprep.subr.mxu0 0.0
    %2271 = vmatpush1.msra.mxu0 0.0
    %2272 = vmatprep.subr.mxu0 0.0
    %2273 = vmatpush1.msra.mxu0 0.0
    %2274 = vmatprep.subr.mxu0 0.0
    %2275 = vmatpush1.msra.mxu0 0.0
    %2276 = vmatprep.subr.mxu0 0.0
    %2277 = vmatpush1.msra.mxu0 0.0
    %2278 = vmatprep.subr.mxu0 0.0
    %2279 = vmatpush1.msra.mxu0 0.0
    %2280 = vmatprep.subr.mxu0 0.0
    %2281 = vmatpush1.msra.mxu0 0.0
    %2282 = vmatprep.subr.mxu0 0.0
    %2283 = vmatpush1.msra.mxu0 0.0
    %2284 = vmatprep.subr.mxu0 0.0
    %2285 = vmatpush1.msra.mxu0 0.0
    %2286 = vmatprep.subr.mxu0 0.0
    %2287 = vmatpush1.msra.mxu0 0.0
    %2288 = vmatprep.subr.mxu0 0.0
    %2289 = vmatpush1.msra.mxu0 0.0
    %2290 = vmatprep.subr.mxu0 0.0
    %2291 = vmatpush1.msra.mxu0 0.0
    %2292 = vmatprep.subr.mxu0 0.0
    %2293 = vmatpush1.msra.mxu0 0.0
    %2294 = vmatprep.subr.mxu0 0.0
    %2295 = vmatpush1.msra.mxu0 0.0
    %2296 = vmatprep.subr.mxu0 0.0
    %2297 = vmatpush1.msra.mxu0 0.0
    %2298 = vmatprep.subr.mxu0 0.0
    %2299 = vmatpush1.msra.mxu0 0.0
    %2300 = vmatprep.subr.mxu0 0.0
    %2301 = vmatpush1.msra.mxu0 0.0
    %2302 = vmatprep.mubr.f32.mxu0 0.0
    %2303 = vmatmul.mubr.f32.gmra.mrb[0].mxu0 %v2236
    %v2304 = vpop.f32.mrb[0].mxu0
    %v2305 = vadd.f32 %v1613, %v2304
    %v2306 = vpop.f32.mrb[0].mxu0
    %2307 = vdwg.mxu0
    %v2308 = vtanh.pop %v2305
    %v2309 = vmul.f32 %v2308, 0.5
    %v2310 = vadd.f32 %v2309, 0.5
    %v2311 = vmul.f32 %v2310, %v1962
    %2313 = vrot.lane.b32.xlu0 %v2308, 32
    %v2314 = vpop.permute.xlu0 %2313
    %v2316 = vmul.f32 %v2310, %v2314
    %2318 = vrot.lane.b32.xlu0 %v2316, 32
    %v2319 = vpop.permute.xlu0 %2318
    %v2321 = vadd.f32 %v2311, %v2319
    %v2322 = vtanh.pop %v2321
    %2324 = vrot.lane.b32.xlu0 %v2322, 32
    %v2325 = vpop.permute.xlu0 %2324
    %v2327 = vmul.f32 %v2310, %v2325
    %2329 = vrot.lane.b32.xlu0 %v2327, 64
    %v2330 = vpop.permute.xlu0 %2329
    %2332 = vst.msk [vmem:[#allocation3 + $0x8] sm:$0xff] %vm241, %v2330
    %2333 = vrot.lane.b32.xlu0 %v2070, 80
    %v2334 = vpop.permute.xlu0 %2333
    %v2336 = vsel %vm111, %v2230, %v2334
    %v2338 = vsel %vm1622, %v2336, 0
    %2340 = vmatprep.subr.mxu0 0.0
    %2341 = vmatpush1.msra.mxu0 %v1581
    %2342 = vmatprep.subr.mxu0 0.0
    %2343 = vmatpush1.msra.mxu0 %v1582
    %2344 = vmatprep.subr.mxu0 0.0
    %2345 = vmatpush1.msra.mxu0 %v1583
    %2346 = vmatprep.subr.mxu0 0.0
    %2347 = vmatpush1.msra.mxu0 %v1584
    %2348 = vmatprep.subr.mxu0 0.0
    %2349 = vmatpush1.msra.mxu0 %v1585
    %2350 = vmatprep.subr.mxu0 0.0
    %2351 = vmatpush1.msra.mxu0 %v1586
    %2352 = vmatprep.subr.mxu0 0.0
    %2353 = vmatpush1.msra.mxu0 0.0
    %2354 = vmatprep.subr.mxu0 0.0
    %2355 = vmatpush1.msra.mxu0 0.0
    %2356 = vmatprep.subr.mxu0 0.0
    %2357 = vmatpush1.msra.mxu0 0.0
    %2358 = vmatprep.subr.mxu0 0.0
    %2359 = vmatpush1.msra.mxu0 0.0
    %2360 = vmatprep.subr.mxu0 0.0
    %2361 = vmatpush1.msra.mxu0 0.0
    %2362 = vmatprep.subr.mxu0 0.0
    %2363 = vmatpush1.msra.mxu0 0.0
    %2364 = vmatprep.subr.mxu0 0.0
    %2365 = vmatpush1.msra.mxu0 0.0
    %2366 = vmatprep.subr.mxu0 0.0
    %2367 = vmatpush1.msra.mxu0 0.0
    %2368 = vmatprep.subr.mxu0 0.0
    %2369 = vmatpush1.msra.mxu0 0.0
    %2370 = vmatprep.subr.mxu0 0.0
    %2371 = vmatpush1.msra.mxu0 0.0
    %2372 = vmatprep.subr.mxu0 0.0
    %2373 = vmatpush1.msra.mxu0 0.0
    %2374 = vmatprep.subr.mxu0 0.0
    %2375 = vmatpush1.msra.mxu0 0.0
    %2376 = vmatprep.subr.mxu0 0.0
    %2377 = vmatpush1.msra.mxu0 0.0
    %2378 = vmatprep.subr.mxu0 0.0
    %2379 = vmatpush1.msra.mxu0 0.0
    %2380 = vmatprep.subr.mxu0 0.0
    %2381 = vmatpush1.msra.mxu0 0.0
    %2382 = vmatprep.subr.mxu0 0.0
    %2383 = vmatpush1.msra.mxu0 0.0
    %2384 = vmatprep.subr.mxu0 0.0
    %2385 = vmatpush1.msra.mxu0 0.0
    %2386 = vmatprep.subr.mxu0 0.0
    %2387 = vmatpush1.msra.mxu0 0.0
    %2388 = vmatprep.subr.mxu0 0.0
    %2389 = vmatpush1.msra.mxu0 0.0
    %2390 = vmatprep.subr.mxu0 0.0
    %2391 = vmatpush1.msra.mxu0 0.0
    %2392 = vmatprep.subr.mxu0 0.0
    %2393 = vmatpush1.msra.mxu0 0.0
    %2394 = vmatprep.subr.mxu0 0.0
    %2395 = vmatpush1.msra.mxu0 0.0
    %2396 = vmatprep.subr.mxu0 0.0
    %2397 = vmatpush1.msra.mxu0 0.0
    %2398 = vmatprep.subr.mxu0 0.0
    %2399 = vmatpush1.msra.mxu0 0.0
    %2400 = vmatprep.subr.mxu0 0.0
    %2401 = vmatpush1.msra.mxu0 0.0
    %2402 = vmatprep.subr.mxu0 0.0
    %2403 = vmatpush1.msra.mxu0 0.0
    %2404 = vmatprep.mubr.f32.mxu0 0.0
    %2405 = vmatmul.mubr.f32.gmra.mrb[0].mxu0 %v2338
    %v2406 = vpop.f32.mrb[0].mxu0
    %v2407 = vadd.f32 %v1606, %v2406
    %v2408 = vpop.f32.mrb[0].mxu0
    %2409 = vdwg.mxu0
    %v2410 = vtanh.pop %v2407
    %v2411 = vmul.f32 %v2410, 0.5
    %v2412 = vadd.f32 %v2411, 0.5
    %v2413 = vmul.f32 %v2412, %v2064
    %2415 = vrot.lane.b32.xlu0 %v2410, 32
    %v2416 = vpop.permute.xlu0 %2415
    %v2418 = vmul.f32 %v2412, %v2416
    %2420 = vrot.lane.b32.xlu0 %v2418, 32
    %v2421 = vpop.permute.xlu0 %2420
    %v2423 = vadd.f32 %v2413, %v2421
    %v2424 = vtanh.pop %v2423
    %2426 = vrot.lane.b32.xlu0 %v2424, 32
    %v2427 = vpop.permute.xlu0 %2426
    %v2429 = vmul.f32 %v2412, %v2427
    %v2430 = vld [vmem:[#allocation2 + $0x10] sm:$0xff]
    %2432 = vrot.lane.b32.xlu0 %v2429, 64
    %v2433 = vpop.permute.xlu0 %2432
    %v2434 = vsel %vm241, %v2433, 0
    %2436 = vmatprep.subr.mxu0 0.0
    %2437 = vmatpush1.msra.mxu0 %v1587
    %2438 = vmatprep.subr.mxu0 0.0
    %2439 = vmatpush1.msra.mxu0 %v1588
    %2440 = vmatprep.subr.mxu0 0.0
    %2441 = vmatpush1.msra.mxu0 %v1589
    %2442 = vmatprep.subr.mxu0 0.0
    %2443 = vmatpush1.msra.mxu0 %v1590
    %2444 = vmatprep.subr.mxu0 0.0
    %2445 = vmatpush1.msra.mxu0 0.0
    %2446 = vmatprep.subr.mxu0 0.0
    %2447 = vmatpush1.msra.mxu0 0.0
    %2448 = vmatprep.subr.mxu0 0.0
    %2449 = vmatpush1.msra.mxu0 0.0
    %2450 = vmatprep.subr.mxu0 0.0
    %2451 = vmatpush1.msra.mxu0 0.0
    %2452 = vmatprep.subr.mxu0 0.0
    %2453 = vmatpush1.msra.mxu0 0.0
    %2454 = vmatprep.subr.mxu0 0.0
    %2455 = vmatpush1.msra.mxu0 0.0
    %2456 = vmatprep.subr.mxu0 0.0
    %2457 = vmatpush1.msra.mxu0 0.0
    %2458 = vmatprep.subr.mxu0 0.0
    %2459 = vmatpush1.msra.mxu0 0.0
    %2460 = vmatprep.subr.mxu0 0.0
    %2461 = vmatpush1.msra.mxu0 0.0
    %2462 = vmatprep.subr.mxu0 0.0
    %2463 = vmatpush1.msra.mxu0 0.0
    %2464 = vmatprep.subr.mxu0 0.0
    %2465 = vmatpush1.msra.mxu0 0.0
    %2466 = vmatprep.subr.mxu0 0.0
    %2467 = vmatpush1.msra.mxu0 0.0
    %2468 = vmatprep.subr.mxu0 0.0
    %2469 = vmatpush1.msra.mxu0 0.0
    %2470 = vmatprep.subr.mxu0 0.0
    %2471 = vmatpush1.msra.mxu0 0.0
    %2472 = vmatprep.subr.mxu0 0.0
    %2473 = vmatpush1.msra.mxu0 0.0
    %2474 = vmatprep.subr.mxu0 0.0
    %2475 = vmatpush1.msra.mxu0 0.0
    %2476 = vmatprep.subr.mxu0 0.0
    %2477 = vmatpush1.msra.mxu0 0.0
    %2478 = vmatprep.subr.mxu0 0.0
    %2479 = vmatpush1.msra.mxu0 0.0
    %2480 = vmatprep.subr.mxu0 0.0
    %2481 = vmatpush1.msra.mxu0 0.0
    %2482 = vmatprep.subr.mxu0 0.0
    %2483 = vmatpush1.msra.mxu0 0.0
    %2484 = vmatprep.subr.mxu0 0.0
    %2485 = vmatpush1.msra.mxu0 0.0
    %2486 = vmatprep.subr.mxu0 0.0
    %2487 = vmatpush1.msra.mxu0 0.0
    %2488 = vmatprep.subr.mxu0 0.0
    %2489 = vmatpush1.msra.mxu0 0.0
    %2490 = vmatprep.subr.mxu0 0.0
    %2491 = vmatpush1.msra.mxu0 0.0
    %2492 = vmatprep.subr.mxu0 0.0
    %2493 = vmatpush1.msra.mxu0 0.0
    %2494 = vmatprep.subr.mxu0 0.0
    %2495 = vmatpush1.msra.mxu0 0.0
    %2496 = vmatprep.subr.mxu0 0.0
    %2497 = vmatpush1.msra.mxu0 0.0
    %2498 = vmatprep.subr.mxu0 0.0
    %2499 = vmatpush1.msra.mxu0 0.0
    %2500 = vmatprep.mubr.f32.mxu0 0.0
    %2501 = vmatmul.mubr.f32.gmra.mrb[0].mxu0 %v2434
    %v2502 = vpop.f32.mrb[0].mxu0
    %v2503 = vadd.f32 0.0, %v2502
    %v2504 = vpop.f32.mrb[0].mxu0
    %2505 = vdwg.mxu0
    %v2506 = vadd.f32 %v2430, %v2503
    %v2507 = vtanh.pop %v2506
    %v2509 = vsel %vm241, %v2507, 0
    %2511 = vmatprep.subr.mxu0 0.0
    %2512 = vmatpush1.msra.mxu0 %v1591
    %2513 = vmatprep.subr.mxu0 0.0
    %2514 = vmatpush1.msra.mxu0 %v1592
    %2515 = vmatprep.subr.mxu0 0.0
    %2516 = vmatpush1.msra.mxu0 %v1593
    %2517 = vmatprep.subr.mxu0 0.0
    %2518 = vmatpush1.msra.mxu0 %v1594
    %2519 = vmatprep.subr.mxu0 0.0
    %2520 = vmatpush1.msra.mxu0 0.0
    %2521 = vmatprep.subr.mxu0 0.0
    %2522 = vmatpush1.msra.mxu0 0.0
    %2523 = vmatprep.subr.mxu0 0.0
    %2524 = vmatpush1.msra.mxu0 0.0
    %2525 = vmatprep.subr.mxu0 0.0
    %2526 = vmatpush1.msra.mxu0 0.0
    %2527 = vmatprep.subr.mxu0 0.0
    %2528 = vmatpush1.msra.mxu0 0.0
    %2529 = vmatprep.subr.mxu0 0.0
    %2530 = vmatpush1.msra.mxu0 0.0
    %2531 = vmatprep.subr.mxu0 0.0
    %2532 = vmatpush1.msra.mxu0 0.0
    %2533 = vmatprep.subr.mxu0 0.0
    %2534 = vmatpush1.msra.mxu0 0.0
    %2535 = vmatprep.subr.mxu0 0.0
    %2536 = vmatpush1.msra.mxu0 0.0
    %2537 = vmatprep.subr.mxu0 0.0
    %2538 = vmatpush1.msra.mxu0 0.0
    %2539 = vmatprep.subr.mxu0 0.0
    %2540 = vmatpush1.msra.mxu0 0.0
    %2541 = vmatprep.subr.mxu0 0.0
    %2542 = vmatpush1.msra.mxu0 0.0
    %2543 = vmatprep.subr.mxu0 0.0
    %2544 = vmatpush1.msra.mxu0 0.0
    %2545 = vmatprep.subr.mxu0 0.0
    %2546 = vmatpush1.msra.mxu0 0.0
    %2547 = vmatprep.subr.mxu0 0.0
    %2548 = vmatpush1.msra.mxu0 0.0
    %2549 = vmatprep.subr.mxu0 0.0
    %2550 = vmatpush1.msra.mxu0 0.0
    %2551 = vmatprep.subr.mxu0 0.0
    %2552 = vmatpush1.msra.mxu0 0.0
    %2553 = vmatprep.subr.mxu0 0.0
    %2554 = vmatpush1.msra.mxu0 0.0
    %2555 = vmatprep.subr.mxu0 0.0
    %2556 = vmatpush1.msra.mxu0 0.0
    %2557 = vmatprep.subr.mxu0 0.0
    %2558 = vmatpush1.msra.mxu0 0.0
    %2559 = vmatprep.subr.mxu0 0.0
    %2560 = vmatpush1.msra.mxu0 0.0
    %2561 = vmatprep.subr.mxu0 0.0
    %2562 = vmatpush1.msra.mxu0 0.0
    %2563 = vmatprep.subr.mxu0 0.0
    %2564 = vmatpush1.msra.mxu0 0.0
    %2565 = vmatprep.subr.mxu0 0.0
    %2566 = vmatpush1.msra.mxu0 0.0
    %2567 = vmatprep.subr.mxu0 0.0
    %2568 = vmatpush1.msra.mxu0 0.0
    %2569 = vmatprep.subr.mxu0 0.0
    %2570 = vmatpush1.msra.mxu0 0.0
    %2571 = vmatprep.subr.mxu0 0.0
    %2572 = vmatpush1.msra.mxu0 0.0
    %2573 = vmatprep.subr.mxu0 0.0
    %2574 = vmatpush1.msra.mxu0 0.0
    %2575 = vmatprep.mubr.f32.mxu0 0.0
    %2576 = vmatmul.mubr.f32.gmra.mrb[0].mxu0 %v2509
    %v2577 = vpop.f32.mrb[0].mxu0
    %v2578 = vadd.f32 %v1620, %v2577
    %v2579 = vpop.f32.mrb[0].mxu0
    %2580 = vdwg.mxu0
    %v2581 = vld [vmem:[%s1 + $0x10] sm:$0xff]
    %v2582 = vmul.f32 %v2578, 1.442695
    %v2583 = vpow.pop %v2582
    %2585 = vrot.lane.b32.xlu0 %v2583, 112
    %v2586 = vpop.permute.xlu0 %2585
    %v2588 = vmul.f32 %v2581, %v2586
    %v2589 = vadd.f32 %v2578, %v2588
    %2590 = vrot.lane.b32.xlu0 %v2327, 80
    %v2591 = vpop.permute.xlu0 %2590
    %v2593 = vsel %vm111, %v2589, %v2591
    %v2595 = vsel %vm1622, %v2593, 0
    %2597 = vmatprep.subr.mxu0 0.0
    %2598 = vmatpush1.msra.mxu0 %v1595
    %2599 = vmatprep.subr.mxu0 0.0
    %2600 = vmatpush1.msra.mxu0 %v1596
    %2601 = vmatprep.subr.mxu0 0.0
    %2602 = vmatpush1.msra.mxu0 %v1597
    %2603 = vmatprep.subr.mxu0 0.0
    %2604 = vmatpush1.msra.mxu0 %v1598
    %2605 = vmatprep.subr.mxu0 0.0
    %2606 = vmatpush1.msra.mxu0 %v1599
    %2607 = vmatprep.subr.mxu0 0.0
    %2608 = vmatpush1.msra.mxu0 %v1600
    %2609 = vmatprep.subr.mxu0 0.0
    %2610 = vmatpush1.msra.mxu0 0.0
    %2611 = vmatprep.subr.mxu0 0.0
    %2612 = vmatpush1.msra.mxu0 0.0
    %2613 = vmatprep.subr.mxu0 0.0
    %2614 = vmatpush1.msra.mxu0 0.0
    %2615 = vmatprep.subr.mxu0 0.0
    %2616 = vmatpush1.msra.mxu0 0.0
    %2617 = vmatprep.subr.mxu0 0.0
    %2618 = vmatpush1.msra.mxu0 0.0
    %2619 = vmatprep.subr.mxu0 0.0
    %2620 = vmatpush1.msra.mxu0 0.0
    %2621 = vmatprep.subr.mxu0 0.0
    %2622 = vmatpush1.msra.mxu0 0.0
    %2623 = vmatprep.subr.mxu0 0.0
    %2624 = vmatpush1.msra.mxu0 0.0
    %2625 = vmatprep.subr.mxu0 0.0
    %2626 = vmatpush1.msra.mxu0 0.0
    %2627 = vmatprep.subr.mxu0 0.0
    %2628 = vmatpush1.msra.mxu0 0.0
    %2629 = vmatprep.subr.mxu0 0.0
    %2630 = vmatpush1.msra.mxu0 0.0
    %2631 = vmatprep.subr.mxu0 0.0
    %2632 = vmatpush1.msra.mxu0 0.0
    %2633 = vmatprep.subr.mxu0 0.0
    %2634 = vmatpush1.msra.mxu0 0.0
    %2635 = vmatprep.subr.mxu0 0.0
    %2636 = vmatpush1.msra.mxu0 0.0
    %2637 = vmatprep.subr.mxu0 0.0
    %2638 = vmatpush1.msra.mxu0 0.0
    %2639 = vmatprep.subr.mxu0 0.0
    %2640 = vmatpush1.msra.mxu0 0.0
    %2641 = vmatprep.subr.mxu0 0.0
    %2642 = vmatpush1.msra.mxu0 0.0
    %2643 = vmatprep.subr.mxu0 0.0
    %2644 = vmatpush1.msra.mxu0 0.0
    %2645 = vmatprep.subr.mxu0 0.0
    %2646 = vmatpush1.msra.mxu0 0.0
    %2647 = vmatprep.subr.mxu0 0.0
    %2648 = vmatpush1.msra.mxu0 0.0
    %2649 = vmatprep.subr.mxu0 0.0
    %2650 = vmatpush1.msra.mxu0 0.0
    %2651 = vmatprep.subr.mxu0 0.0
    %2652 = vmatpush1.msra.mxu0 0.0
    %2653 = vmatprep.subr.mxu0 0.0
    %2654 = vmatpush1.msra.mxu0 0.0
    %2655 = vmatprep.subr.mxu0 0.0
    %2656 = vmatpush1.msra.mxu0 0.0
    %2657 = vmatprep.subr.mxu0 0.0
    %2658 = vmatpush1.msra.mxu0 0.0
    %2659 = vmatprep.subr.mxu0 0.0
    %2660 = vmatpush1.msra.mxu0 0.0
    %2661 = vmatprep.mubr.f32.mxu0 0.0
    %2662 = vmatmul.mubr.f32.gmra.mrb[0].mxu0 %v2595
    %v2663 = vpop.f32.mrb[0].mxu0
    %v2664 = vadd.f32 %v1613, %v2663
    %v2665 = vpop.f32.mrb[0].mxu0
    %2666 = vdwg.mxu0
    %v2667 = vtanh.pop %v2664
    %v2668 = vmul.f32 %v2667, 0.5
    %v2669 = vadd.f32 %v2668, 0.5
    %v2670 = vmul.f32 %v2669, %v2321
    %2672 = vrot.lane.b32.xlu0 %v2667, 32
    %v2673 = vpop.permute.xlu0 %2672
    %v2675 = vmul.f32 %v2669, %v2673
    %2677 = vrot.lane.b32.xlu0 %v2675, 32
    %v2678 = vpop.permute.xlu0 %2677
    %v2680 = vadd.f32 %v2670, %v2678
    %v2681 = vtanh.pop %v2680
    %2683 = vrot.lane.b32.xlu0 %v2681, 32
    %v2684 = vpop.permute.xlu0 %2683
    %v2686 = vmul.f32 %v2669, %v2684
    %2688 = vrot.lane.b32.xlu0 %v2686, 64
    %v2689 = vpop.permute.xlu0 %2688
    %2691 = vst.msk [vmem:[#allocation3 + $0x10] sm:$0xff] %vm241, %v2689
    %2692 = vrot.lane.b32.xlu0 %v2429, 80
    %v2693 = vpop.permute.xlu0 %2692
    %v2695 = vsel %vm111, %v2589, %v2693
    %v2697 = vsel %vm1622, %v2695, 0
    %2699 = vmatprep.subr.mxu0 0.0
    %2700 = vmatpush1.msra.mxu0 %v1581
    %2701 = vmatprep.subr.mxu0 0.0
    %2702 = vmatpush1.msra.mxu0 %v1582
    %2703 = vmatprep.subr.mxu0 0.0
    %2704 = vmatpush1.msra.mxu0 %v1583
    %2705 = vmatprep.subr.mxu0 0.0
    %2706 = vmatpush1.msra.mxu0 %v1584
    %2707 = vmatprep.subr.mxu0 0.0
    %2708 = vmatpush1.msra.mxu0 %v1585
    %2709 = vmatprep.subr.mxu0 0.0
    %2710 = vmatpush1.msra.mxu0 %v1586
    %2711 = vmatprep.subr.mxu0 0.0
    %2712 = vmatpush1.msra.mxu0 0.0
    %2713 = vmatprep.subr.mxu0 0.0
    %2714 = vmatpush1.msra.mxu0 0.0
    %2715 = vmatprep.subr.mxu0 0.0
    %2716 = vmatpush1.msra.mxu0 0.0
    %2717 = vmatprep.subr.mxu0 0.0
    %2718 = vmatpush1.msra.mxu0 0.0
    %2719 = vmatprep.subr.mxu0 0.0
    %2720 = vmatpush1.msra.mxu0 0.0
    %2721 = vmatprep.subr.mxu0 0.0
    %2722 = vmatpush1.msra.mxu0 0.0
    %2723 = vmatprep.subr.mxu0 0.0
    %2724 = vmatpush1.msra.mxu0 0.0
    %2725 = vmatprep.subr.mxu0 0.0
    %2726 = vmatpush1.msra.mxu0 0.0
    %2727 = vmatprep.subr.mxu0 0.0
    %2728 = vmatpush1.msra.mxu0 0.0
    %2729 = vmatprep.subr.mxu0 0.0
    %2730 = vmatpush1.msra.mxu0 0.0
    %2731 = vmatprep.subr.mxu0 0.0
    %2732 = vmatpush1.msra.mxu0 0.0
    %2733 = vmatprep.subr.mxu0 0.0
    %2734 = vmatpush1.msra.mxu0 0.0
    %2735 = vmatprep.subr.mxu0 0.0
    %2736 = vmatpush1.msra.mxu0 0.0
    %2737 = vmatprep.subr.mxu0 0.0
    %2738 = vmatpush1.msra.mxu0 0.0
    %2739 = vmatprep.subr.mxu0 0.0
    %2740 = vmatpush1.msra.mxu0 0.0
    %2741 = vmatprep.subr.mxu0 0.0
    %2742 = vmatpush1.msra.mxu0 0.0
    %2743 = vmatprep.subr.mxu0 0.0
    %2744 = vmatpush1.msra.mxu0 0.0
    %2745 = vmatprep.subr.mxu0 0.0
    %2746 = vmatpush1.msra.mxu0 0.0
    %2747 = vmatprep.subr.mxu0 0.0
    %2748 = vmatpush1.msra.mxu0 0.0
    %2749 = vmatprep.subr.mxu0 0.0
    %2750 = vmatpush1.msra.mxu0 0.0
    %2751 = vmatprep.subr.mxu0 0.0
    %2752 = vmatpush1.msra.mxu0 0.0
    %2753 = vmatprep.subr.mxu0 0.0
    %2754 = vmatpush1.msra.mxu0 0.0
    %2755 = vmatprep.subr.mxu0 0.0
    %2756 = vmatpush1.msra.mxu0 0.0
    %2757 = vmatprep.subr.mxu0 0.0
    %2758 = vmatpush1.msra.mxu0 0.0
    %2759 = vmatprep.subr.mxu0 0.0
    %2760 = vmatpush1.msra.mxu0 0.0
    %2761 = vmatprep.subr.mxu0 0.0
    %2762 = vmatpush1.msra.mxu0 0.0
    %2763 = vmatprep.mubr.f32.mxu0 0.0
    %2764 = vmatmul.mubr.f32.gmra.mrb[0].mxu0 %v2697
    %v2765 = vpop.f32.mrb[0].mxu0
    %v2766 = vadd.f32 %v1606, %v2765
    %v2767 = vpop.f32.mrb[0].mxu0
    %2768 = vdwg.mxu0
    %v2769 = vtanh.pop %v2766
    %v2770 = vmul.f32 %v2769, 0.5
    %v2771 = vadd.f32 %v2770, 0.5
    %v2772 = vmul.f32 %v2771, %v2423
    %2774 = vrot.lane.b32.xlu0 %v2769, 32
    %v2775 = vpop.permute.xlu0 %2774
    %v2777 = vmul.f32 %v2771, %v2775
    %2779 = vrot.lane.b32.xlu0 %v2777, 32
    %v2780 = vpop.permute.xlu0 %2779
    %v2782 = vadd.f32 %v2772, %v2780
    %v2783 = vtanh.pop %v2782
    %2785 = vrot.lane.b32.xlu0 %v2783, 32
    %v2786 = vpop.permute.xlu0 %2785
    %v2788 = vmul.f32 %v2771, %v2786
    %v2789 = vld [vmem:[#allocation2 + $0x18] sm:$0xff]
    %2791 = vrot.lane.b32.xlu0 %v2788, 64
    %v2792 = vpop.permute.xlu0 %2791
    %v2793 = vsel %vm241, %v2792, 0
    %2795 = vmatprep.subr.mxu0 0.0
    %2796 = vmatpush1.msra.mxu0 %v1587
    %2797 = vmatprep.subr.mxu0 0.0
    %2798 = vmatpush1.msra.mxu0 %v1588
    %2799 = vmatprep.subr.mxu0 0.0
    %2800 = vmatpush1.msra.mxu0 %v1589
    %2801 = vmatprep.subr.mxu0 0.0
    %2802 = vmatpush1.msra.mxu0 %v1590
    %2803 = vmatprep.subr.mxu0 0.0
    %2804 = vmatpush1.msra.mxu0 0.0
    %2805 = vmatprep.subr.mxu0 0.0
    %2806 = vmatpush1.msra.mxu0 0.0
    %2807 = vmatprep.subr.mxu0 0.0
    %2808 = vmatpush1.msra.mxu0 0.0
    %2809 = vmatprep.subr.mxu0 0.0
    %2810 = vmatpush1.msra.mxu0 0.0
    %2811 = vmatprep.subr.mxu0 0.0
    %2812 = vmatpush1.msra.mxu0 0.0
    %2813 = vmatprep.subr.mxu0 0.0
    %2814 = vmatpush1.msra.mxu0 0.0
    %2815 = vmatprep.subr.mxu0 0.0
    %2816 = vmatpush1.msra.mxu0 0.0
    %2817 = vmatprep.subr.mxu0 0.0
    %2818 = vmatpush1.msra.mxu0 0.0
    %2819 = vmatprep.subr.mxu0 0.0
    %2820 = vmatpush1.msra.mxu0 0.0
    %2821 = vmatprep.subr.mxu0 0.0
    %2822 = vmatpush1.msra.mxu0 0.0
    %2823 = vmatprep.subr.mxu0 0.0
    %2824 = vmatpush1.msra.mxu0 0.0
    %2825 = vmatprep.subr.mxu0 0.0
    %2826 = vmatpush1.msra.mxu0 0.0
    %2827 = vmatprep.subr.mxu0 0.0
    %2828 = vmatpush1.msra.mxu0 0.0
    %2829 = vmatprep.subr.mxu0 0.0
    %2830 = vmatpush1.msra.mxu0 0.0
    %2831 = vmatprep.subr.mxu0 0.0
    %2832 = vmatpush1.msra.mxu0 0.0
    %2833 = vmatprep.subr.mxu0 0.0
    %2834 = vmatpush1.msra.mxu0 0.0
    %2835 = vmatprep.subr.mxu0 0.0
    %2836 = vmatpush1.msra.mxu0 0.0
    %2837 = vmatprep.subr.mxu0 0.0
    %2838 = vmatpush1.msra.mxu0 0.0
    %2839 = vmatprep.subr.mxu0 0.0
    %2840 = vmatpush1.msra.mxu0 0.0
    %2841 = vmatprep.subr.mxu0 0.0
    %2842 = vmatpush1.msra.mxu0 0.0
    %2843 = vmatprep.subr.mxu0 0.0
    %2844 = vmatpush1.msra.mxu0 0.0
    %2845 = vmatprep.subr.mxu0 0.0
    %2846 = vmatpush1.msra.mxu0 0.0
    %2847 = vmatprep.subr.mxu0 0.0
    %2848 = vmatpush1.msra.mxu0 0.0
    %2849 = vmatprep.subr.mxu0 0.0
    %2850 = vmatpush1.msra.mxu0 0.0
    %2851 = vmatprep.subr.mxu0 0.0
    %2852 = vmatpush1.msra.mxu0 0.0
    %2853 = vmatprep.subr.mxu0 0.0
    %2854 = vmatpush1.msra.mxu0 0.0
    %2855 = vmatprep.subr.mxu0 0.0
    %2856 = vmatpush1.msra.mxu0 0.0
    %2857 = vmatprep.subr.mxu0 0.0
    %2858 = vmatpush1.msra.mxu0 0.0
    %2859 = vmatprep.mubr.f32.mxu0 0.0
    %2860 = vmatmul.mubr.f32.gmra.mrb[0].mxu0 %v2793
    %v2861 = vpop.f32.mrb[0].mxu0
    %v2862 = vadd.f32 0.0, %v2861
    %v2863 = vpop.f32.mrb[0].mxu0
    %2864 = vdwg.mxu0
    %v2865 = vadd.f32 %v2789, %v2862
    %v2866 = vtanh.pop %v2865
    %v2868 = vsel %vm241, %v2866, 0
    %2870 = vmatprep.subr.mxu0 0.0
    %2871 = vmatpush1.msra.mxu0 %v1591
    %2872 = vmatprep.subr.mxu0 0.0
    %2873 = vmatpush1.msra.mxu0 %v1592
    %2874 = vmatprep.subr.mxu0 0.0
    %2875 = vmatpush1.msra.mxu0 %v1593
    %2876 = vmatprep.subr.mxu0 0.0
    %2877 = vmatpush1.msra.mxu0 %v1594
    %2878 = vmatprep.subr.mxu0 0.0
    %2879 = vmatpush1.msra.mxu0 0.0
    %2880 = vmatprep.subr.mxu0 0.0
    %2881 = vmatpush1.msra.mxu0 0.0
    %2882 = vmatprep.subr.mxu0 0.0
    %2883 = vmatpush1.msra.mxu0 0.0
    %2884 = vmatprep.subr.mxu0 0.0
    %2885 = vmatpush1.msra.mxu0 0.0
    %2886 = vmatprep.subr.mxu0 0.0
    %2887 = vmatpush1.msra.mxu0 0.0
    %2888 = vmatprep.subr.mxu0 0.0
    %2889 = vmatpush1.msra.mxu0 0.0
    %2890 = vmatprep.subr.mxu0 0.0
    %2891 = vmatpush1.msra.mxu0 0.0
    %2892 = vmatprep.subr.mxu0 0.0
    %2893 = vmatpush1.msra.mxu0 0.0
    %2894 = vmatprep.subr.mxu0 0.0
    %2895 = vmatpush1.msra.mxu0 0.0
    %2896 = vmatprep.subr.mxu0 0.0
    %2897 = vmatpush1.msra.mxu0 0.0
    %2898 = vmatprep.subr.mxu0 0.0
    %2899 = vmatpush1.msra.mxu0 0.0
    %2900 = vmatprep.subr.mxu0 0.0
    %2901 = vmatpush1.msra.mxu0 0.0
    %2902 = vmatprep.subr.mxu0 0.0
    %2903 = vmatpush1.msra.mxu0 0.0
    %2904 = vmatprep.subr.mxu0 0.0
    %2905 = vmatpush1.msra.mxu0 0.0
    %2906 = vmatprep.subr.mxu0 0.0
    %2907 = vmatpush1.msra.mxu0 0.0
    %2908 = vmatprep.subr.mxu0 0.0
    %2909 = vmatpush1.msra.mxu0 0.0
    %2910 = vmatprep.subr.mxu0 0.0
    %2911 = vmatpush1.msra.mxu0 0.0
    %2912 = vmatprep.subr.mxu0 0.0
    %2913 = vmatpush1.msra.mxu0 0.0
    %2914 = vmatprep.subr.mxu0 0.0
    %2915 = vmatpush1.msra.mxu0 0.0
    %2916 = vmatprep.subr.mxu0 0.0
    %2917 = vmatpush1.msra.mxu0 0.0
    %2918 = vmatprep.subr.mxu0 0.0
    %2919 = vmatpush1.msra.mxu0 0.0
    %2920 = vmatprep.subr.mxu0 0.0
    %2921 = vmatpush1.msra.mxu0 0.0
    %2922 = vmatprep.subr.mxu0 0.0
    %2923 = vmatpush1.msra.mxu0 0.0
    %2924 = vmatprep.subr.mxu0 0.0
    %2925 = vmatpush1.msra.mxu0 0.0
    %2926 = vmatprep.subr.mxu0 0.0
    %2927 = vmatpush1.msra.mxu0 0.0
    %2928 = vmatprep.subr.mxu0 0.0
    %2929 = vmatpush1.msra.mxu0 0.0
    %2930 = vmatprep.subr.mxu0 0.0
    %2931 = vmatpush1.msra.mxu0 0.0
    %2932 = vmatprep.subr.mxu0 0.0
    %2933 = vmatpush1.msra.mxu0 0.0
    %2934 = vmatprep.mubr.f32.mxu0 0.0
    %2935 = vmatmul.mubr.f32.gmra.mrb[0].mxu0 %v2868
    %v2936 = vpop.f32.mrb[0].mxu0
    %v2937 = vadd.f32 %v1620, %v2936
    %v2938 = vpop.f32.mrb[0].mxu0
    %2939 = vdwg.mxu0
    %v2940 = vld [vmem:[%s1 + $0x18] sm:$0xff]
    %v2941 = vmul.f32 %v2937, 1.442695
    %v2942 = vpow.pop %v2941
    %2944 = vrot.lane.b32.xlu0 %v2942, 112
    %v2945 = vpop.permute.xlu0 %2944
    %v2947 = vmul.f32 %v2940, %v2945
    %v2948 = vadd.f32 %v2937, %v2947
    %2949 = vrot.lane.b32.xlu0 %v2686, 80
    %v2950 = vpop.permute.xlu0 %2949
    %v2952 = vsel %vm111, %v2948, %v2950
    %v2954 = vsel %vm1622, %v2952, 0
    %2956 = vmatprep.subr.mxu0 0.0
    %2957 = vmatpush1.msra.mxu0 %v1595
    %2958 = vmatprep.subr.mxu0 0.0
    %2959 = vmatpush1.msra.mxu0 %v1596
    %2960 = vmatprep.subr.mxu0 0.0
    %2961 = vmatpush1.msra.mxu0 %v1597
    %2962 = vmatprep.subr.mxu0 0.0
    %2963 = vmatpush1.msra.mxu0 %v1598
    %2964 = vmatprep.subr.mxu0 0.0
    %2965 = vmatpush1.msra.mxu0 %v1599
    %2966 = vmatprep.subr.mxu0 0.0
    %2967 = vmatpush1.msra.mxu0 %v1600
    %2968 = vmatprep.subr.mxu0 0.0
    %2969 = vmatpush1.msra.mxu0 0.0
    %2970 = vmatprep.subr.mxu0 0.0
    %2971 = vmatpush1.msra.mxu0 0.0
    %2972 = vmatprep.subr.mxu0 0.0
    %2973 = vmatpush1.msra.mxu0 0.0
    %2974 = vmatprep.subr.mxu0 0.0
    %2975 = vmatpush1.msra.mxu0 0.0
    %2976 = vmatprep.subr.mxu0 0.0
    %2977 = vmatpush1.msra.mxu0 0.0
    %2978 = vmatprep.subr.mxu0 0.0
    %2979 = vmatpush1.msra.mxu0 0.0
    %2980 = vmatprep.subr.mxu0 0.0
    %2981 = vmatpush1.msra.mxu0 0.0
    %2982 = vmatprep.subr.mxu0 0.0
    %2983 = vmatpush1.msra.mxu0 0.0
    %2984 = vmatprep.subr.mxu0 0.0
    %2985 = vmatpush1.msra.mxu0 0.0
    %2986 = vmatprep.subr.mxu0 0.0
    %2987 = vmatpush1.msra.mxu0 0.0
    %2988 = vmatprep.subr.mxu0 0.0
    %2989 = vmatpush1.msra.mxu0 0.0
    %2990 = vmatprep.subr.mxu0 0.0
    %2991 = vmatpush1.msra.mxu0 0.0
    %2992 = vmatprep.subr.mxu0 0.0
    %2993 = vmatpush1.msra.mxu0 0.0
    %2994 = vmatprep.subr.mxu0 0.0
    %2995 = vmatpush1.msra.mxu0 0.0
    %2996 = vmatprep.subr.mxu0 0.0
    %2997 = vmatpush1.msra.mxu0 0.0
    %2998 = vmatprep.subr.mxu0 0.0
    %2999 = vmatpush1.msra.mxu0 0.0
    %3000 = vmatprep.subr.mxu0 0.0
    %3001 = vmatpush1.msra.mxu0 0.0
    %3002 = vmatprep.subr.mxu0 0.0
    %3003 = vmatpush1.msra.mxu0 0.0
    %3004 = vmatprep.subr.mxu0 0.0
    %3005 = vmatpush1.msra.mxu0 0.0
    %3006 = vmatprep.subr.mxu0 0.0
    %3007 = vmatpush1.msra.mxu0 0.0
    %3008 = vmatprep.subr.mxu0 0.0
    %3009 = vmatpush1.msra.mxu0 0.0
    %3010 = vmatprep.subr.mxu0 0.0
    %3011 = vmatpush1.msra.mxu0 0.0
    %3012 = vmatprep.subr.mxu0 0.0
    %3013 = vmatpush1.msra.mxu0 0.0
    %3014 = vmatprep.subr.mxu0 0.0
    %3015 = vmatpush1.msra.mxu0 0.0
    %3016 = vmatprep.subr.mxu0 0.0
    %3017 = vmatpush1.msra.mxu0 0.0
    %3018 = vmatprep.subr.mxu0 0.0
    %3019 = vmatpush1.msra.mxu0 0.0
    %3020 = vmatprep.mubr.f32.mxu0 0.0
    %3021 = vmatmul.mubr.f32.gmra.mrb[0].mxu0 %v2954
    %v3022 = vpop.f32.mrb[0].mxu0
    %v3023 = vadd.f32 %v1613, %v3022
    %v3024 = vpop.f32.mrb[0].mxu0
    %3025 = vdwg.mxu0
    %v3026 = vtanh.pop %v3023
    %v3027 = vmul.f32 %v3026, 0.5
    %v3028 = vadd.f32 %v3027, 0.5
    %v3029 = vmul.f32 %v3028, %v2680
    %3031 = vrot.lane.b32.xlu0 %v3026, 32
    %v3032 = vpop.permute.xlu0 %3031
    %v3034 = vmul.f32 %v3028, %v3032
    %3036 = vrot.lane.b32.xlu0 %v3034, 32
    %v3037 = vpop.permute.xlu0 %3036
    %v3039 = vadd.f32 %v3029, %v3037
    %v3040 = vtanh.pop %v3039
    %3042 = vrot.lane.b32.xlu0 %v3040, 32
    %v3043 = vpop.permute.xlu0 %3042
    %v3045 = vmul.f32 %v3028, %v3043
    %3047 = vrot.lane.b32.xlu0 %v3045, 64
    %v3048 = vpop.permute.xlu0 %3047
    %3050 = vst.msk [vmem:[#allocation3 + $0x18] sm:$0xff] %vm241, %v3048
    %3051 = vrot.lane.b32.xlu0 %v2788, 80
    %v3052 = vpop.permute.xlu0 %3051
    %v3054 = vsel %vm111, %v2948, %v3052
    %v3056 = vsel %vm1622, %v3054, 0
    %3058 = vmatprep.subr.mxu0 0.0
    %3059 = vmatpush1.msra.mxu0 %v1581
    %3060 = vmatprep.subr.mxu0 0.0
    %3061 = vmatpush1.msra.mxu0 %v1582
    %3062 = vmatprep.subr.mxu0 0.0
    %3063 = vmatpush1.msra.mxu0 %v1583
    %3064 = vmatprep.subr.mxu0 0.0
    %3065 = vmatpush1.msra.mxu0 %v1584
    %3066 = vmatprep.subr.mxu0 0.0
    %3067 = vmatpush1.msra.mxu0 %v1585
    %3068 = vmatprep.subr.mxu0 0.0
    %3069 = vmatpush1.msra.mxu0 %v1586
    %3070 = vmatprep.subr.mxu0 0.0
    %3071 = vmatpush1.msra.mxu0 0.0
    %3072 = vmatprep.subr.mxu0 0.0
    %3073 = vmatpush1.msra.mxu0 0.0
    %3074 = vmatprep.subr.mxu0 0.0
    %3075 = vmatpush1.msra.mxu0 0.0
    %3076 = vmatprep.subr.mxu0 0.0
    %3077 = vmatpush1.msra.mxu0 0.0
    %3078 = vmatprep.subr.mxu0 0.0
    %3079 = vmatpush1.msra.mxu0 0.0
    %3080 = vmatprep.subr.mxu0 0.0
    %3081 = vmatpush1.msra.mxu0 0.0
    %3082 = vmatprep.subr.mxu0 0.0
    %3083 = vmatpush1.msra.mxu0 0.0
    %3084 = vmatprep.subr.mxu0 0.0
    %3085 = vmatpush1.msra.mxu0 0.0
    %3086 = vmatprep.subr.mxu0 0.0
    %3087 = vmatpush1.msra.mxu0 0.0
    %3088 = vmatprep.subr.mxu0 0.0
    %3089 = vmatpush1.msra.mxu0 0.0
    %3090 = vmatprep.subr.mxu0 0.0
    %3091 = vmatpush1.msra.mxu0 0.0
    %3092 = vmatprep.subr.mxu0 0.0
    %3093 = vmatpush1.msra.mxu0 0.0
    %3094 = vmatprep.subr.mxu0 0.0
    %3095 = vmatpush1.msra.mxu0 0.0
    %3096 = vmatprep.subr.mxu0 0.0
    %3097 = vmatpush1.msra.mxu0 0.0
    %3098 = vmatprep.subr.mxu0 0.0
    %3099 = vmatpush1.msra.mxu0 0.0
    %3100 = vmatprep.subr.mxu0 0.0
    %3101 = vmatpush1.msra.mxu0 0.0
    %3102 = vmatprep.subr.mxu0 0.0
    %3103 = vmatpush1.msra.mxu0 0.0
    %3104 = vmatprep.subr.mxu0 0.0
    %3105 = vmatpush1.msra.mxu0 0.0
    %3106 = vmatprep.subr.mxu0 0.0
    %3107 = vmatpush1.msra.mxu0 0.0
    %3108 = vmatprep.subr.mxu0 0.0
    %3109 = vmatpush1.msra.mxu0 0.0
    %3110 = vmatprep.subr.mxu0 0.0
    %3111 = vmatpush1.msra.mxu0 0.0
    %3112 = vmatprep.subr.mxu0 0.0
    %3113 = vmatpush1.msra.mxu0 0.0
    %3114 = vmatprep.subr.mxu0 0.0
    %3115 = vmatpush1.msra.mxu0 0.0
    %3116 = vmatprep.subr.mxu0 0.0
    %3117 = vmatpush1.msra.mxu0 0.0
    %3118 = vmatprep.subr.mxu0 0.0
    %3119 = vmatpush1.msra.mxu0 0.0
    %3120 = vmatprep.subr.mxu0 0.0
    %3121 = vmatpush1.msra.mxu0 0.0
    %3122 = vmatprep.mubr.f32.mxu0 0.0
    %3123 = vmatmul.mubr.f32.gmra.mrb[0].mxu0 %v3056
    %v3124 = vpop.f32.mrb[0].mxu0
    %v3125 = vadd.f32 %v1606, %v3124
    %v3126 = vpop.f32.mrb[0].mxu0
    %3127 = vdwg.mxu0
    %v3128 = vtanh.pop %v3125
    %v3129 = vmul.f32 %v3128, 0.5
    %v3130 = vadd.f32 %v3129, 0.5
    %v3131 = vmul.f32 %v3130, %v2782
    %3133 = vrot.lane.b32.xlu0 %v3128, 32
    %v3134 = vpop.permute.xlu0 %3133
    %v3136 = vmul.f32 %v3130, %v3134
    %3138 = vrot.lane.b32.xlu0 %v3136, 32
    %v3139 = vpop.permute.xlu0 %3138
    %v3141 = vadd.f32 %v3131, %v3139
    %v3142 = vtanh.pop %v3141
    %3144 = vrot.lane.b32.xlu0 %v3142, 32
    %v3145 = vpop.permute.xlu0 %3144
    %v3147 = vmul.f32 %v3130, %v3145
    %v3148 = vld [vmem:[#allocation2 + $0x20] sm:$0xff]
    %3150 = vrot.lane.b32.xlu0 %v3147, 64
    %v3151 = vpop.permute.xlu0 %3150
    %v3152 = vsel %vm241, %v3151, 0
    %3154 = vmatprep.subr.mxu0 0.0
    %3155 = vmatpush1.msra.mxu0 %v1587
    %3156 = vmatprep.subr.mxu0 0.0
    %3157 = vmatpush1.msra.mxu0 %v1588
    %3158 = vmatprep.subr.mxu0 0.0
    %3159 = vmatpush1.msra.mxu0 %v1589
    %3160 = vmatprep.subr.mxu0 0.0
    %3161 = vmatpush1.msra.mxu0 %v1590
    %3162 = vmatprep.subr.mxu0 0.0
    %3163 = vmatpush1.msra.mxu0 0.0
    %3164 = vmatprep.subr.mxu0 0.0
    %3165 = vmatpush1.msra.mxu0 0.0
    %3166 = vmatprep.subr.mxu0 0.0
    %3167 = vmatpush1.msra.mxu0 0.0
    %3168 = vmatprep.subr.mxu0 0.0
    %3169 = vmatpush1.msra.mxu0 0.0
    %3170 = vmatprep.subr.mxu0 0.0
    %3171 = vmatpush1.msra.mxu0 0.0
    %3172 = vmatprep.subr.mxu0 0.0
    %3173 = vmatpush1.msra.mxu0 0.0
    %3174 = vmatprep.subr.mxu0 0.0
    %3175 = vmatpush1.msra.mxu0 0.0
    %3176 = vmatprep.subr.mxu0 0.0
    %3177 = vmatpush1.msra.mxu0 0.0
    %3178 = vmatprep.subr.mxu0 0.0
    %3179 = vmatpush1.msra.mxu0 0.0
    %3180 = vmatprep.subr.mxu0 0.0
    %3181 = vmatpush1.msra.mxu0 0.0
    %3182 = vmatprep.subr.mxu0 0.0
    %3183 = vmatpush1.msra.mxu0 0.0
    %3184 = vmatprep.subr.mxu0 0.0
    %3185 = vmatpush1.msra.mxu0 0.0
    %3186 = vmatprep.subr.mxu0 0.0
    %3187 = vmatpush1.msra.mxu0 0.0
    %3188 = vmatprep.subr.mxu0 0.0
    %3189 = vmatpush1.msra.mxu0 0.0
    %3190 = vmatprep.subr.mxu0 0.0
    %3191 = vmatpush1.msra.mxu0 0.0
    %3192 = vmatprep.subr.mxu0 0.0
    %3193 = vmatpush1.msra.mxu0 0.0
    %3194 = vmatprep.subr.mxu0 0.0
    %3195 = vmatpush1.msra.mxu0 0.0
    %3196 = vmatprep.subr.mxu0 0.0
    %3197 = vmatpush1.msra.mxu0 0.0
    %3198 = vmatprep.subr.mxu0 0.0
    %3199 = vmatpush1.msra.mxu0 0.0
    %3200 = vmatprep.subr.mxu0 0.0
    %3201 = vmatpush1.msra.mxu0 0.0
    %3202 = vmatprep.subr.mxu0 0.0
    %3203 = vmatpush1.msra.mxu0 0.0
    %3204 = vmatprep.subr.mxu0 0.0
    %3205 = vmatpush1.msra.mxu0 0.0
    %3206 = vmatprep.subr.mxu0 0.0
    %3207 = vmatpush1.msra.mxu0 0.0
    %3208 = vmatprep.subr.mxu0 0.0
    %3209 = vmatpush1.msra.mxu0 0.0
    %3210 = vmatprep.subr.mxu0 0.0
    %3211 = vmatpush1.msra.mxu0 0.0
    %3212 = vmatprep.subr.mxu0 0.0
    %3213 = vmatpush1.msra.mxu0 0.0
    %3214 = vmatprep.subr.mxu0 0.0
    %3215 = vmatpush1.msra.mxu0 0.0
    %3216 = vmatprep.subr.mxu0 0.0
    %3217 = vmatpush1.msra.mxu0 0.0
    %3218 = vmatprep.mubr.f32.mxu0 0.0
    %3219 = vmatmul.mubr.f32.gmra.mrb[0].mxu0 %v3152
    %v3220 = vpop.f32.mrb[0].mxu0
    %v3221 = vadd.f32 0.0, %v3220
    %v3222 = vpop.f32.mrb[0].mxu0
    %3223 = vdwg.mxu0
    %v3224 = vadd.f32 %v3148, %v3221
    %v3225 = vtanh.pop %v3224
    %v3227 = vsel %vm241, %v3225, 0
    %3229 = vmatprep.subr.mxu0 0.0
    %3230 = vmatpush1.msra.mxu0 %v1591
    %3231 = vmatprep.subr.mxu0 0.0
    %3232 = vmatpush1.msra.mxu0 %v1592
    %3233 = vmatprep.subr.mxu0 0.0
    %3234 = vmatpush1.msra.mxu0 %v1593
    %3235 = vmatprep.subr.mxu0 0.0
    %3236 = vmatpush1.msra.mxu0 %v1594
    %3237 = vmatprep.subr.mxu0 0.0
    %3238 = vmatpush1.msra.mxu0 0.0
    %3239 = vmatprep.subr.mxu0 0.0
    %3240 = vmatpush1.msra.mxu0 0.0
    %3241 = vmatprep.subr.mxu0 0.0
    %3242 = vmatpush1.msra.mxu0 0.0
    %3243 = vmatprep.subr.mxu0 0.0
    %3244 = vmatpush1.msra.mxu0 0.0
    %3245 = vmatprep.subr.mxu0 0.0
    %3246 = vmatpush1.msra.mxu0 0.0
    %3247 = vmatprep.subr.mxu0 0.0
    %3248 = vmatpush1.msra.mxu0 0.0
    %3249 = vmatprep.subr.mxu0 0.0
    %3250 = vmatpush1.msra.mxu0 0.0
    %3251 = vmatprep.subr.mxu0 0.0
    %3252 = vmatpush1.msra.mxu0 0.0
    %3253 = vmatprep.subr.mxu0 0.0
    %3254 = vmatpush1.msra.mxu0 0.0
    %3255 = vmatprep.subr.mxu0 0.0
    %3256 = vmatpush1.msra.mxu0 0.0
    %3257 = vmatprep.subr.mxu0 0.0
    %3258 = vmatpush1.msra.mxu0 0.0
    %3259 = vmatprep.subr.mxu0 0.0
    %3260 = vmatpush1.msra.mxu0 0.0
    %3261 = vmatprep.subr.mxu0 0.0
    %3262 = vmatpush1.msra.mxu0 0.0
    %3263 = vmatprep.subr.mxu0 0.0
    %3264 = vmatpush1.msra.mxu0 0.0
    %3265 = vmatprep.subr.mxu0 0.0
    %3266 = vmatpush1.msra.mxu0 0.0
    %3267 = vmatprep.subr.mxu0 0.0
    %3268 = vmatpush1.msra.mxu0 0.0
    %3269 = vmatprep.subr.mxu0 0.0
    %3270 = vmatpush1.msra.mxu0 0.0
    %3271 = vmatprep.subr.mxu0 0.0
    %3272 = vmatpush1.msra.mxu0 0.0
    %3273 = vmatprep.subr.mxu0 0.0
    %3274 = vmatpush1.msra.mxu0 0.0
    %3275 = vmatprep.subr.mxu0 0.0
    %3276 = vmatpush1.msra.mxu0 0.0
    %3277 = vmatprep.subr.mxu0 0.0
    %3278 = vmatpush1.msra.mxu0 0.0
    %3279 = vmatprep.subr.mxu0 0.0
    %3280 = vmatpush1.msra.mxu0 0.0
    %3281 = vmatprep.subr.mxu0 0.0
    %3282 = vmatpush1.msra.mxu0 0.0
    %3283 = vmatprep.subr.mxu0 0.0
    %3284 = vmatpush1.msra.mxu0 0.0
    %3285 = vmatprep.subr.mxu0 0.0
    %3286 = vmatpush1.msra.mxu0 0.0
    %3287 = vmatprep.subr.mxu0 0.0
    %3288 = vmatpush1.msra.mxu0 0.0
    %3289 = vmatprep.subr.mxu0 0.0
    %3290 = vmatpush1.msra.mxu0 0.0
    %3291 = vmatprep.subr.mxu0 0.0
    %3292 = vmatpush1.msra.mxu0 0.0
    %3293 = vmatprep.mubr.f32.mxu0 0.0
    %3294 = vmatmul.mubr.f32.gmra.mrb[0].mxu0 %v3227
    %v3295 = vpop.f32.mrb[0].mxu0
    %v3296 = vadd.f32 %v1620, %v3295
    %v3297 = vpop.f32.mrb[0].mxu0
    %3298 = vdwg.mxu0
    %v3299 = vld [vmem:[%s1 + $0x20] sm:$0xff]
    %v3300 = vmul.f32 %v3296, 1.442695
    %v3301 = vpow.pop %v3300
    %3303 = vrot.lane.b32.xlu0 %v3301, 112
    %v3304 = vpop.permute.xlu0 %3303
    %v3306 = vmul.f32 %v3299, %v3304
    %v3307 = vadd.f32 %v3296, %v3306
    %3308 = vrot.lane.b32.xlu0 %v3045, 80
    %v3309 = vpop.permute.xlu0 %3308
    %v3311 = vsel %vm111, %v3307, %v3309
    %v3313 = vsel %vm1622, %v3311, 0
    %3315 = vmatprep.subr.mxu0 0.0
    %3316 = vmatpush1.msra.mxu0 %v1595
    %3317 = vmatprep.subr.mxu0 0.0
    %3318 = vmatpush1.msra.mxu0 %v1596
    %3319 = vmatprep.subr.mxu0 0.0
    %3320 = vmatpush1.msra.mxu0 %v1597
    %3321 = vmatprep.subr.mxu0 0.0
    %3322 = vmatpush1.msra.mxu0 %v1598
    %3323 = vmatprep.subr.mxu0 0.0
    %3324 = vmatpush1.msra.mxu0 %v1599
    %3325 = vmatprep.subr.mxu0 0.0
    %3326 = vmatpush1.msra.mxu0 %v1600
    %3327 = vmatprep.subr.mxu0 0.0
    %3328 = vmatpush1.msra.mxu0 0.0
    %3329 = vmatprep.subr.mxu0 0.0
    %3330 = vmatpush1.msra.mxu0 0.0
    %3331 = vmatprep.subr.mxu0 0.0
    %3332 = vmatpush1.msra.mxu0 0.0
    %3333 = vmatprep.subr.mxu0 0.0
    %3334 = vmatpush1.msra.mxu0 0.0
    %3335 = vmatprep.subr.mxu0 0.0
    %3336 = vmatpush1.msra.mxu0 0.0
    %3337 = vmatprep.subr.mxu0 0.0
    %3338 = vmatpush1.msra.mxu0 0.0
    %3339 = vmatprep.subr.mxu0 0.0
    %3340 = vmatpush1.msra.mxu0 0.0
    %3341 = vmatprep.subr.mxu0 0.0
    %3342 = vmatpush1.msra.mxu0 0.0
    %3343 = vmatprep.subr.mxu0 0.0
    %3344 = vmatpush1.msra.mxu0 0.0
    %3345 = vmatprep.subr.mxu0 0.0
    %3346 = vmatpush1.msra.mxu0 0.0
    %3347 = vmatprep.subr.mxu0 0.0
    %3348 = vmatpush1.msra.mxu0 0.0
    %3349 = vmatprep.subr.mxu0 0.0
    %3350 = vmatpush1.msra.mxu0 0.0
    %3351 = vmatprep.subr.mxu0 0.0
    %3352 = vmatpush1.msra.mxu0 0.0
    %3353 = vmatprep.subr.mxu0 0.0
    %3354 = vmatpush1.msra.mxu0 0.0
    %3355 = vmatprep.subr.mxu0 0.0
    %3356 = vmatpush1.msra.mxu0 0.0
    %3357 = vmatprep.subr.mxu0 0.0
    %3358 = vmatpush1.msra.mxu0 0.0
    %3359 = vmatprep.subr.mxu0 0.0
    %3360 = vmatpush1.msra.mxu0 0.0
    %3361 = vmatprep.subr.mxu0 0.0
    %3362 = vmatpush1.msra.mxu0 0.0
    %3363 = vmatprep.subr.mxu0 0.0
    %3364 = vmatpush1.msra.mxu0 0.0
    %3365 = vmatprep.subr.mxu0 0.0
    %3366 = vmatpush1.msra.mxu0 0.0
    %3367 = vmatprep.subr.mxu0 0.0
    %3368 = vmatpush1.msra.mxu0 0.0
    %3369 = vmatprep.subr.mxu0 0.0
    %3370 = vmatpush1.msra.mxu0 0.0
    %3371 = vmatprep.subr.mxu0 0.0
    %3372 = vmatpush1.msra.mxu0 0.0
    %3373 = vmatprep.subr.mxu0 0.0
    %3374 = vmatpush1.msra.mxu0 0.0
    %3375 = vmatprep.subr.mxu0 0.0
    %3376 = vmatpush1.msra.mxu0 0.0
    %3377 = vmatprep.subr.mxu0 0.0
    %3378 = vmatpush1.msra.mxu0 0.0
    %3379 = vmatprep.mubr.f32.mxu0 0.0
    %3380 = vmatmul.mubr.f32.gmra.mrb[0].mxu0 %v3313
    %v3381 = vpop.f32.mrb[0].mxu0
    %v3382 = vadd.f32 %v1613, %v3381
    %v3383 = vpop.f32.mrb[0].mxu0
    %3384 = vdwg.mxu0
    %v3385 = vtanh.pop %v3382
    %v3386 = vmul.f32 %v3385, 0.5
    %v3387 = vadd.f32 %v3386, 0.5
    %v3388 = vmul.f32 %v3387, %v3039
    %3390 = vrot.lane.b32.xlu0 %v3385, 32
    %v3391 = vpop.permute.xlu0 %3390
    %v3393 = vmul.f32 %v3387, %v3391
    %3395 = vrot.lane.b32.xlu0 %v3393, 32
    %v3396 = vpop.permute.xlu0 %3395
    %v3398 = vadd.f32 %v3388, %v3396
    %v3399 = vtanh.pop %v3398
    %3401 = vrot.lane.b32.xlu0 %v3399, 32
    %v3402 = vpop.permute.xlu0 %3401
    %v3404 = vmul.f32 %v3387, %v3402
    %3406 = vrot.lane.b32.xlu0 %v3404, 64
    %v3407 = vpop.permute.xlu0 %3406
    %3409 = vst.msk [vmem:[#allocation3 + $0x20] sm:$0xff] %vm241, %v3407
    %3410 = vrot.lane.b32.xlu0 %v3147, 80
    %v3411 = vpop.permute.xlu0 %3410
    %v3413 = vsel %vm111, %v3307, %v3411
    %v3415 = vsel %vm1622, %v3413, 0
    %3417 = vmatprep.subr.mxu0 0.0
    %3418 = vmatpush1.msra.mxu0 %v1581
    %3419 = vmatprep.subr.mxu0 0.0
    %3420 = vmatpush1.msra.mxu0 %v1582
    %3421 = vmatprep.subr.mxu0 0.0
    %3422 = vmatpush1.msra.mxu0 %v1583
    %3423 = vmatprep.subr.mxu0 0.0
    %3424 = vmatpush1.msra.mxu0 %v1584
    %3425 = vmatprep.subr.mxu0 0.0
    %3426 = vmatpush1.msra.mxu0 %v1585
    %3427 = vmatprep.subr.mxu0 0.0
    %3428 = vmatpush1.msra.mxu0 %v1586
    %3429 = vmatprep.subr.mxu0 0.0
    %3430 = vmatpush1.msra.mxu0 0.0
    %3431 = vmatprep.subr.mxu0 0.0
    %3432 = vmatpush1.msra.mxu0 0.0
    %3433 = vmatprep.subr.mxu0 0.0
    %3434 = vmatpush1.msra.mxu0 0.0
    %3435 = vmatprep.subr.mxu0 0.0
    %3436 = vmatpush1.msra.mxu0 0.0
    %3437 = vmatprep.subr.mxu0 0.0
    %3438 = vmatpush1.msra.mxu0 0.0
    %3439 = vmatprep.subr.mxu0 0.0
    %3440 = vmatpush1.msra.mxu0 0.0
    %3441 = vmatprep.subr.mxu0 0.0
    %3442 = vmatpush1.msra.mxu0 0.0
    %3443 = vmatprep.subr.mxu0 0.0
    %3444 = vmatpush1.msra.mxu0 0.0
    %3445 = vmatprep.subr.mxu0 0.0
    %3446 = vmatpush1.msra.mxu0 0.0
    %3447 = vmatprep.subr.mxu0 0.0
    %3448 = vmatpush1.msra.mxu0 0.0
    %3449 = vmatprep.subr.mxu0 0.0
    %3450 = vmatpush1.msra.mxu0 0.0
    %3451 = vmatprep.subr.mxu0 0.0
    %3452 = vmatpush1.msra.mxu0 0.0
    %3453 = vmatprep.subr.mxu0 0.0
    %3454 = vmatpush1.msra.mxu0 0.0
    %3455 = vmatprep.subr.mxu0 0.0
    %3456 = vmatpush1.msra.mxu0 0.0
    %3457 = vmatprep.subr.mxu0 0.0
    %3458 = vmatpush1.msra.mxu0 0.0
    %3459 = vmatprep.subr.mxu0 0.0
    %3460 = vmatpush1.msra.mxu0 0.0
    %3461 = vmatprep.subr.mxu0 0.0
    %3462 = vmatpush1.msra.mxu0 0.0
    %3463 = vmatprep.subr.mxu0 0.0
    %3464 = vmatpush1.msra.mxu0 0.0
    %3465 = vmatprep.subr.mxu0 0.0
    %3466 = vmatpush1.msra.mxu0 0.0
    %3467 = vmatprep.subr.mxu0 0.0
    %3468 = vmatpush1.msra.mxu0 0.0
    %3469 = vmatprep.subr.mxu0 0.0
    %3470 = vmatpush1.msra.mxu0 0.0
    %3471 = vmatprep.subr.mxu0 0.0
    %3472 = vmatpush1.msra.mxu0 0.0
    %3473 = vmatprep.subr.mxu0 0.0
    %3474 = vmatpush1.msra.mxu0 0.0
    %3475 = vmatprep.subr.mxu0 0.0
    %3476 = vmatpush1.msra.mxu0 0.0
    %3477 = vmatprep.subr.mxu0 0.0
    %3478 = vmatpush1.msra.mxu0 0.0
    %3479 = vmatprep.subr.mxu0 0.0
    %3480 = vmatpush1.msra.mxu0 0.0
    %3481 = vmatprep.mubr.f32.mxu0 0.0
    %3482 = vmatmul.mubr.f32.gmra.mrb[0].mxu0 %v3415
    %v3483 = vpop.f32.mrb[0].mxu0
    %v3484 = vadd.f32 %v1606, %v3483
    %v3485 = vpop.f32.mrb[0].mxu0
    %3486 = vdwg.mxu0
    %v3487 = vtanh.pop %v3484
    %v3488 = vmul.f32 %v3487, 0.5
    %v3489 = vadd.f32 %v3488, 0.5
    %v3490 = vmul.f32 %v3489, %v3141
    %3492 = vrot.lane.b32.xlu0 %v3487, 32
    %v3493 = vpop.permute.xlu0 %3492
    %v3495 = vmul.f32 %v3489, %v3493
    %3497 = vrot.lane.b32.xlu0 %v3495, 32
    %v3498 = vpop.permute.xlu0 %3497
    %v3500 = vadd.f32 %v3490, %v3498
    %v3501 = vtanh.pop %v3500
    %3503 = vrot.lane.b32.xlu0 %v3501, 32
    %v3504 = vpop.permute.xlu0 %3503
    %v3506 = vmul.f32 %v3489, %v3504
    %v3507 = vld [vmem:[#allocation2 + $0x28] sm:$0xff]
    %3509 = vrot.lane.b32.xlu0 %v3506, 64
    %v3510 = vpop.permute.xlu0 %3509
    %v3511 = vsel %vm241, %v3510, 0
    %3513 = vmatprep.subr.mxu0 0.0
    %3514 = vmatpush1.msra.mxu0 %v1587
    %3515 = vmatprep.subr.mxu0 0.0
    %3516 = vmatpush1.msra.mxu0 %v1588
    %3517 = vmatprep.subr.mxu0 0.0
    %3518 = vmatpush1.msra.mxu0 %v1589
    %3519 = vmatprep.subr.mxu0 0.0
    %3520 = vmatpush1.msra.mxu0 %v1590
    %3521 = vmatprep.subr.mxu0 0.0
    %3522 = vmatpush1.msra.mxu0 0.0
    %3523 = vmatprep.subr.mxu0 0.0
    %3524 = vmatpush1.msra.mxu0 0.0
    %3525 = vmatprep.subr.mxu0 0.0
    %3526 = vmatpush1.msra.mxu0 0.0
    %3527 = vmatprep.subr.mxu0 0.0
    %3528 = vmatpush1.msra.mxu0 0.0
    %3529 = vmatprep.subr.mxu0 0.0
    %3530 = vmatpush1.msra.mxu0 0.0
    %3531 = vmatprep.subr.mxu0 0.0
    %3532 = vmatpush1.msra.mxu0 0.0
    %3533 = vmatprep.subr.mxu0 0.0
    %3534 = vmatpush1.msra.mxu0 0.0
    %3535 = vmatprep.subr.mxu0 0.0
    %3536 = vmatpush1.msra.mxu0 0.0
    %3537 = vmatprep.subr.mxu0 0.0
    %3538 = vmatpush1.msra.mxu0 0.0
    %3539 = vmatprep.subr.mxu0 0.0
    %3540 = vmatpush1.msra.mxu0 0.0
    %3541 = vmatprep.subr.mxu0 0.0
    %3542 = vmatpush1.msra.mxu0 0.0
    %3543 = vmatprep.subr.mxu0 0.0
    %3544 = vmatpush1.msra.mxu0 0.0
    %3545 = vmatprep.subr.mxu0 0.0
    %3546 = vmatpush1.msra.mxu0 0.0
    %3547 = vmatprep.subr.mxu0 0.0
    %3548 = vmatpush1.msra.mxu0 0.0
    %3549 = vmatprep.subr.mxu0 0.0
    %3550 = vmatpush1.msra.mxu0 0.0
    %3551 = vmatprep.subr.mxu0 0.0
    %3552 = vmatpush1.msra.mxu0 0.0
    %3553 = vmatprep.subr.mxu0 0.0
    %3554 = vmatpush1.msra.mxu0 0.0
    %3555 = vmatprep.subr.mxu0 0.0
    %3556 = vmatpush1.msra.mxu0 0.0
    %3557 = vmatprep.subr.mxu0 0.0
    %3558 = vmatpush1.msra.mxu0 0.0
    %3559 = vmatprep.subr.mxu0 0.0
    %3560 = vmatpush1.msra.mxu0 0.0
    %3561 = vmatprep.subr.mxu0 0.0
    %3562 = vmatpush1.msra.mxu0 0.0
    %3563 = vmatprep.subr.mxu0 0.0
    %3564 = vmatpush1.msra.mxu0 0.0
    %3565 = vmatprep.subr.mxu0 0.0
    %3566 = vmatpush1.msra.mxu0 0.0
    %3567 = vmatprep.subr.mxu0 0.0
    %3568 = vmatpush1.msra.mxu0 0.0
    %3569 = vmatprep.subr.mxu0 0.0
    %3570 = vmatpush1.msra.mxu0 0.0
    %3571 = vmatprep.subr.mxu0 0.0
    %3572 = vmatpush1.msra.mxu0 0.0
    %3573 = vmatprep.subr.mxu0 0.0
    %3574 = vmatpush1.msra.mxu0 0.0
    %3575 = vmatprep.subr.mxu0 0.0
    %3576 = vmatpush1.msra.mxu0 0.0
    %3577 = vmatprep.mubr.f32.mxu0 0.0
    %3578 = vmatmul.mubr.f32.gmra.mrb[0].mxu0 %v3511
    %v3579 = vpop.f32.mrb[0].mxu0
    %v3580 = vadd.f32 0.0, %v3579
    %v3581 = vpop.f32.mrb[0].mxu0
    %3582 = vdwg.mxu0
    %v3583 = vadd.f32 %v3507, %v3580
    %v3584 = vtanh.pop %v3583
    %v3586 = vsel %vm241, %v3584, 0
    %3588 = vmatprep.subr.mxu0 0.0
    %3589 = vmatpush1.msra.mxu0 %v1591
    %3590 = vmatprep.subr.mxu0 0.0
    %3591 = vmatpush1.msra.mxu0 %v1592
    %3592 = vmatprep.subr.mxu0 0.0
    %3593 = vmatpush1.msra.mxu0 %v1593
    %3594 = vmatprep.subr.mxu0 0.0
    %3595 = vmatpush1.msra.mxu0 %v1594
    %3596 = vmatprep.subr.mxu0 0.0
    %3597 = vmatpush1.msra.mxu0 0.0
    %3598 = vmatprep.subr.mxu0 0.0
    %3599 = vmatpush1.msra.mxu0 0.0
    %3600 = vmatprep.subr.mxu0 0.0
    %3601 = vmatpush1.msra.mxu0 0.0
    %3602 = vmatprep.subr.mxu0 0.0
    %3603 = vmatpush1.msra.mxu0 0.0
    %3604 = vmatprep.subr.mxu0 0.0
    %3605 = vmatpush1.msra.mxu0 0.0
    %3606 = vmatprep.subr.mxu0 0.0
    %3607 = vmatpush1.msra.mxu0 0.0
    %3608 = vmatprep.subr.mxu0 0.0
    %3609 = vmatpush1.msra.mxu0 0.0
    %3610 = vmatprep.subr.mxu0 0.0
    %3611 = vmatpush1.msra.mxu0 0.0
    %3612 = vmatprep.subr.mxu0 0.0
    %3613 = vmatpush1.msra.mxu0 0.0
    %3614 = vmatprep.subr.mxu0 0.0
    %3615 = vmatpush1.msra.mxu0 0.0
    %3616 = vmatprep.subr.mxu0 0.0
    %3617 = vmatpush1.msra.mxu0 0.0
    %3618 = vmatprep.subr.mxu0 0.0
    %3619 = vmatpush1.msra.mxu0 0.0
    %3620 = vmatprep.subr.mxu0 0.0
    %3621 = vmatpush1.msra.mxu0 0.0
    %3622 = vmatprep.subr.mxu0 0.0
    %3623 = vmatpush1.msra.mxu0 0.0
    %3624 = vmatprep.subr.mxu0 0.0
    %3625 = vmatpush1.msra.mxu0 0.0
    %3626 = vmatprep.subr.mxu0 0.0
    %3627 = vmatpush1.msra.mxu0 0.0
    %3628 = vmatprep.subr.mxu0 0.0
    %3629 = vmatpush1.msra.mxu0 0.0
    %3630 = vmatprep.subr.mxu0 0.0
    %3631 = vmatpush1.msra.mxu0 0.0
    %3632 = vmatprep.subr.mxu0 0.0
    %3633 = vmatpush1.msra.mxu0 0.0
    %3634 = vmatprep.subr.mxu0 0.0
    %3635 = vmatpush1.msra.mxu0 0.0
    %3636 = vmatprep.subr.mxu0 0.0
    %3637 = vmatpush1.msra.mxu0 0.0
    %3638 = vmatprep.subr.mxu0 0.0
    %3639 = vmatpush1.msra.mxu0 0.0
    %3640 = vmatprep.subr.mxu0 0.0
    %3641 = vmatpush1.msra.mxu0 0.0
    %3642 = vmatprep.subr.mxu0 0.0
    %3643 = vmatpush1.msra.mxu0 0.0
    %3644 = vmatprep.subr.mxu0 0.0
    %3645 = vmatpush1.msra.mxu0 0.0
    %3646 = vmatprep.subr.mxu0 0.0
    %3647 = vmatpush1.msra.mxu0 0.0
    %3648 = vmatprep.subr.mxu0 0.0
    %3649 = vmatpush1.msra.mxu0 0.0
    %3650 = vmatprep.subr.mxu0 0.0
    %3651 = vmatpush1.msra.mxu0 0.0
    %3652 = vmatprep.mubr.f32.mxu0 0.0
    %3653 = vmatmul.mubr.f32.gmra.mrb[0].mxu0 %v3586
    %v3654 = vpop.f32.mrb[0].mxu0
    %v3655 = vadd.f32 %v1620, %v3654
    %v3656 = vpop.f32.mrb[0].mxu0
    %3657 = vdwg.mxu0
    %v3658 = vld [vmem:[%s1 + $0x28] sm:$0xff]
    %v3659 = vmul.f32 %v3655, 1.442695
    %v3660 = vpow.pop %v3659
    %3662 = vrot.lane.b32.xlu0 %v3660, 112
    %v3663 = vpop.permute.xlu0 %3662
    %v3665 = vmul.f32 %v3658, %v3663
    %v3666 = vadd.f32 %v3655, %v3665
    %3667 = vrot.lane.b32.xlu0 %v3404, 80
    %v3668 = vpop.permute.xlu0 %3667
    %v3670 = vsel %vm111, %v3666, %v3668
    %v3672 = vsel %vm1622, %v3670, 0
    %3674 = vmatprep.subr.mxu0 0.0
    %3675 = vmatpush1.msra.mxu0 %v1595
    %3676 = vmatprep.subr.mxu0 0.0
    %3677 = vmatpush1.msra.mxu0 %v1596
    %3678 = vmatprep.subr.mxu0 0.0
    %3679 = vmatpush1.msra.mxu0 %v1597
    %3680 = vmatprep.subr.mxu0 0.0
    %3681 = vmatpush1.msra.mxu0 %v1598
    %3682 = vmatprep.subr.mxu0 0.0
    %3683 = vmatpush1.msra.mxu0 %v1599
    %3684 = vmatprep.subr.mxu0 0.0
    %3685 = vmatpush1.msra.mxu0 %v1600
    %3686 = vmatprep.subr.mxu0 0.0
    %3687 = vmatpush1.msra.mxu0 0.0
    %3688 = vmatprep.subr.mxu0 0.0
    %3689 = vmatpush1.msra.mxu0 0.0
    %3690 = vmatprep.subr.mxu0 0.0
    %3691 = vmatpush1.msra.mxu0 0.0
    %3692 = vmatprep.subr.mxu0 0.0
    %3693 = vmatpush1.msra.mxu0 0.0
    %3694 = vmatprep.subr.mxu0 0.0
    %3695 = vmatpush1.msra.mxu0 0.0
    %3696 = vmatprep.subr.mxu0 0.0
    %3697 = vmatpush1.msra.mxu0 0.0
    %3698 = vmatprep.subr.mxu0 0.0
    %3699 = vmatpush1.msra.mxu0 0.0
    %3700 = vmatprep.subr.mxu0 0.0
    %3701 = vmatpush1.msra.mxu0 0.0
    %3702 = vmatprep.subr.mxu0 0.0
    %3703 = vmatpush1.msra.mxu0 0.0
    %3704 = vmatprep.subr.mxu0 0.0
    %3705 = vmatpush1.msra.mxu0 0.0
    %3706 = vmatprep.subr.mxu0 0.0
    %3707 = vmatpush1.msra.mxu0 0.0
    %3708 = vmatprep.subr.mxu0 0.0
    %3709 = vmatpush1.msra.mxu0 0.0
    %3710 = vmatprep.subr.mxu0 0.0
    %3711 = vmatpush1.msra.mxu0 0.0
    %3712 = vmatprep.subr.mxu0 0.0
    %3713 = vmatpush1.msra.mxu0 0.0
    %3714 = vmatprep.subr.mxu0 0.0
    %3715 = vmatpush1.msra.mxu0 0.0
    %3716 = vmatprep.subr.mxu0 0.0
    %3717 = vmatpush1.msra.mxu0 0.0
    %3718 = vmatprep.subr.mxu0 0.0
    %3719 = vmatpush1.msra.mxu0 0.0
    %3720 = vmatprep.subr.mxu0 0.0
    %3721 = vmatpush1.msra.mxu0 0.0
    %3722 = vmatprep.subr.mxu0 0.0
    %3723 = vmatpush1.msra.mxu0 0.0
    %3724 = vmatprep.subr.mxu0 0.0
    %3725 = vmatpush1.msra.mxu0 0.0
    %3726 = vmatprep.subr.mxu0 0.0
    %3727 = vmatpush1.msra.mxu0 0.0
    %3728 = vmatprep.subr.mxu0 0.0
    %3729 = vmatpush1.msra.mxu0 0.0
    %3730 = vmatprep.subr.mxu0 0.0
    %3731 = vmatpush1.msra.mxu0 0.0
    %3732 = vmatprep.subr.mxu0 0.0
    %3733 = vmatpush1.msra.mxu0 0.0
    %3734 = vmatprep.subr.mxu0 0.0
    %3735 = vmatpush1.msra.mxu0 0.0
    %3736 = vmatprep.subr.mxu0 0.0
    %3737 = vmatpush1.msra.mxu0 0.0
    %3738 = vmatprep.mubr.f32.mxu0 0.0
    %3739 = vmatmul.mubr.f32.gmra.mrb[0].mxu0 %v3672
    %v3740 = vpop.f32.mrb[0].mxu0
    %v3741 = vadd.f32 %v1613, %v3740
    %v3742 = vpop.f32.mrb[0].mxu0
    %3743 = vdwg.mxu0
    %v3744 = vtanh.pop %v3741
    %v3745 = vmul.f32 %v3744, 0.5
    %v3746 = vadd.f32 %v3745, 0.5
    %v3747 = vmul.f32 %v3746, %v3398
    %3749 = vrot.lane.b32.xlu0 %v3744, 32
    %v3750 = vpop.permute.xlu0 %3749
    %v3752 = vmul.f32 %v3746, %v3750
    %3754 = vrot.lane.b32.xlu0 %v3752, 32
    %v3755 = vpop.permute.xlu0 %3754
    %v3757 = vadd.f32 %v3747, %v3755
    %v3758 = vtanh.pop %v3757
    %3760 = vrot.lane.b32.xlu0 %v3758, 32
    %v3761 = vpop.permute.xlu0 %3760
    %v3763 = vmul.f32 %v3746, %v3761
    %3765 = vrot.lane.b32.xlu0 %v3763, 64
    %v3766 = vpop.permute.xlu0 %3765
    %3768 = vst.msk [vmem:[#allocation3 + $0x28] sm:$0xff] %vm241, %v3766
    %3769 = vrot.lane.b32.xlu0 %v3506, 80
    %v3770 = vpop.permute.xlu0 %3769
    %v3772 = vsel %vm111, %v3666, %v3770
    %v3774 = vsel %vm1622, %v3772, 0
    %3776 = vmatprep.subr.mxu0 0.0
    %3777 = vmatpush1.msra.mxu0 %v1581
    %3778 = vmatprep.subr.mxu0 0.0
    %3779 = vmatpush1.msra.mxu0 %v1582
    %3780 = vmatprep.subr.mxu0 0.0
    %3781 = vmatpush1.msra.mxu0 %v1583
    %3782 = vmatprep.subr.mxu0 0.0
    %3783 = vmatpush1.msra.mxu0 %v1584
    %3784 = vmatprep.subr.mxu0 0.0
    %3785 = vmatpush1.msra.mxu0 %v1585
    %3786 = vmatprep.subr.mxu0 0.0
    %3787 = vmatpush1.msra.mxu0 %v1586
    %3788 = vmatprep.subr.mxu0 0.0
    %3789 = vmatpush1.msra.mxu0 0.0
    %3790 = vmatprep.subr.mxu0 0.0
    %3791 = vmatpush1.msra.mxu0 0.0
    %3792 = vmatprep.subr.mxu0 0.0
    %3793 = vmatpush1.msra.mxu0 0.0
    %3794 = vmatprep.subr.mxu0 0.0
    %3795 = vmatpush1.msra.mxu0 0.0
    %3796 = vmatprep.subr.mxu0 0.0
    %3797 = vmatpush1.msra.mxu0 0.0
    %3798 = vmatprep.subr.mxu0 0.0
    %3799 = vmatpush1.msra.mxu0 0.0
    %3800 = vmatprep.subr.mxu0 0.0
    %3801 = vmatpush1.msra.mxu0 0.0
    %3802 = vmatprep.subr.mxu0 0.0
    %3803 = vmatpush1.msra.mxu0 0.0
    %3804 = vmatprep.subr.mxu0 0.0
    %3805 = vmatpush1.msra.mxu0 0.0
    %3806 = vmatprep.subr.mxu0 0.0
    %3807 = vmatpush1.msra.mxu0 0.0
    %3808 = vmatprep.subr.mxu0 0.0
    %3809 = vmatpush1.msra.mxu0 0.0
    %3810 = vmatprep.subr.mxu0 0.0
    %3811 = vmatpush1.msra.mxu0 0.0
    %3812 = vmatprep.subr.mxu0 0.0
    %3813 = vmatpush1.msra.mxu0 0.0
    %3814 = vmatprep.subr.mxu0 0.0
    %3815 = vmatpush1.msra.mxu0 0.0
    %3816 = vmatprep.subr.mxu0 0.0
    %3817 = vmatpush1.msra.mxu0 0.0
    %3818 = vmatprep.subr.mxu0 0.0
    %3819 = vmatpush1.msra.mxu0 0.0
    %3820 = vmatprep.subr.mxu0 0.0
    %3821 = vmatpush1.msra.mxu0 0.0
    %3822 = vmatprep.subr.mxu0 0.0
    %3823 = vmatpush1.msra.mxu0 0.0
    %3824 = vmatprep.subr.mxu0 0.0
    %3825 = vmatpush1.msra.mxu0 0.0
    %3826 = vmatprep.subr.mxu0 0.0
    %3827 = vmatpush1.msra.mxu0 0.0
    %3828 = vmatprep.subr.mxu0 0.0
    %3829 = vmatpush1.msra.mxu0 0.0
    %3830 = vmatprep.subr.mxu0 0.0
    %3831 = vmatpush1.msra.mxu0 0.0
    %3832 = vmatprep.subr.mxu0 0.0
    %3833 = vmatpush1.msra.mxu0 0.0
    %3834 = vmatprep.subr.mxu0 0.0
    %3835 = vmatpush1.msra.mxu0 0.0
    %3836 = vmatprep.subr.mxu0 0.0
    %3837 = vmatpush1.msra.mxu0 0.0
    %3838 = vmatprep.subr.mxu0 0.0
    %3839 = vmatpush1.msra.mxu0 0.0
    %3840 = vmatprep.mubr.f32.mxu0 0.0
    %3841 = vmatmul.mubr.f32.gmra.mrb[0].mxu0 %v3774
    %v3842 = vpop.f32.mrb[0].mxu0
    %v3843 = vadd.f32 %v1606, %v3842
    %v3844 = vpop.f32.mrb[0].mxu0
    %3845 = vdwg.mxu0
    %v3846 = vtanh.pop %v3843
    %v3847 = vmul.f32 %v3846, 0.5
    %v3848 = vadd.f32 %v3847, 0.5
    %v3849 = vmul.f32 %v3848, %v3500
    %3851 = vrot.lane.b32.xlu0 %v3846, 32
    %v3852 = vpop.permute.xlu0 %3851
    %v3854 = vmul.f32 %v3848, %v3852
    %3856 = vrot.lane.b32.xlu0 %v3854, 32
    %v3857 = vpop.permute.xlu0 %3856
    %v3859 = vadd.f32 %v3849, %v3857
    %v3860 = vtanh.pop %v3859
    %3862 = vrot.lane.b32.xlu0 %v3860, 32
    %v3863 = vpop.permute.xlu0 %3862
    %v3865 = vmul.f32 %v3848, %v3863
    %v3866 = vld [vmem:[#allocation2 + $0x30] sm:$0xff]
    %3868 = vrot.lane.b32.xlu0 %v3865, 64
    %v3869 = vpop.permute.xlu0 %3868
    %v3870 = vsel %vm241, %v3869, 0
    %3872 = vmatprep.subr.mxu0 0.0
    %3873 = vmatpush1.msra.mxu0 %v1587
    %3874 = vmatprep.subr.mxu0 0.0
    %3875 = vmatpush1.msra.mxu0 %v1588
    %3876 = vmatprep.subr.mxu0 0.0
    %3877 = vmatpush1.msra.mxu0 %v1589
    %3878 = vmatprep.subr.mxu0 0.0
    %3879 = vmatpush1.msra.mxu0 %v1590
    %3880 = vmatprep.subr.mxu0 0.0
    %3881 = vmatpush1.msra.mxu0 0.0
    %3882 = vmatprep.subr.mxu0 0.0
    %3883 = vmatpush1.msra.mxu0 0.0
    %3884 = vmatprep.subr.mxu0 0.0
    %3885 = vmatpush1.msra.mxu0 0.0
    %3886 = vmatprep.subr.mxu0 0.0
    %3887 = vmatpush1.msra.mxu0 0.0
    %3888 = vmatprep.subr.mxu0 0.0
    %3889 = vmatpush1.msra.mxu0 0.0
    %3890 = vmatprep.subr.mxu0 0.0
    %3891 = vmatpush1.msra.mxu0 0.0
    %3892 = vmatprep.subr.mxu0 0.0
    %3893 = vmatpush1.msra.mxu0 0.0
    %3894 = vmatprep.subr.mxu0 0.0
    %3895 = vmatpush1.msra.mxu0 0.0
    %3896 = vmatprep.subr.mxu0 0.0
    %3897 = vmatpush1.msra.mxu0 0.0
    %3898 = vmatprep.subr.mxu0 0.0
    %3899 = vmatpush1.msra.mxu0 0.0
    %3900 = vmatprep.subr.mxu0 0.0
    %3901 = vmatpush1.msra.mxu0 0.0
    %3902 = vmatprep.subr.mxu0 0.0
    %3903 = vmatpush1.msra.mxu0 0.0
    %3904 = vmatprep.subr.mxu0 0.0
    %3905 = vmatpush1.msra.mxu0 0.0
    %3906 = vmatprep.subr.mxu0 0.0
    %3907 = vmatpush1.msra.mxu0 0.0
    %3908 = vmatprep.subr.mxu0 0.0
    %3909 = vmatpush1.msra.mxu0 0.0
    %3910 = vmatprep.subr.mxu0 0.0
    %3911 = vmatpush1.msra.mxu0 0.0
    %3912 = vmatprep.subr.mxu0 0.0
    %3913 = vmatpush1.msra.mxu0 0.0
    %3914 = vmatprep.subr.mxu0 0.0
    %3915 = vmatpush1.msra.mxu0 0.0
    %3916 = vmatprep.subr.mxu0 0.0
    %3917 = vmatpush1.msra.mxu0 0.0
    %3918 = vmatprep.subr.mxu0 0.0
    %3919 = vmatpush1.msra.mxu0 0.0
    %3920 = vmatprep.subr.mxu0 0.0
    %3921 = vmatpush1.msra.mxu0 0.0
    %3922 = vmatprep.subr.mxu0 0.0
    %3923 = vmatpush1.msra.mxu0 0.0
    %3924 = vmatprep.subr.mxu0 0.0
    %3925 = vmatpush1.msra.mxu0 0.0
    %3926 = vmatprep.subr.mxu0 0.0
    %3927 = vmatpush1.msra.mxu0 0.0
    %3928 = vmatprep.subr.mxu0 0.0
    %3929 = vmatpush1.msra.mxu0 0.0
    %3930 = vmatprep.subr.mxu0 0.0
    %3931 = vmatpush1.msra.mxu0 0.0
    %3932 = vmatprep.subr.mxu0 0.0
    %3933 = vmatpush1.msra.mxu0 0.0
    %3934 = vmatprep.subr.mxu0 0.0
    %3935 = vmatpush1.msra.mxu0 0.0
    %3936 = vmatprep.mubr.f32.mxu0 0.0
    %3937 = vmatmul.mubr.f32.gmra.mrb[0].mxu0 %v3870
    %v3938 = vpop.f32.mrb[0].mxu0
    %v3939 = vadd.f32 0.0, %v3938
    %v3940 = vpop.f32.mrb[0].mxu0
    %3941 = vdwg.mxu0
    %v3942 = vadd.f32 %v3866, %v3939
    %v3943 = vtanh.pop %v3942
    %v3945 = vsel %vm241, %v3943, 0
    %3947 = vmatprep.subr.mxu0 0.0
    %3948 = vmatpush1.msra.mxu0 %v1591
    %3949 = vmatprep.subr.mxu0 0.0
    %3950 = vmatpush1.msra.mxu0 %v1592
    %3951 = vmatprep.subr.mxu0 0.0
    %3952 = vmatpush1.msra.mxu0 %v1593
    %3953 = vmatprep.subr.mxu0 0.0
    %3954 = vmatpush1.msra.mxu0 %v1594
    %3955 = vmatprep.subr.mxu0 0.0
    %3956 = vmatpush1.msra.mxu0 0.0
    %3957 = vmatprep.subr.mxu0 0.0
    %3958 = vmatpush1.msra.mxu0 0.0
    %3959 = vmatprep.subr.mxu0 0.0
    %3960 = vmatpush1.msra.mxu0 0.0
    %3961 = vmatprep.subr.mxu0 0.0
    %3962 = vmatpush1.msra.mxu0 0.0
    %3963 = vmatprep.subr.mxu0 0.0
    %3964 = vmatpush1.msra.mxu0 0.0
    %3965 = vmatprep.subr.mxu0 0.0
    %3966 = vmatpush1.msra.mxu0 0.0
    %3967 = vmatprep.subr.mxu0 0.0
    %3968 = vmatpush1.msra.mxu0 0.0
    %3969 = vmatprep.subr.mxu0 0.0
    %3970 = vmatpush1.msra.mxu0 0.0
    %3971 = vmatprep.subr.mxu0 0.0
    %3972 = vmatpush1.msra.mxu0 0.0
    %3973 = vmatprep.subr.mxu0 0.0
    %3974 = vmatpush1.msra.mxu0 0.0
    %3975 = vmatprep.subr.mxu0 0.0
    %3976 = vmatpush1.msra.mxu0 0.0
    %3977 = vmatprep.subr.mxu0 0.0
    %3978 = vmatpush1.msra.mxu0 0.0
    %3979 = vmatprep.subr.mxu0 0.0
    %3980 = vmatpush1.msra.mxu0 0.0
    %3981 = vmatprep.subr.mxu0 0.0
    %3982 = vmatpush1.msra.mxu0 0.0
    %3983 = vmatprep.subr.mxu0 0.0
    %3984 = vmatpush1.msra.mxu0 0.0
    %3985 = vmatprep.subr.mxu0 0.0
    %3986 = vmatpush1.msra.mxu0 0.0
    %3987 = vmatprep.subr.mxu0 0.0
    %3988 = vmatpush1.msra.mxu0 0.0
    %3989 = vmatprep.subr.mxu0 0.0
    %3990 = vmatpush1.msra.mxu0 0.0
    %3991 = vmatprep.subr.mxu0 0.0
    %3992 = vmatpush1.msra.mxu0 0.0
    %3993 = vmatprep.subr.mxu0 0.0
    %3994 = vmatpush1.msra.mxu0 0.0
    %3995 = vmatprep.subr.mxu0 0.0
    %3996 = vmatpush1.msra.mxu0 0.0
    %3997 = vmatprep.subr.mxu0 0.0
    %3998 = vmatpush1.msra.mxu0 0.0
    %3999 = vmatprep.subr.mxu0 0.0
    %4000 = vmatpush1.msra.mxu0 0.0
    %4001 = vmatprep.subr.mxu0 0.0
    %4002 = vmatpush1.msra.mxu0 0.0
    %4003 = vmatprep.subr.mxu0 0.0
    %4004 = vmatpush1.msra.mxu0 0.0
    %4005 = vmatprep.subr.mxu0 0.0
    %4006 = vmatpush1.msra.mxu0 0.0
    %4007 = vmatprep.subr.mxu0 0.0
    %4008 = vmatpush1.msra.mxu0 0.0
    %4009 = vmatprep.subr.mxu0 0.0
    %4010 = vmatpush1.msra.mxu0 0.0
    %4011 = vmatprep.mubr.f32.mxu0 0.0
    %4012 = vmatmul.mubr.f32.gmra.mrb[0].mxu0 %v3945
    %v4013 = vpop.f32.mrb[0].mxu0
    %v4014 = vadd.f32 %v1620, %v4013
    %v4015 = vpop.f32.mrb[0].mxu0
    %4016 = vdwg.mxu0
    %v4017 = vld [vmem:[%s1 + $0x30] sm:$0xff]
    %v4018 = vmul.f32 %v4014, 1.442695
    %v4019 = vpow.pop %v4018
    %4021 = vrot.lane.b32.xlu0 %v4019, 112
    %v4022 = vpop.permute.xlu0 %4021
    %v4024 = vmul.f32 %v4017, %v4022
    %v4025 = vadd.f32 %v4014, %v4024
    %4026 = vrot.lane.b32.xlu0 %v3763, 80
    %v4027 = vpop.permute.xlu0 %4026
    %v4029 = vsel %vm111, %v4025, %v4027
    %v4031 = vsel %vm1622, %v4029, 0
    %4033 = vmatprep.subr.mxu0 0.0
    %4034 = vmatpush1.msra.mxu0 %v1595
    %4035 = vmatprep.subr.mxu0 0.0
    %4036 = vmatpush1.msra.mxu0 %v1596
    %4037 = vmatprep.subr.mxu0 0.0
    %4038 = vmatpush1.msra.mxu0 %v1597
    %4039 = vmatprep.subr.mxu0 0.0
    %4040 = vmatpush1.msra.mxu0 %v1598
    %4041 = vmatprep.subr.mxu0 0.0
    %4042 = vmatpush1.msra.mxu0 %v1599
    %4043 = vmatprep.subr.mxu0 0.0
    %4044 = vmatpush1.msra.mxu0 %v1600
    %4045 = vmatprep.subr.mxu0 0.0
    %4046 = vmatpush1.msra.mxu0 0.0
    %4047 = vmatprep.subr.mxu0 0.0
    %4048 = vmatpush1.msra.mxu0 0.0
    %4049 = vmatprep.subr.mxu0 0.0
    %4050 = vmatpush1.msra.mxu0 0.0
    %4051 = vmatprep.subr.mxu0 0.0
    %4052 = vmatpush1.msra.mxu0 0.0
    %4053 = vmatprep.subr.mxu0 0.0
    %4054 = vmatpush1.msra.mxu0 0.0
    %4055 = vmatprep.subr.mxu0 0.0
    %4056 = vmatpush1.msra.mxu0 0.0
    %4057 = vmatprep.subr.mxu0 0.0
    %4058 = vmatpush1.msra.mxu0 0.0
    %4059 = vmatprep.subr.mxu0 0.0
    %4060 = vmatpush1.msra.mxu0 0.0
    %4061 = vmatprep.subr.mxu0 0.0
    %4062 = vmatpush1.msra.mxu0 0.0
    %4063 = vmatprep.subr.mxu0 0.0
    %4064 = vmatpush1.msra.mxu0 0.0
    %4065 = vmatprep.subr.mxu0 0.0
    %4066 = vmatpush1.msra.mxu0 0.0
    %4067 = vmatprep.subr.mxu0 0.0
    %4068 = vmatpush1.msra.mxu0 0.0
    %4069 = vmatprep.subr.mxu0 0.0
    %4070 = vmatpush1.msra.mxu0 0.0
    %4071 = vmatprep.subr.mxu0 0.0
    %4072 = vmatpush1.msra.mxu0 0.0
    %4073 = vmatprep.subr.mxu0 0.0
    %4074 = vmatpush1.msra.mxu0 0.0
    %4075 = vmatprep.subr.mxu0 0.0
    %4076 = vmatpush1.msra.mxu0 0.0
    %4077 = vmatprep.subr.mxu0 0.0
    %4078 = vmatpush1.msra.mxu0 0.0
    %4079 = vmatprep.subr.mxu0 0.0
    %4080 = vmatpush1.msra.mxu0 0.0
    %4081 = vmatprep.subr.mxu0 0.0
    %4082 = vmatpush1.msra.mxu0 0.0
    %4083 = vmatprep.subr.mxu0 0.0
    %4084 = vmatpush1.msra.mxu0 0.0
    %4085 = vmatprep.subr.mxu0 0.0
    %4086 = vmatpush1.msra.mxu0 0.0
    %4087 = vmatprep.subr.mxu0 0.0
    %4088 = vmatpush1.msra.mxu0 0.0
    %4089 = vmatprep.subr.mxu0 0.0
    %4090 = vmatpush1.msra.mxu0 0.0
    %4091 = vmatprep.subr.mxu0 0.0
    %4092 = vmatpush1.msra.mxu0 0.0
    %4093 = vmatprep.subr.mxu0 0.0
    %4094 = vmatpush1.msra.mxu0 0.0
    %4095 = vmatprep.subr.mxu0 0.0
    %4096 = vmatpush1.msra.mxu0 0.0
    %4097 = vmatprep.mubr.f32.mxu0 0.0
    %4098 = vmatmul.mubr.f32.gmra.mrb[0].mxu0 %v4031
    %v4099 = vpop.f32.mrb[0].mxu0
    %v4100 = vadd.f32 %v1613, %v4099
    %v4101 = vpop.f32.mrb[0].mxu0
    %4102 = vdwg.mxu0
    %v4103 = vtanh.pop %v4100
    %v4104 = vmul.f32 %v4103, 0.5
    %v4105 = vadd.f32 %v4104, 0.5
    %v4106 = vmul.f32 %v4105, %v3757
    %4108 = vrot.lane.b32.xlu0 %v4103, 32
    %v4109 = vpop.permute.xlu0 %4108
    %v4111 = vmul.f32 %v4105, %v4109
    %4113 = vrot.lane.b32.xlu0 %v4111, 32
    %v4114 = vpop.permute.xlu0 %4113
    %v4116 = vadd.f32 %v4106, %v4114
    %v4117 = vtanh.pop %v4116
    %4119 = vrot.lane.b32.xlu0 %v4117, 32
    %v4120 = vpop.permute.xlu0 %4119
    %v4122 = vmul.f32 %v4105, %v4120
    %4124 = vrot.lane.b32.xlu0 %v4122, 64
    %v4125 = vpop.permute.xlu0 %4124
    %4127 = vst.msk [vmem:[#allocation3 + $0x30] sm:$0xff] %vm241, %v4125
    %4128 = vrot.lane.b32.xlu0 %v3865, 80
    %v4129 = vpop.permute.xlu0 %4128
    %v4131 = vsel %vm111, %v4025, %v4129
    %v4133 = vsel %vm1622, %v4131, 0
    %4135 = vmatprep.subr.mxu0 0.0
    %4136 = vmatpush1.msra.mxu0 %v1581
    %4137 = vmatprep.subr.mxu0 0.0
    %4138 = vmatpush1.msra.mxu0 %v1582
    %4139 = vmatprep.subr.mxu0 0.0
    %4140 = vmatpush1.msra.mxu0 %v1583
    %4141 = vmatprep.subr.mxu0 0.0
    %4142 = vmatpush1.msra.mxu0 %v1584
    %4143 = vmatprep.subr.mxu0 0.0
    %4144 = vmatpush1.msra.mxu0 %v1585
    %4145 = vmatprep.subr.mxu0 0.0
    %4146 = vmatpush1.msra.mxu0 %v1586
    %4147 = vmatprep.subr.mxu0 0.0
    %4148 = vmatpush1.msra.mxu0 0.0
    %4149 = vmatprep.subr.mxu0 0.0
    %4150 = vmatpush1.msra.mxu0 0.0
    %4151 = vmatprep.subr.mxu0 0.0
    %4152 = vmatpush1.msra.mxu0 0.0
    %4153 = vmatprep.subr.mxu0 0.0
    %4154 = vmatpush1.msra.mxu0 0.0
    %4155 = vmatprep.subr.mxu0 0.0
    %4156 = vmatpush1.msra.mxu0 0.0
    %4157 = vmatprep.subr.mxu0 0.0
    %4158 = vmatpush1.msra.mxu0 0.0
    %4159 = vmatprep.subr.mxu0 0.0
    %4160 = vmatpush1.msra.mxu0 0.0
    %4161 = vmatprep.subr.mxu0 0.0
    %4162 = vmatpush1.msra.mxu0 0.0
    %4163 = vmatprep.subr.mxu0 0.0
    %4164 = vmatpush1.msra.mxu0 0.0
    %4165 = vmatprep.subr.mxu0 0.0
    %4166 = vmatpush1.msra.mxu0 0.0
    %4167 = vmatprep.subr.mxu0 0.0
    %4168 = vmatpush1.msra.mxu0 0.0
    %4169 = vmatprep.subr.mxu0 0.0
    %4170 = vmatpush1.msra.mxu0 0.0
    %4171 = vmatprep.subr.mxu0 0.0
    %4172 = vmatpush1.msra.mxu0 0.0
    %4173 = vmatprep.subr.mxu0 0.0
    %4174 = vmatpush1.msra.mxu0 0.0
    %4175 = vmatprep.subr.mxu0 0.0
    %4176 = vmatpush1.msra.mxu0 0.0
    %4177 = vmatprep.subr.mxu0 0.0
    %4178 = vmatpush1.msra.mxu0 0.0
    %4179 = vmatprep.subr.mxu0 0.0
    %4180 = vmatpush1.msra.mxu0 0.0
    %4181 = vmatprep.subr.mxu0 0.0
    %4182 = vmatpush1.msra.mxu0 0.0
    %4183 = vmatprep.subr.mxu0 0.0
    %4184 = vmatpush1.msra.mxu0 0.0
    %4185 = vmatprep.subr.mxu0 0.0
    %4186 = vmatpush1.msra.mxu0 0.0
    %4187 = vmatprep.subr.mxu0 0.0
    %4188 = vmatpush1.msra.mxu0 0.0
    %4189 = vmatprep.subr.mxu0 0.0
    %4190 = vmatpush1.msra.mxu0 0.0
    %4191 = vmatprep.subr.mxu0 0.0
    %4192 = vmatpush1.msra.mxu0 0.0
    %4193 = vmatprep.subr.mxu0 0.0
    %4194 = vmatpush1.msra.mxu0 0.0
    %4195 = vmatprep.subr.mxu0 0.0
    %4196 = vmatpush1.msra.mxu0 0.0
    %4197 = vmatprep.subr.mxu0 0.0
    %4198 = vmatpush1.msra.mxu0 0.0
    %4199 = vmatprep.mubr.f32.mxu0 0.0
    %4200 = vmatmul.mubr.f32.gmra.mrb[0].mxu0 %v4133
    %v4201 = vpop.f32.mrb[0].mxu0
    %v4202 = vadd.f32 %v1606, %v4201
    %v4203 = vpop.f32.mrb[0].mxu0
    %4204 = vdwg.mxu0
    %v4205 = vtanh.pop %v4202
    %v4206 = vmul.f32 %v4205, 0.5
    %v4207 = vadd.f32 %v4206, 0.5
    %v4208 = vmul.f32 %v4207, %v3859
    %4210 = vrot.lane.b32.xlu0 %v4205, 32
    %v4211 = vpop.permute.xlu0 %4210
    %v4213 = vmul.f32 %v4207, %v4211
    %4215 = vrot.lane.b32.xlu0 %v4213, 32
    %v4216 = vpop.permute.xlu0 %4215
    %v4218 = vadd.f32 %v4208, %v4216
    %v4219 = vtanh.pop %v4218
    %4221 = vrot.lane.b32.xlu0 %v4219, 32
    %v4222 = vpop.permute.xlu0 %4221
    %v4224 = vmul.f32 %v4207, %v4222
    %v4225 = vld [vmem:[#allocation2 + $0x38] sm:$0xff]
    %4227 = vrot.lane.b32.xlu0 %v4224, 64
    %v4228 = vpop.permute.xlu0 %4227
    %v4229 = vsel %vm241, %v4228, 0
    %4231 = vmatprep.subr.mxu0 0.0
    %4232 = vmatpush1.msra.mxu0 %v1587
    %4233 = vmatprep.subr.mxu0 0.0
    %4234 = vmatpush1.msra.mxu0 %v1588
    %4235 = vmatprep.subr.mxu0 0.0
    %4236 = vmatpush1.msra.mxu0 %v1589
    %4237 = vmatprep.subr.mxu0 0.0
    %4238 = vmatpush1.msra.mxu0 %v1590
    %4239 = vmatprep.subr.mxu0 0.0
    %4240 = vmatpush1.msra.mxu0 0.0
    %4241 = vmatprep.subr.mxu0 0.0
    %4242 = vmatpush1.msra.mxu0 0.0
    %4243 = vmatprep.subr.mxu0 0.0
    %4244 = vmatpush1.msra.mxu0 0.0
    %4245 = vmatprep.subr.mxu0 0.0
    %4246 = vmatpush1.msra.mxu0 0.0
    %4247 = vmatprep.subr.mxu0 0.0
    %4248 = vmatpush1.msra.mxu0 0.0
    %4249 = vmatprep.subr.mxu0 0.0
    %4250 = vmatpush1.msra.mxu0 0.0
    %4251 = vmatprep.subr.mxu0 0.0
    %4252 = vmatpush1.msra.mxu0 0.0
    %4253 = vmatprep.subr.mxu0 0.0
    %4254 = vmatpush1.msra.mxu0 0.0
    %4255 = vmatprep.subr.mxu0 0.0
    %4256 = vmatpush1.msra.mxu0 0.0
    %4257 = vmatprep.subr.mxu0 0.0
    %4258 = vmatpush1.msra.mxu0 0.0
    %4259 = vmatprep.subr.mxu0 0.0
    %4260 = vmatpush1.msra.mxu0 0.0
    %4261 = vmatprep.subr.mxu0 0.0
    %4262 = vmatpush1.msra.mxu0 0.0
    %4263 = vmatprep.subr.mxu0 0.0
    %4264 = vmatpush1.msra.mxu0 0.0
    %4265 = vmatprep.subr.mxu0 0.0
    %4266 = vmatpush1.msra.mxu0 0.0
    %4267 = vmatprep.subr.mxu0 0.0
    %4268 = vmatpush1.msra.mxu0 0.0
    %4269 = vmatprep.subr.mxu0 0.0
    %4270 = vmatpush1.msra.mxu0 0.0
    %4271 = vmatprep.subr.mxu0 0.0
    %4272 = vmatpush1.msra.mxu0 0.0
    %4273 = vmatprep.subr.mxu0 0.0
    %4274 = vmatpush1.msra.mxu0 0.0
    %4275 = vmatprep.subr.mxu0 0.0
    %4276 = vmatpush1.msra.mxu0 0.0
    %4277 = vmatprep.subr.mxu0 0.0
    %4278 = vmatpush1.msra.mxu0 0.0
    %4279 = vmatprep.subr.mxu0 0.0
    %4280 = vmatpush1.msra.mxu0 0.0
    %4281 = vmatprep.subr.mxu0 0.0
    %4282 = vmatpush1.msra.mxu0 0.0
    %4283 = vmatprep.subr.mxu0 0.0
    %4284 = vmatpush1.msra.mxu0 0.0
    %4285 = vmatprep.subr.mxu0 0.0
    %4286 = vmatpush1.msra.mxu0 0.0
    %4287 = vmatprep.subr.mxu0 0.0
    %4288 = vmatpush1.msra.mxu0 0.0
    %4289 = vmatprep.subr.mxu0 0.0
    %4290 = vmatpush1.msra.mxu0 0.0
    %4291 = vmatprep.subr.mxu0 0.0
    %4292 = vmatpush1.msra.mxu0 0.0
    %4293 = vmatprep.subr.mxu0 0.0
    %4294 = vmatpush1.msra.mxu0 0.0
    %4295 = vmatprep.mubr.f32.mxu0 0.0
    %4296 = vmatmul.mubr.f32.gmra.mrb[0].mxu0 %v4229
    %v4297 = vpop.f32.mrb[0].mxu0
    %v4298 = vadd.f32 0.0, %v4297
    %v4299 = vpop.f32.mrb[0].mxu0
    %4300 = vdwg.mxu0
    %v4301 = vadd.f32 %v4225, %v4298
    %v4302 = vtanh.pop %v4301
    %v4304 = vsel %vm241, %v4302, 0
    %4306 = vmatprep.subr.mxu0 0.0
    %4307 = vmatpush1.msra.mxu0 %v1591
    %4308 = vmatprep.subr.mxu0 0.0
    %4309 = vmatpush1.msra.mxu0 %v1592
    %4310 = vmatprep.subr.mxu0 0.0
    %4311 = vmatpush1.msra.mxu0 %v1593
    %4312 = vmatprep.subr.mxu0 0.0
    %4313 = vmatpush1.msra.mxu0 %v1594
    %4314 = vmatprep.subr.mxu0 0.0
    %4315 = vmatpush1.msra.mxu0 0.0
    %4316 = vmatprep.subr.mxu0 0.0
    %4317 = vmatpush1.msra.mxu0 0.0
    %4318 = vmatprep.subr.mxu0 0.0
    %4319 = vmatpush1.msra.mxu0 0.0
    %4320 = vmatprep.subr.mxu0 0.0
    %4321 = vmatpush1.msra.mxu0 0.0
    %4322 = vmatprep.subr.mxu0 0.0
    %4323 = vmatpush1.msra.mxu0 0.0
    %4324 = vmatprep.subr.mxu0 0.0
    %4325 = vmatpush1.msra.mxu0 0.0
    %4326 = vmatprep.subr.mxu0 0.0
    %4327 = vmatpush1.msra.mxu0 0.0
    %4328 = vmatprep.subr.mxu0 0.0
    %4329 = vmatpush1.msra.mxu0 0.0
    %4330 = vmatprep.subr.mxu0 0.0
    %4331 = vmatpush1.msra.mxu0 0.0
    %4332 = vmatprep.subr.mxu0 0.0
    %4333 = vmatpush1.msra.mxu0 0.0
    %4334 = vmatprep.subr.mxu0 0.0
    %4335 = vmatpush1.msra.mxu0 0.0
    %4336 = vmatprep.subr.mxu0 0.0
    %4337 = vmatpush1.msra.mxu0 0.0
    %4338 = vmatprep.subr.mxu0 0.0
    %4339 = vmatpush1.msra.mxu0 0.0
    %4340 = vmatprep.subr.mxu0 0.0
    %4341 = vmatpush1.msra.mxu0 0.0
    %4342 = vmatprep.subr.mxu0 0.0
    %4343 = vmatpush1.msra.mxu0 0.0
    %4344 = vmatprep.subr.mxu0 0.0
    %4345 = vmatpush1.msra.mxu0 0.0
    %4346 = vmatprep.subr.mxu0 0.0
    %4347 = vmatpush1.msra.mxu0 0.0
    %4348 = vmatprep.subr.mxu0 0.0
    %4349 = vmatpush1.msra.mxu0 0.0
    %4350 = vmatprep.subr.mxu0 0.0
    %4351 = vmatpush1.msra.mxu0 0.0
    %4352 = vmatprep.subr.mxu0 0.0
    %4353 = vmatpush1.msra.mxu0 0.0
    %4354 = vmatprep.subr.mxu0 0.0
    %4355 = vmatpush1.msra.mxu0 0.0
    %4356 = vmatprep.subr.mxu0 0.0
    %4357 = vmatpush1.msra.mxu0 0.0
    %4358 = vmatprep.subr.mxu0 0.0
    %4359 = vmatpush1.msra.mxu0 0.0
    %4360 = vmatprep.subr.mxu0 0.0
    %4361 = vmatpush1.msra.mxu0 0.0
    %4362 = vmatprep.subr.mxu0 0.0
    %4363 = vmatpush1.msra.mxu0 0.0
    %4364 = vmatprep.subr.mxu0 0.0
    %4365 = vmatpush1.msra.mxu0 0.0
    %4366 = vmatprep.subr.mxu0 0.0
    %4367 = vmatpush1.msra.mxu0 0.0
    %4368 = vmatprep.subr.mxu0 0.0
    %4369 = vmatpush1.msra.mxu0 0.0
    %4370 = vmatprep.mubr.f32.mxu0 0.0
    %4371 = vmatmul.mubr.f32.gmra.mrb[0].mxu0 %v4304
    %v4372 = vpop.f32.mrb[0].mxu0
    %v4373 = vadd.f32 %v1620, %v4372
    %v4374 = vpop.f32.mrb[0].mxu0
    %4375 = vdwg.mxu0
    %v4376 = vld [vmem:[%s1 + $0x38] sm:$0xff]
    %v4377 = vmul.f32 %v4373, 1.442695
    %v4378 = vpow.pop %v4377
    %4380 = vrot.lane.b32.xlu0 %v4378, 112
    %v4381 = vpop.permute.xlu0 %4380
    %v4383 = vmul.f32 %v4376, %v4381
    %v4384 = vadd.f32 %v4373, %v4383
    %4385 = vrot.lane.b32.xlu0 %v4122, 80
    %v4386 = vpop.permute.xlu0 %4385
    %v4388 = vsel %vm111, %v4384, %v4386
    %v4390 = vsel %vm1622, %v4388, 0
    %4392 = vmatprep.subr.mxu0 0.0
    %4393 = vmatpush1.msra.mxu0 %v1595
    %4394 = vmatprep.subr.mxu0 0.0
    %4395 = vmatpush1.msra.mxu0 %v1596
    %4396 = vmatprep.subr.mxu0 0.0
    %4397 = vmatpush1.msra.mxu0 %v1597
    %4398 = vmatprep.subr.mxu0 0.0
    %4399 = vmatpush1.msra.mxu0 %v1598
    %4400 = vmatprep.subr.mxu0 0.0
    %4401 = vmatpush1.msra.mxu0 %v1599
    %4402 = vmatprep.subr.mxu0 0.0
    %4403 = vmatpush1.msra.mxu0 %v1600
    %4404 = vmatprep.subr.mxu0 0.0
    %4405 = vmatpush1.msra.mxu0 0.0
    %4406 = vmatprep.subr.mxu0 0.0
    %4407 = vmatpush1.msra.mxu0 0.0
    %4408 = vmatprep.subr.mxu0 0.0
    %4409 = vmatpush1.msra.mxu0 0.0
    %4410 = vmatprep.subr.mxu0 0.0
    %4411 = vmatpush1.msra.mxu0 0.0
    %4412 = vmatprep.subr.mxu0 0.0
    %4413 = vmatpush1.msra.mxu0 0.0
    %4414 = vmatprep.subr.mxu0 0.0
    %4415 = vmatpush1.msra.mxu0 0.0
    %4416 = vmatprep.subr.mxu0 0.0
    %4417 = vmatpush1.msra.mxu0 0.0
    %4418 = vmatprep.subr.mxu0 0.0
    %4419 = vmatpush1.msra.mxu0 0.0
    %4420 = vmatprep.subr.mxu0 0.0
    %4421 = vmatpush1.msra.mxu0 0.0
    %4422 = vmatprep.subr.mxu0 0.0
    %4423 = vmatpush1.msra.mxu0 0.0
    %4424 = vmatprep.subr.mxu0 0.0
    %4425 = vmatpush1.msra.mxu0 0.0
    %4426 = vmatprep.subr.mxu0 0.0
    %4427 = vmatpush1.msra.mxu0 0.0
    %4428 = vmatprep.subr.mxu0 0.0
    %4429 = vmatpush1.msra.mxu0 0.0
    %4430 = vmatprep.subr.mxu0 0.0
    %4431 = vmatpush1.msra.mxu0 0.0
    %4432 = vmatprep.subr.mxu0 0.0
    %4433 = vmatpush1.msra.mxu0 0.0
    %4434 = vmatprep.subr.mxu0 0.0
    %4435 = vmatpush1.msra.mxu0 0.0
    %4436 = vmatprep.subr.mxu0 0.0
    %4437 = vmatpush1.msra.mxu0 0.0
    %4438 = vmatprep.subr.mxu0 0.0
    %4439 = vmatpush1.msra.mxu0 0.0
    %4440 = vmatprep.subr.mxu0 0.0
    %4441 = vmatpush1.msra.mxu0 0.0
    %4442 = vmatprep.subr.mxu0 0.0
    %4443 = vmatpush1.msra.mxu0 0.0
    %4444 = vmatprep.subr.mxu0 0.0
    %4445 = vmatpush1.msra.mxu0 0.0
    %4446 = vmatprep.subr.mxu0 0.0
    %4447 = vmatpush1.msra.mxu0 0.0
    %4448 = vmatprep.subr.mxu0 0.0
    %4449 = vmatpush1.msra.mxu0 0.0
    %4450 = vmatprep.subr.mxu0 0.0
    %4451 = vmatpush1.msra.mxu0 0.0
    %4452 = vmatprep.subr.mxu0 0.0
    %4453 = vmatpush1.msra.mxu0 0.0
    %4454 = vmatprep.subr.mxu0 0.0
    %4455 = vmatpush1.msra.mxu0 0.0
    %4456 = vmatprep.mubr.f32.mxu0 0.0
    %4457 = vmatmul.mubr.f32.gmra.mrb[0].mxu0 %v4390
    %v4458 = vpop.f32.mrb[0].mxu0
    %v4459 = vadd.f32 %v1613, %v4458
    %v4460 = vpop.f32.mrb[0].mxu0
    %4461 = vdwg.mxu0
    %v4462 = vtanh.pop %v4459
    %v4463 = vmul.f32 %v4462, 0.5
    %v4464 = vadd.f32 %v4463, 0.5
    %v4465 = vmul.f32 %v4464, %v4116
    %4467 = vrot.lane.b32.xlu0 %v4462, 32
    %v4468 = vpop.permute.xlu0 %4467
    %v4470 = vmul.f32 %v4464, %v4468
    %4472 = vrot.lane.b32.xlu0 %v4470, 32
    %v4473 = vpop.permute.xlu0 %4472
    %v4475 = vadd.f32 %v4465, %v4473
    %v4476 = vtanh.pop %v4475
    %4478 = vrot.lane.b32.xlu0 %v4476, 32
    %v4479 = vpop.permute.xlu0 %4478
    %v4481 = vmul.f32 %v4464, %v4479
    %4483 = vrot.lane.b32.xlu0 %v4481, 64
    %v4484 = vpop.permute.xlu0 %4483
    %4486 = vst.msk [vmem:[#allocation3 + $0x38] sm:$0xff] %vm241, %v4484
    %v4487 = vld [vmem:[#allocation3] sm:$0xff]
    %v4488 = vld [vmem:[#allocation3 + $0x8] sm:$0xff]
    %v4489 = vld [vmem:[#allocation3 + $0x10] sm:$0xff]
    %v4490 = vld [vmem:[#allocation3 + $0x18] sm:$0xff]
    %v4491 = vld [vmem:[#allocation3 + $0x20] sm:$0xff]
    %v4492 = vld [vmem:[#allocation3 + $0x28] sm:$0xff]
    %v4493 = vld [vmem:[#allocation3 + $0x30] sm:$0xff]
    %v4494 = vld [vmem:[#allocation3 + $0x38] sm:$0xff]
    %v4495 = vld [vmem:[%s14] sm:$0xff]
    %v4496 = vld [vmem:[%s14 + $0x8] sm:$0xff]
    %v4497 = vld [vmem:[%s14 + $0x10] sm:$0xff]
    %v4498 = vld [vmem:[%s14 + $0x18] sm:$0xff]
    %v4499 = vld [vmem:[%s15] sm:$0x1]
    %v4501 = vlaneseq
    %v4502 = vshrl.u32 %v4501, 7
    %v4503 = vsub.s32 0, %v4502
    %v4504 = vrot.slane %v4499, %v4503
    %v4507 = vsel %vm241, %v4487, 0
    %v4510 = vsel %vm241, %v4488, 0
    %v4513 = vsel %vm241, %v4489, 0
    %v4516 = vsel %vm241, %v4490, 0
    %v4519 = vsel %vm241, %v4491, 0
    %v4522 = vsel %vm241, %v4492, 0
    %v4525 = vsel %vm241, %v4493, 0
    %v4528 = vsel %vm241, %v4494, 0
    %4530 = vmatprep.subr.mxu0 0.0
    %4531 = vmatpush1.msra.mxu0 %v4495
    %4532 = vmatprep.subr.mxu0 0.0
    %4533 = vmatpush1.msra.mxu0 %v4496
    %4534 = vmatprep.subr.mxu0 0.0
    %4535 = vmatpush1.msra.mxu0 %v4497
    %4536 = vmatprep.subr.mxu0 0.0
    %4537 = vmatpush1.msra.mxu0 %v4498
    %4538 = vmatprep.subr.mxu0 0.0
    %4539 = vmatpush1.msra.mxu0 0.0
    %4540 = vmatprep.subr.mxu0 0.0
    %4541 = vmatpush1.msra.mxu0 0.0
    %4542 = vmatprep.subr.mxu0 0.0
    %4543 = vmatpush1.msra.mxu0 0.0
    %4544 = vmatprep.subr.mxu0 0.0
    %4545 = vmatpush1.msra.mxu0 0.0
    %4546 = vmatprep.subr.mxu0 0.0
    %4547 = vmatpush1.msra.mxu0 0.0
    %4548 = vmatprep.subr.mxu0 0.0
    %4549 = vmatpush1.msra.mxu0 0.0
    %4550 = vmatprep.subr.mxu0 0.0
    %4551 = vmatpush1.msra.mxu0 0.0
    %4552 = vmatprep.subr.mxu0 0.0
    %4553 = vmatpush1.msra.mxu0 0.0
    %4554 = vmatprep.subr.mxu0 0.0
    %4555 = vmatpush1.msra.mxu0 0.0
    %4556 = vmatprep.subr.mxu0 0.0
    %4557 = vmatpush1.msra.mxu0 0.0
    %4558 = vmatprep.subr.mxu0 0.0
    %4559 = vmatpush1.msra.mxu0 0.0
    %4560 = vmatprep.subr.mxu0 0.0
    %4561 = vmatpush1.msra.mxu0 0.0
    %4562 = vmatprep.subr.mxu0 0.0
    %4563 = vmatpush1.msra.mxu0 0.0
    %4564 = vmatprep.subr.mxu0 0.0
    %4565 = vmatpush1.msra.mxu0 0.0
    %4566 = vmatprep.subr.mxu0 0.0
    %4567 = vmatpush1.msra.mxu0 0.0
    %4568 = vmatprep.subr.mxu0 0.0
    %4569 = vmatpush1.msra.mxu0 0.0
    %4570 = vmatprep.subr.mxu0 0.0
    %4571 = vmatpush1.msra.mxu0 0.0
    %4572 = vmatprep.subr.mxu0 0.0
    %4573 = vmatpush1.msra.mxu0 0.0
    %4574 = vmatprep.subr.mxu0 0.0
    %4575 = vmatpush1.msra.mxu0 0.0
    %4576 = vmatprep.subr.mxu0 0.0
    %4577 = vmatpush1.msra.mxu0 0.0
    %4578 = vmatprep.subr.mxu0 0.0
    %4579 = vmatpush1.msra.mxu0 0.0
    %4580 = vmatprep.subr.mxu0 0.0
    %4581 = vmatpush1.msra.mxu0 0.0
    %4582 = vmatprep.subr.mxu0 0.0
    %4583 = vmatpush1.msra.mxu0 0.0
    %4584 = vmatprep.subr.mxu0 0.0
    %4585 = vmatpush1.msra.mxu0 0.0
    %4586 = vmatprep.subr.mxu0 0.0
    %4587 = vmatpush1.msra.mxu0 0.0
    %4588 = vmatprep.subr.mxu0 0.0
    %4589 = vmatpush1.msra.mxu0 0.0
    %4590 = vmatprep.subr.mxu0 0.0
    %4591 = vmatpush1.msra.mxu0 0.0
    %4592 = vmatprep.subr.mxu0 0.0
    %4593 = vmatpush1.msra.mxu0 0.0
    %4594 = vmatprep.mubr.f32.mxu0 0.0
    %4595 = vmatmul.mubr.f32.gmra.mrb[0].mxu0 %v4507
    %v4596 = vpop.f32.mrb[0].mxu0
    %v4597 = vadd.f32 %v4504, %v4596
    %v4598 = vpop.f32.mrb[0].mxu0
    %4599 = vmatprep.mubr.f32.mxu0 0.0
    %4600 = vmatmul.mubr.f32.gmra.mrb[0].mxu0 %v4510
    %v4601 = vpop.f32.mrb[0].mxu0
    %v4602 = vadd.f32 %v4504, %v4601
    %v4603 = vpop.f32.mrb[0].mxu0
    %4604 = vmatprep.mubr.f32.mxu0 0.0
    %4605 = vmatmul.mubr.f32.gmra.mrb[0].mxu0 %v4513
    %v4606 = vpop.f32.mrb[0].mxu0
    %v4607 = vadd.f32 %v4504, %v4606
    %v4608 = vpop.f32.mrb[0].mxu0
    %4609 = vmatprep.mubr.f32.mxu0 0.0
    %4610 = vmatmul.mubr.f32.gmra.mrb[0].mxu0 %v4516
    %v4611 = vpop.f32.mrb[0].mxu0
    %v4612 = vadd.f32 %v4504, %v4611
    %v4613 = vpop.f32.mrb[0].mxu0
    %4614 = vmatprep.mubr.f32.mxu0 0.0
    %4615 = vmatmul.mubr.f32.gmra.mrb[0].mxu0 %v4519
    %v4616 = vpop.f32.mrb[0].mxu0
    %v4617 = vadd.f32 %v4504, %v4616
    %v4618 = vpop.f32.mrb[0].mxu0
    %4619 = vmatprep.mubr.f32.mxu0 0.0
    %4620 = vmatmul.mubr.f32.gmra.mrb[0].mxu0 %v4522
    %v4621 = vpop.f32.mrb[0].mxu0
    %v4622 = vadd.f32 %v4504, %v4621
    %v4623 = vpop.f32.mrb[0].mxu0
    %4624 = vmatprep.mubr.f32.mxu0 0.0
    %4625 = vmatmul.mubr.f32.gmra.mrb[0].mxu0 %v4525
    %v4626 = vpop.f32.mrb[0].mxu0
    %v4627 = vadd.f32 %v4504, %v4626
    %v4628 = vpop.f32.mrb[0].mxu0
    %4629 = vmatprep.mubr.f32.mxu0 0.0
    %4630 = vmatmul.mubr.f32.gmra.mrb[0].mxu0 %v4528
    %v4631 = vpop.f32.mrb[0].mxu0
    %v4632 = vadd.f32 %v4504, %v4631
    %v4633 = vpop.f32.mrb[0].mxu0
    %4634 = vdwg.mxu0
    %4635 = vst.msk [vmem:[%s16] sm:$0xff] %vm111, %v4597
    %4636 = vst.msk [vmem:[%s16 + $0x8] sm:$0xff] %vm111, %v4602
    %4637 = vst.msk [vmem:[%s16 + $0x10] sm:$0xff] %vm111, %v4607
    %4638 = vst.msk [vmem:[%s16 + $0x18] sm:$0xff] %vm111, %v4612
    %4639 = vst.msk [vmem:[%s16 + $0x20] sm:$0xff] %vm111, %v4617
    %4640 = vst.msk [vmem:[%s16 + $0x28] sm:$0xff] %vm111, %v4622
    %4641 = vst.msk [vmem:[%s16 + $0x30] sm:$0xff] %vm111, %v4627
    %4642 = vst.msk [vmem:[%s16 + $0x38] sm:$0xff] %vm111, %v4632
    // Predicated region
    $region74: #{tpu_custom_call.1} parent=1 // pred_check
      _
    $region75: #{tpu_custom_call.1} parent=1 // pred_check_branch
      %4644 = sbr.rel (0) target = $region77
    $region76: #{tpu_custom_call.1} parent=1 // pred_region
      _
    $region77: #{tpu_custom_call.1} parent=1 // pred_fallthru
      _
    // Predicated region
    $region78: #{tpu_custom_call.1} parent=1 // pred_check
      _
    $region79: #{tpu_custom_call.1} parent=1 // pred_check_branch
      %4646 = sbr.rel (0) target = $region81
    $region80: #{tpu_custom_call.1} parent=1 // pred_region
      _
    $region81: #{tpu_custom_call.1} parent=1 // pred_fallthru
      _
    %4647 = vsyncpa [#allocation5], 1
    %4648 = vsyncpa [#allocation7], 1

</llo_original>
